<compile_context>
chip_gen: v5e
topology: v5e:2x2
jax: 0.10.0
libtpu: 0.0.40
codegen_flags: <defaults>
</compile_context>

<pallas_src>
import functools

import numpy as np

import jax
import jax.numpy as jnp
from jax.experimental import pallas as pl
from jax.experimental.pallas import tpu as pltpu


# MXU input dtype (accumulation is always f32 via preferred_element_type).
MXU_DTYPE = jnp.bfloat16


def _mx(x):
    return x.astype(MXU_DTYPE)


# ----------------------------- fused kernel ---------------------------------

def make_fwd_kernel(unit_downsample_flags):
    """Build the whole-network kernel.  One grid step == one batch image.

    Ref order: (patches_ref, *const_refs, out_ref); constants are consumed in
    exactly the order prepare_params() packs them.
    """
    n_taps = 9

    def kernel(*refs):
        patches_ref = refs[0]
        out_ref = refs[-1]
        it = iter(refs[1:-1])

        def nxt():
            return next(it)[...]

        # ---- stem: 3x3/s2 conv (im2col matmul) + BN + ReLU ----
        w_stem = nxt(); s_stem = nxt(); b_stem = nxt(); spool = nxt()
        p = patches_ref[0]                                   # (Hc*Wc, 9*Cin)
        y = jnp.dot(_mx(p), w_stem, preferred_element_type=jnp.float32)
        y = jnp.maximum(y * s_stem + b_stem, 0.0)            # (Hc*Wc, base)

        # ---- stem: 3x3/s2 maxpool: one stacked tap matmul + balanced tree max.
        # OOB taps select zero rows; safe because y >= 0 post-ReLU.
        taps = jnp.dot(spool, _mx(y), preferred_element_type=jnp.float32)
        mo = spool.shape[0] // n_taps
        parts = [taps[t * mo:(t + 1) * mo, :] for t in range(n_taps)]
        while len(parts) > 1:
            nxt_parts = [jnp.maximum(parts[i], parts[i + 1])
                         for i in range(0, len(parts) - 1, 2)]
            if len(parts) % 2:
                nxt_parts.append(parts[-1])
            parts = nxt_parts
        x = parts[0]                                          # (Hp*Wp, base) f32

        # ---- ShuffleNetV1 units (all VMEM-resident) ----
        for downsample in unit_downsample_flags:
            w1 = nxt(); s1 = nxt(); b1 = nxt()
            sdw = nxt(); w2eff = nxt(); b2 = nxt(); rmat = nxt()
            w3 = nxt(); s3 = nxt(); b3 = nxt()
            if downsample:
                apool = nxt(); emb = nxt()

            xc = _mx(x)
            # conv1: grouped 1x1 (+ channel shuffle folded into the weight
            # columns) + BN + ReLU.
            h = jnp.dot(xc, w1, preferred_element_type=jnp.float32)
            h = jnp.maximum(h * s1 + b1, 0.0)                 # (Mi, mid)
            # 3x3 depthwise + BN: stacked tap-selection matmul, VPU multiply by
            # (BN-folded) per-tap weights, tap-sum matmul against 0/1 matrix.
            t_all = jnp.dot(sdw, _mx(h), preferred_element_type=jnp.float32)
            d = jnp.dot(rmat, _mx(t_all * w2eff),
                        preferred_element_type=jnp.float32) + b2   # (Mo, mid)
            # conv3: grouped 1x1 + BN (pre-widened to full width for concat
            # units so the epilogue is a dense add + ReLU).
            br = jnp.dot(_mx(d), w3, preferred_element_type=jnp.float32)
            br = br * s3 + b3
            if downsample:
                # AvgPool2d(3, s2, p1, count_include_pad=True) identity branch:
                # 0/1 tap-union matmul, exact 1/9 scale in f32, [I | 0] embed.
                idp = jnp.dot(apool, xc,
                              preferred_element_type=jnp.float32) * (1.0 / 9.0)
                idp = jnp.dot(_mx(idp), emb, preferred_element_type=jnp.float32)
                x = jnp.maximum(br + idp, 0.0)
            else:
                x = jnp.maximum(br + x, 0.0)

        out_ref[...] = x.reshape(out_ref.shape)

    return kernel


# --------------------- host-side precompute (numpy, init-time) ---------------

def _tap_selection(h, w, stride):
    """0/1 matrices selecting the 9 taps of a 3x3/p1 window (OOB tap = zero row)."""
    ho = (h + 2 - 3) // stride + 1
    wo = (w + 2 - 3) // stride + 1
    sel = np.zeros((9, ho * wo, h * w), np.float32)
    for kh in range(3):
        for kw in range(3):
            t = kh * 3 + kw
            for oh in range(ho):
                ih = oh * stride + kh - 1
                if ih < 0 or ih >= h:
                    continue
                for ow in range(wo):
                    iw = ow * stride + kw - 1
                    if iw < 0 or iw >= w:
                        continue
                    sel[t, oh * wo + ow, ih * w + iw] = 1.0
    return sel, ho, wo


def _grouped_pw_matrix(w_torch, groups):
    """Torch (Cout, Cin//g, 1, 1) grouped 1x1 weight -> block-diag (Cin, Cout)."""
    w = np.asarray(w_torch)
    cout, cin_g = w.shape[0], w.shape[1]
    cout_g = cout // groups
    full = np.zeros((cin_g * groups, cout), np.float32)
    for g in range(groups):
        blk = w[g * cout_g:(g + 1) * cout_g, :, 0, 0]        # (cout_g, cin_g)
        full[g * cin_g:(g + 1) * cin_g, g * cout_g:(g + 1) * cout_g] = blk.T
    return full


# --------------------------- parameter construction --------------------------

def _conv_bn_params(key, cin, cout, ksize, groups=1):
    kw, kg, kb, km, kv = jax.random.split(key, 5)
    w = 0.1 * jax.random.normal(kw, (cout, cin // groups, ksize, ksize),
                                jnp.float32)
    gamma = 1.0 + 0.1 * jax.random.normal(kg, (cout,), jnp.float32)
    beta = 0.1 * jax.random.normal(kb, (cout,), jnp.float32)
    mean = 0.1 * jax.random.normal(km, (cout,), jnp.float32)
    var = 1.0 + jnp.abs(jax.random.normal(kv, (cout,), jnp.float32))
    scale = gamma / jnp.sqrt(var + 1e-5)
    bias = beta - mean * scale
    return {"w": w, "scale": scale, "bias": bias}


# Small, structurally identical configuration of ShuffleNetV1Backbone.
CFG = dict(
    in_channels=3, base_channels=16, groups=4,
    stage_channels=(32, 64, 128), stage_blocks=(2, 2, 2),
    downsamples=(1, 1, 1), with_groups=(0, 1, 1),
)


def init_params(key, cfg):
    params = {}
    key, k = jax.random.split(key)
    params["stem"] = _conv_bn_params(k, cfg["in_channels"],
                                     cfg["base_channels"], 3)
    in_ch = cfg["base_channels"]
    stages = []
    for si in range(len(cfg["stage_blocks"])):
        out_ch = cfg["stage_channels"][si]
        blocks = []
        for bi in range(cfg["stage_blocks"][si]):
            downsample = (bi == 0 and cfg["downsamples"][si] == 1)
            with_group = bool(cfg["with_groups"][si]) if bi == 0 else True
            stride = 2 if downsample else 1
            branch_out = out_ch - in_ch if downsample else out_ch
            g1 = cfg["groups"] if with_group else 1
            key, k1 = jax.random.split(key)
            key, k2 = jax.random.split(key)
            key, k3 = jax.random.split(key)
            mid = branch_out // 4
            blocks.append(dict(
                conv1=_conv_bn_params(k1, in_ch, mid, 1, groups=g1),
                conv2=_conv_bn_params(k2, mid, mid, 3, groups=mid),
                conv3=_conv_bn_params(k3, mid, branch_out, 1,
                                      groups=cfg["groups"]),
                meta=dict(stride=stride, downsample=downsample, groups1=g1),
            ))
            in_ch = out_ch
        stages.append(blocks)
    params["stages"] = stages
    return params


def prepare_params(raw, cfg, in_hw):
    """One-time relayout of all weights + per-image tap constants (O(1) in batch)."""
    h, w = in_hw
    groups = cfg["groups"]
    mxu = lambda a: jnp.asarray(np.asarray(a, np.float32), MXU_DTYPE)
    f32 = lambda a: jnp.asarray(np.asarray(a, np.float32), jnp.float32)

    consts = []
    unit_flags = []
    flops = 0

    # --- stem ---
    st = raw["stem"]
    cin, cout = cfg["in_channels"], cfg["base_channels"]
    w_mat = np.transpose(np.asarray(st["w"]), (2, 3, 1, 0)).reshape(9 * cin, cout)
    hc, wc = (h + 2 - 3) // 2 + 1, (w + 2 - 3) // 2 + 1          # conv 3x3/s2 out
    sel_pool, hp, wp = _tap_selection(hc, wc, 2)                 # maxpool 3x3/s2
    mi_pool, mo_pool = hc * wc, hp * wp
    consts += [
        mxu(w_mat),
        f32(np.asarray(st["scale"], np.float32).reshape(1, cout)),
        f32(np.asarray(st["bias"], np.float32).reshape(1, cout)),
        mxu(sel_pool.reshape(9 * mo_pool, mi_pool)),
    ]
    flops += 2 * mi_pool * (9 * cin) * cout + 2 * (9 * mo_pool) * mi_pool * cout
    n_patch_rows, patch_cols = mi_pool, 9 * cin
    h, w = hp, wp

    # --- units ---
    in_ch = cfg["base_channels"]
    for si, blocks in enumerate(raw["stages"]):
        out_ch = cfg["stage_channels"][si]
        for blk in blocks:
            meta = blk["meta"]
            stride, downsample, g1 = meta["stride"], meta["downsample"], meta["groups1"]
            branch_out = out_ch - in_ch if downsample else out_ch
            mid = branch_out // 4

            # conv1: block-diag grouped 1x1 + channel shuffle folded into columns.
            w1 = _grouped_pw_matrix(blk["conv1"]["w"], g1)            # (Cin, mid)
            perm = np.arange(mid).reshape(groups, mid // groups).T.reshape(-1)
            w1 = w1[:, perm]
            s1 = np.asarray(blk["conv1"]["scale"], np.float32)[perm].reshape(1, mid)
            b1 = np.asarray(blk["conv1"]["bias"], np.float32)[perm].reshape(1, mid)

            # conv2 depthwise: (mid,1,3,3) -> per-tap (9, mid) weights.
            w2_tap = np.asarray(blk["conv2"]["w"], np.float32)[:, 0]
            w2_tap = np.transpose(w2_tap, (1, 2, 0)).reshape(9, mid)
            s2 = np.asarray(blk["conv2"]["scale"], np.float32).reshape(1, mid)
            b2 = np.asarray(blk["conv2"]["bias"], np.float32).reshape(1, mid)

            # Spatial tap selection (per image) for the 3x3 window.
            sel, ho, wo = _tap_selection(h, w, stride)
            mi, mo = h * w, ho * wo
            sdw = sel.reshape(9 * mo, mi)                     # stacked 0/1 taps
            w2eff = np.repeat(w2_tap * s2, mo, axis=0)        # (9*mo, mid), BN-scale folded
            rmat = np.zeros((mo, 9 * mo), np.float32)         # 0/1 tap-sum matrix
            for t in range(9):
                rmat[np.arange(mo), t * mo + np.arange(mo)] = 1.0

            # conv3: block-diag grouped 1x1.
            w3 = _grouped_pw_matrix(blk["conv3"]["w"], groups)
            s3 = np.asarray(blk["conv3"]["scale"], np.float32).reshape(1, branch_out)
            b3 = np.asarray(blk["conv3"]["bias"], np.float32).reshape(1, branch_out)

            if downsample:
                c_tot = in_ch + branch_out                    # == out_ch
                w3w = np.zeros((mid, c_tot), np.float32); w3w[:, in_ch:] = w3
                s3w = np.ones((1, c_tot), np.float32);    s3w[:, in_ch:] = s3
                b3w = np.zeros((1, c_tot), np.float32);   b3w[:, in_ch:] = b3
                apool01 = sel.sum(axis=0)                     # (mo, mi) 0/1 (exact in bf16)
                emb = np.zeros((in_ch, c_tot), np.float32)
                emb[np.arange(in_ch), np.arange(in_ch)] = 1.0  # [I | 0]
                consts += [mxu(w1), f32(s1), f32(b1),
                           mxu(sdw), f32(w2eff), f32(b2), mxu(rmat),
                           mxu(w3w), f32(s3w), f32(b3w),
                           mxu(apool01), mxu(emb)]
                flops += 2 * mo * mi * in_ch + 2 * mo * in_ch * c_tot
                cw = c_tot
            else:
                consts += [mxu(w1), f32(s1), f32(b1),
                           mxu(sdw), f32(w2eff), f32(b2), mxu(rmat),
                           mxu(w3), f32(s3), f32(b3)]
                cw = branch_out
            flops += (2 * mi * in_ch * mid + 2 * (9 * mo) * mi * mid
                      + 2 * mo * (9 * mo) * mid + 2 * mo * mid * cw)
            unit_flags.append(downsample)
            in_ch = out_ch
            h, w = ho, wo

    return dict(
        consts=consts, unit_flags=unit_flags, flops_per_image=flops,
        meta=dict(n_patch_rows=n_patch_rows, patch_cols=patch_cols,
                  m_out=h * w, c_out=in_ch, out_hw=(h, w)),
    )


# ------------------------------- forward pass --------------------------------

def _stem_patches(x_nhwc):
    """Host-side im2col for the 3x3/s2/p1 stem conv -> (N, Hc*Wc, 9*Cin)."""
    n, h, w, c = x_nhwc.shape
    ho = (h + 2 - 3) // 2 + 1
    wo = (w + 2 - 3) // 2 + 1
    xp = jnp.pad(x_nhwc, ((0, 0), (1, 1), (1, 1), (0, 0)))
    cols = []
    for kh in range(3):
        for kw in range(3):
            t = xp[:, kh:kh + 2 * ho:2, kw:kw + 2 * wo:2, :]
            cols.append(t.reshape(n, ho * wo, c))
    return jnp.concatenate(cols, axis=2)


def build_forward_fn(prep, batch):
    meta = prep["meta"]
    consts = prep["consts"]
    kernel = make_fwd_kernel(tuple(prep["unit_flags"]))
    npr, pcols = meta["n_patch_rows"], meta["patch_cols"]
    m_out, c_out = meta["m_out"], meta["c_out"]

    in_specs = [pl.BlockSpec((1, npr, pcols), lambda b: (b, 0, 0))]
    for c in consts:
        # Whole-array constant blocks; same block every grid step -> loaded once.
        in_specs.append(pl.BlockSpec(c.shape, lambda b, _nd=c.ndim: (0,) * _nd))

    const_bytes = sum(int(np.prod(c.shape)) * c.dtype.itemsize for c in consts)
    bytes_accessed = (batch * npr * pcols * 4 + const_bytes
                      + batch * m_out * c_out * 4)

    call = pl.pallas_call(
        kernel,
        grid=(batch,),
        in_specs=in_specs,
        out_specs=pl.BlockSpec((1, m_out, c_out), lambda b: (b, 0, 0)),
        out_shape=jax.ShapeDtypeStruct((batch, m_out, c_out), jnp.float32),
        compiler_params=pltpu.CompilerParams(
            dimension_semantics=("parallel",)),
        cost_estimate=pl.CostEstimate(
            flops=batch * prep["flops_per_image"], transcendentals=0,
            bytes_accessed=bytes_accessed),
    )

    def forward(x_nchw):
        n = x_nchw.shape[0]
        x = jnp.transpose(x_nchw, (0, 2, 3, 1)).astype(jnp.float32)  # NCHW -> NHWC
        patches = _stem_patches(x)                                   # (N, Hc*Wc, 9*Cin)
        y = call(patches, *consts)                                   # (N, Mo, C)
        ho, wo = meta["out_hw"]
        y = y.reshape(n, ho, wo, c_out)
        return jnp.transpose(y, (0, 3, 1, 2))                        # NHWC -> NCHW

    return forward


# ----------------------------------- main ------------------------------------

if __name__ == "__main__":
    key = jax.random.PRNGKey(0)
    kx, kp = jax.random.split(key)
    batch, in_hw = 2, (32, 32)
    x = jax.random.normal(kx, (batch, CFG["in_channels"], *in_hw), jnp.float32)

    raw = init_params(kp, CFG)
    prep = prepare_params(raw, CFG, in_hw)

    fwd = jax.jit(build_forward_fn(prep, batch))
    y = jax.block_until_ready(fwd(x))

    assert y.shape == (batch, CFG["stage_channels"][-1], 1, 1), y.shape
    assert bool(jnp.all(jnp.isfinite(y)))
    print("KERNEL_OK")
</pallas_src>

<mosaic_0001>
module attributes {stable_mosaic.version = 11 : i64} {
  func.func @kernel(%arg0: i32, %arg1: memref<1x256x27xf32, #tpu.memory_space<vmem>>, %arg2: memref<27x16xbf16, #tpu.memory_space<vmem>>, %arg3: memref<1x16xf32, #tpu.memory_space<vmem>>, %arg4: memref<1x16xf32, #tpu.memory_space<vmem>>, %arg5: memref<576x256xbf16, #tpu.memory_space<vmem>>, %arg6: memref<16x4xbf16, #tpu.memory_space<vmem>>, %arg7: memref<1x4xf32, #tpu.memory_space<vmem>>, %arg8: memref<1x4xf32, #tpu.memory_space<vmem>>, %arg9: memref<144x64xbf16, #tpu.memory_space<vmem>>, %arg10: memref<144x4xf32, #tpu.memory_space<vmem>>, %arg11: memref<1x4xf32, #tpu.memory_space<vmem>>, %arg12: memref<16x144xbf16, #tpu.memory_space<vmem>>, %arg13: memref<4x32xbf16, #tpu.memory_space<vmem>>, %arg14: memref<1x32xf32, #tpu.memory_space<vmem>>, %arg15: memref<1x32xf32, #tpu.memory_space<vmem>>, %arg16: memref<16x64xbf16, #tpu.memory_space<vmem>>, %arg17: memref<16x32xbf16, #tpu.memory_space<vmem>>, %arg18: memref<32x8xbf16, #tpu.memory_space<vmem>>, %arg19: memref<1x8xf32, #tpu.memory_space<vmem>>, %arg20: memref<1x8xf32, #tpu.memory_space<vmem>>, %arg21: memref<144x16xbf16, #tpu.memory_space<vmem>>, %arg22: memref<144x8xf32, #tpu.memory_space<vmem>>, %arg23: memref<1x8xf32, #tpu.memory_space<vmem>>, %arg24: memref<16x144xbf16, #tpu.memory_space<vmem>>, %arg25: memref<8x32xbf16, #tpu.memory_space<vmem>>, %arg26: memref<1x32xf32, #tpu.memory_space<vmem>>, %arg27: memref<1x32xf32, #tpu.memory_space<vmem>>, %arg28: memref<32x8xbf16, #tpu.memory_space<vmem>>, %arg29: memref<1x8xf32, #tpu.memory_space<vmem>>, %arg30: memref<1x8xf32, #tpu.memory_space<vmem>>, %arg31: memref<36x16xbf16, #tpu.memory_space<vmem>>, %arg32: memref<36x8xf32, #tpu.memory_space<vmem>>, %arg33: memref<1x8xf32, #tpu.memory_space<vmem>>, %arg34: memref<4x36xbf16, #tpu.memory_space<vmem>>, %arg35: memref<8x64xbf16, #tpu.memory_space<vmem>>, %arg36: memref<1x64xf32, #tpu.memory_space<vmem>>, %arg37: memref<1x64xf32, #tpu.memory_space<vmem>>, %arg38: memref<4x16xbf16, #tpu.memory_space<vmem>>, %arg39: memref<32x64xbf16, #tpu.memory_space<vmem>>, %arg40: memref<64x16xbf16, #tpu.memory_space<vmem>>, %arg41: memref<1x16xf32, #tpu.memory_space<vmem>>, %arg42: memref<1x16xf32, #tpu.memory_space<vmem>>, %arg43: memref<36x4xbf16, #tpu.memory_space<vmem>>, %arg44: memref<36x16xf32, #tpu.memory_space<vmem>>, %arg45: memref<1x16xf32, #tpu.memory_space<vmem>>, %arg46: memref<4x36xbf16, #tpu.memory_space<vmem>>, %arg47: memref<16x64xbf16, #tpu.memory_space<vmem>>, %arg48: memref<1x64xf32, #tpu.memory_space<vmem>>, %arg49: memref<1x64xf32, #tpu.memory_space<vmem>>, %arg50: memref<64x16xbf16, #tpu.memory_space<vmem>>, %arg51: memref<1x16xf32, #tpu.memory_space<vmem>>, %arg52: memref<1x16xf32, #tpu.memory_space<vmem>>, %arg53: memref<9x4xbf16, #tpu.memory_space<vmem>>, %arg54: memref<9x16xf32, #tpu.memory_space<vmem>>, %arg55: memref<1x16xf32, #tpu.memory_space<vmem>>, %arg56: memref<1x9xbf16, #tpu.memory_space<vmem>>, %arg57: memref<16x128xbf16, #tpu.memory_space<vmem>>, %arg58: memref<1x128xf32, #tpu.memory_space<vmem>>, %arg59: memref<1x128xf32, #tpu.memory_space<vmem>>, %arg60: memref<1x4xbf16, #tpu.memory_space<vmem>>, %arg61: memref<64x128xbf16, #tpu.memory_space<vmem>>, %arg62: memref<128x32xbf16, #tpu.memory_space<vmem>>, %arg63: memref<1x32xf32, #tpu.memory_space<vmem>>, %arg64: memref<1x32xf32, #tpu.memory_space<vmem>>, %arg65: memref<9x1xbf16, #tpu.memory_space<vmem>>, %arg66: memref<9x32xf32, #tpu.memory_space<vmem>>, %arg67: memref<1x32xf32, #tpu.memory_space<vmem>>, %arg68: memref<1x9xbf16, #tpu.memory_space<vmem>>, %arg69: memref<32x128xbf16, #tpu.memory_space<vmem>>, %arg70: memref<1x128xf32, #tpu.memory_space<vmem>>, %arg71: memref<1x128xf32, #tpu.memory_space<vmem>>, %arg72: memref<1x1x128xf32, #tpu.memory_space<vmem>>) attributes {dimension_semantics = [#tpu.dimension_semantics<parallel>], iteration_bounds = array<i64: 2>, scalar_prefetch = 0 : i64, scratch_operands = 0 : i64, tpu.core_type = #tpu.core_type<tc>, window_params = [{transform_indices = @transform_0, window_bounds = array<i64: 1, 256, 27>}, {pipeline_mode = #tpu.pipeline_mode<synchronous>, transform_indices = @transform_1, window_bounds = array<i64: 27, 16>}, {pipeline_mode = #tpu.pipeline_mode<synchronous>, transform_indices = @transform_2, window_bounds = array<i64: 1, 16>}, {pipeline_mode = #tpu.pipeline_mode<synchronous>, transform_indices = @transform_3, window_bounds = array<i64: 1, 16>}, {pipeline_mode = #tpu.pipeline_mode<synchronous>, transform_indices = @transform_4, window_bounds = array<i64: 576, 256>}, {pipeline_mode = #tpu.pipeline_mode<synchronous>, transform_indices = @transform_5, window_bounds = array<i64: 16, 4>}, {pipeline_mode = #tpu.pipeline_mode<synchronous>, transform_indices = @transform_6, window_bounds = array<i64: 1, 4>}, {pipeline_mode = #tpu.pipeline_mode<synchronous>, transform_indices = @transform_7, window_bounds = array<i64: 1, 4>}, {pipeline_mode = #tpu.pipeline_mode<synchronous>, transform_indices = @transform_8, window_bounds = array<i64: 144, 64>}, {pipeline_mode = #tpu.pipeline_mode<synchronous>, transform_indices = @transform_9, window_bounds = array<i64: 144, 4>}, {pipeline_mode = #tpu.pipeline_mode<synchronous>, transform_indices = @transform_10, window_bounds = array<i64: 1, 4>}, {pipeline_mode = #tpu.pipeline_mode<synchronous>, transform_indices = @transform_11, window_bounds = array<i64: 16, 144>}, {pipeline_mode = #tpu.pipeline_mode<synchronous>, transform_indices = @transform_12, window_bounds = array<i64: 4, 32>}, {pipeline_mode = #tpu.pipeline_mode<synchronous>, transform_indices = @transform_13, window_bounds = array<i64: 1, 32>}, {pipeline_mode = #tpu.pipeline_mode<synchronous>, transform_indices = @transform_14, window_bounds = array<i64: 1, 32>}, {pipeline_mode = #tpu.pipeline_mode<synchronous>, transform_indices = @transform_15, window_bounds = array<i64: 16, 64>}, {pipeline_mode = #tpu.pipeline_mode<synchronous>, transform_indices = @transform_16, window_bounds = array<i64: 16, 32>}, {pipeline_mode = #tpu.pipeline_mode<synchronous>, transform_indices = @transform_17, window_bounds = array<i64: 32, 8>}, {pipeline_mode = #tpu.pipeline_mode<synchronous>, transform_indices = @transform_18, window_bounds = array<i64: 1, 8>}, {pipeline_mode = #tpu.pipeline_mode<synchronous>, transform_indices = @transform_19, window_bounds = array<i64: 1, 8>}, {pipeline_mode = #tpu.pipeline_mode<synchronous>, transform_indices = @transform_20, window_bounds = array<i64: 144, 16>}, {pipeline_mode = #tpu.pipeline_mode<synchronous>, transform_indices = @transform_21, window_bounds = array<i64: 144, 8>}, {pipeline_mode = #tpu.pipeline_mode<synchronous>, transform_indices = @transform_22, window_bounds = array<i64: 1, 8>}, {pipeline_mode = #tpu.pipeline_mode<synchronous>, transform_indices = @transform_23, window_bounds = array<i64: 16, 144>}, {pipeline_mode = #tpu.pipeline_mode<synchronous>, transform_indices = @transform_24, window_bounds = array<i64: 8, 32>}, {pipeline_mode = #tpu.pipeline_mode<synchronous>, transform_indices = @transform_25, window_bounds = array<i64: 1, 32>}, {pipeline_mode = #tpu.pipeline_mode<synchronous>, transform_indices = @transform_26, window_bounds = array<i64: 1, 32>}, {pipeline_mode = #tpu.pipeline_mode<synchronous>, transform_indices = @transform_27, window_bounds = array<i64: 32, 8>}, {pipeline_mode = #tpu.pipeline_mode<synchronous>, transform_indices = @transform_28, window_bounds = array<i64: 1, 8>}, {pipeline_mode = #tpu.pipeline_mode<synchronous>, transform_indices = @transform_29, window_bounds = array<i64: 1, 8>}, {pipeline_mode = #tpu.pipeline_mode<synchronous>, transform_indices = @transform_30, window_bounds = array<i64: 36, 16>}, {pipeline_mode = #tpu.pipeline_mode<synchronous>, transform_indices = @transform_31, window_bounds = array<i64: 36, 8>}, {pipeline_mode = #tpu.pipeline_mode<synchronous>, transform_indices = @transform_32, window_bounds = array<i64: 1, 8>}, {pipeline_mode = #tpu.pipeline_mode<synchronous>, transform_indices = @transform_33, window_bounds = array<i64: 4, 36>}, {pipeline_mode = #tpu.pipeline_mode<synchronous>, transform_indices = @transform_34, window_bounds = array<i64: 8, 64>}, {pipeline_mode = #tpu.pipeline_mode<synchronous>, transform_indices = @transform_35, window_bounds = array<i64: 1, 64>}, {pipeline_mode = #tpu.pipeline_mode<synchronous>, transform_indices = @transform_36, window_bounds = array<i64: 1, 64>}, {pipeline_mode = #tpu.pipeline_mode<synchronous>, transform_indices = @transform_37, window_bounds = array<i64: 4, 16>}, {pipeline_mode = #tpu.pipeline_mode<synchronous>, transform_indices = @transform_38, window_bounds = array<i64: 32, 64>}, {pipeline_mode = #tpu.pipeline_mode<synchronous>, transform_indices = @transform_39, window_bounds = array<i64: 64, 16>}, {pipeline_mode = #tpu.pipeline_mode<synchronous>, transform_indices = @transform_40, window_bounds = array<i64: 1, 16>}, {pipeline_mode = #tpu.pipeline_mode<synchronous>, transform_indices = @transform_41, window_bounds = array<i64: 1, 16>}, {pipeline_mode = #tpu.pipeline_mode<synchronous>, transform_indices = @transform_42, window_bounds = array<i64: 36, 4>}, {pipeline_mode = #tpu.pipeline_mode<synchronous>, transform_indices = @transform_43, window_bounds = array<i64: 36, 16>}, {pipeline_mode = #tpu.pipeline_mode<synchronous>, transform_indices = @transform_44, window_bounds = array<i64: 1, 16>}, {pipeline_mode = #tpu.pipeline_mode<synchronous>, transform_indices = @transform_45, window_bounds = array<i64: 4, 36>}, {pipeline_mode = #tpu.pipeline_mode<synchronous>, transform_indices = @transform_46, window_bounds = array<i64: 16, 64>}, {pipeline_mode = #tpu.pipeline_mode<synchronous>, transform_indices = @transform_47, window_bounds = array<i64: 1, 64>}, {pipeline_mode = #tpu.pipeline_mode<synchronous>, transform_indices = @transform_48, window_bounds = array<i64: 1, 64>}, {pipeline_mode = #tpu.pipeline_mode<synchronous>, transform_indices = @transform_49, window_bounds = array<i64: 64, 16>}, {pipeline_mode = #tpu.pipeline_mode<synchronous>, transform_indices = @transform_50, window_bounds = array<i64: 1, 16>}, {pipeline_mode = #tpu.pipeline_mode<synchronous>, transform_indices = @transform_51, window_bounds = array<i64: 1, 16>}, {pipeline_mode = #tpu.pipeline_mode<synchronous>, transform_indices = @transform_52, window_bounds = array<i64: 9, 4>}, {pipeline_mode = #tpu.pipeline_mode<synchronous>, transform_indices = @transform_53, window_bounds = array<i64: 9, 16>}, {pipeline_mode = #tpu.pipeline_mode<synchronous>, transform_indices = @transform_54, window_bounds = array<i64: 1, 16>}, {pipeline_mode = #tpu.pipeline_mode<synchronous>, transform_indices = @transform_55, window_bounds = array<i64: 1, 9>}, {pipeline_mode = #tpu.pipeline_mode<synchronous>, transform_indices = @transform_56, window_bounds = array<i64: 16, 128>}, {pipeline_mode = #tpu.pipeline_mode<synchronous>, transform_indices = @transform_57, window_bounds = array<i64: 1, 128>}, {pipeline_mode = #tpu.pipeline_mode<synchronous>, transform_indices = @transform_58, window_bounds = array<i64: 1, 128>}, {pipeline_mode = #tpu.pipeline_mode<synchronous>, transform_indices = @transform_59, window_bounds = array<i64: 1, 4>}, {pipeline_mode = #tpu.pipeline_mode<synchronous>, transform_indices = @transform_60, window_bounds = array<i64: 64, 128>}, {pipeline_mode = #tpu.pipeline_mode<synchronous>, transform_indices = @transform_61, window_bounds = array<i64: 128, 32>}, {pipeline_mode = #tpu.pipeline_mode<synchronous>, transform_indices = @transform_62, window_bounds = array<i64: 1, 32>}, {pipeline_mode = #tpu.pipeline_mode<synchronous>, transform_indices = @transform_63, window_bounds = array<i64: 1, 32>}, {pipeline_mode = #tpu.pipeline_mode<synchronous>, transform_indices = @transform_64, window_bounds = array<i64: 9, 1>}, {pipeline_mode = #tpu.pipeline_mode<synchronous>, transform_indices = @transform_65, window_bounds = array<i64: 9, 32>}, {pipeline_mode = #tpu.pipeline_mode<synchronous>, transform_indices = @transform_66, window_bounds = array<i64: 1, 32>}, {pipeline_mode = #tpu.pipeline_mode<synchronous>, transform_indices = @transform_67, window_bounds = array<i64: 1, 9>}, {pipeline_mode = #tpu.pipeline_mode<synchronous>, transform_indices = @transform_68, window_bounds = array<i64: 32, 128>}, {pipeline_mode = #tpu.pipeline_mode<synchronous>, transform_indices = @transform_69, window_bounds = array<i64: 1, 128>}, {pipeline_mode = #tpu.pipeline_mode<synchronous>, transform_indices = @transform_70, window_bounds = array<i64: 1, 128>}, {transform_indices = @transform_71, window_bounds = array<i64: 1, 1, 128>}]} {
    %c0 = arith.constant 0 : index
    %c0_0 = arith.constant 0 : index
    %0 = vector.load %arg2[%c0, %c0_0] : memref<27x16xbf16, #tpu.memory_space<vmem>>, vector<27x16xbf16>
    %c0_1 = arith.constant 0 : index
    %c0_2 = arith.constant 0 : index
    %1 = vector.load %arg3[%c0_1, %c0_2] : memref<1x16xf32, #tpu.memory_space<vmem>>, vector<1x16xf32>
    %c0_3 = arith.constant 0 : index
    %c0_4 = arith.constant 0 : index
    %2 = vector.load %arg4[%c0_3, %c0_4] : memref<1x16xf32, #tpu.memory_space<vmem>>, vector<1x16xf32>
    %c0_5 = arith.constant 0 : index
    %c0_6 = arith.constant 0 : index
    %3 = vector.load %arg5[%c0_5, %c0_6] : memref<576x256xbf16, #tpu.memory_space<vmem>>, vector<576x256xbf16>
    %c0_7 = arith.constant 0 : index
    %c0_8 = arith.constant 0 : index
    %c0_9 = arith.constant 0 : index
    %4 = vector.load %arg1[%c0_7, %c0_8, %c0_9] : memref<1x256x27xf32, #tpu.memory_space<vmem>>, vector<1x256x27xf32>
    %5 = vector.shape_cast %4 : vector<1x256x27xf32> to vector<256x27xf32>
    %6 = arith.truncf %5 : vector<256x27xf32> to vector<256x27xbf16>
    %cst = arith.constant dense<0.000000e+00> : vector<256x16xf32>
    %7 = tpu.matmul %6, %0, %cst {dimension_numbers = #tpu.dot_dimension_numbers<[1], [0], [0], [1], [0, 0, 1, 1], [], []>} : vector<256x27xbf16>, vector<27x16xbf16>, vector<256x16xf32> -> vector<256x16xf32>
    %8 = vector.broadcast %1 : vector<1x16xf32> to vector<256x16xf32>
    %9 = arith.mulf %7, %8 : vector<256x16xf32>
    %10 = vector.broadcast %2 : vector<1x16xf32> to vector<256x16xf32>
    %11 = arith.addf %9, %10 : vector<256x16xf32>
    %cst_10 = arith.constant 0.000000e+00 : f32
    %12 = vector.broadcast %cst_10 : f32 to vector<256x16xf32>
    %13 = arith.maximumf %11, %12 : vector<256x16xf32>
    %14 = arith.truncf %13 : vector<256x16xf32> to vector<256x16xbf16>
    %cst_11 = arith.constant dense<0.000000e+00> : vector<576x16xf32>
    %15 = tpu.matmul %3, %14, %cst_11 {dimension_numbers = #tpu.dot_dimension_numbers<[1], [0], [0], [1], [0, 0, 1, 1], [], []>} : vector<576x256xbf16>, vector<256x16xbf16>, vector<576x16xf32> -> vector<576x16xf32>
    %16 = vector.extract_strided_slice %15 {offsets = [0, 0], sizes = [64, 16], strides = [1, 1]} : vector<576x16xf32> to vector<64x16xf32>
    %17 = vector.extract_strided_slice %15 {offsets = [64, 0], sizes = [64, 16], strides = [1, 1]} : vector<576x16xf32> to vector<64x16xf32>
    %18 = vector.extract_strided_slice %15 {offsets = [128, 0], sizes = [64, 16], strides = [1, 1]} : vector<576x16xf32> to vector<64x16xf32>
    %19 = vector.extract_strided_slice %15 {offsets = [192, 0], sizes = [64, 16], strides = [1, 1]} : vector<576x16xf32> to vector<64x16xf32>
    %20 = vector.extract_strided_slice %15 {offsets = [256, 0], sizes = [64, 16], strides = [1, 1]} : vector<576x16xf32> to vector<64x16xf32>
    %21 = vector.extract_strided_slice %15 {offsets = [320, 0], sizes = [64, 16], strides = [1, 1]} : vector<576x16xf32> to vector<64x16xf32>
    %22 = vector.extract_strided_slice %15 {offsets = [384, 0], sizes = [64, 16], strides = [1, 1]} : vector<576x16xf32> to vector<64x16xf32>
    %23 = vector.extract_strided_slice %15 {offsets = [448, 0], sizes = [64, 16], strides = [1, 1]} : vector<576x16xf32> to vector<64x16xf32>
    %24 = vector.extract_strided_slice %15 {offsets = [512, 0], sizes = [64, 16], strides = [1, 1]} : vector<576x16xf32> to vector<64x16xf32>
    %25 = arith.maximumf %16, %17 : vector<64x16xf32>
    %26 = arith.maximumf %18, %19 : vector<64x16xf32>
    %27 = arith.maximumf %20, %21 : vector<64x16xf32>
    %28 = arith.maximumf %22, %23 : vector<64x16xf32>
    %29 = arith.maximumf %25, %26 : vector<64x16xf32>
    %30 = arith.maximumf %27, %28 : vector<64x16xf32>
    %31 = arith.maximumf %29, %30 : vector<64x16xf32>
    %32 = arith.maximumf %31, %24 : vector<64x16xf32>
    %c0_12 = arith.constant 0 : index
    %c0_13 = arith.constant 0 : index
    %33 = vector.load %arg6[%c0_12, %c0_13] : memref<16x4xbf16, #tpu.memory_space<vmem>>, vector<16x4xbf16>
    %c0_14 = arith.constant 0 : index
    %c0_15 = arith.constant 0 : index
    %34 = vector.load %arg7[%c0_14, %c0_15] : memref<1x4xf32, #tpu.memory_space<vmem>>, vector<1x4xf32>
    %c0_16 = arith.constant 0 : index
    %c0_17 = arith.constant 0 : index
    %35 = vector.load %arg8[%c0_16, %c0_17] : memref<1x4xf32, #tpu.memory_space<vmem>>, vector<1x4xf32>
    %c0_18 = arith.constant 0 : index
    %c0_19 = arith.constant 0 : index
    %36 = vector.load %arg9[%c0_18, %c0_19] : memref<144x64xbf16, #tpu.memory_space<vmem>>, vector<144x64xbf16>
    %c0_20 = arith.constant 0 : index
    %c0_21 = arith.constant 0 : index
    %37 = vector.load %arg10[%c0_20, %c0_21] : memref<144x4xf32, #tpu.memory_space<vmem>>, vector<144x4xf32>
    %c0_22 = arith.constant 0 : index
    %c0_23 = arith.constant 0 : index
    %38 = vector.load %arg11[%c0_22, %c0_23] : memref<1x4xf32, #tpu.memory_space<vmem>>, vector<1x4xf32>
    %c0_24 = arith.constant 0 : index
    %c0_25 = arith.constant 0 : index
    %39 = vector.load %arg12[%c0_24, %c0_25] : memref<16x144xbf16, #tpu.memory_space<vmem>>, vector<16x144xbf16>
    %c0_26 = arith.constant 0 : index
    %c0_27 = arith.constant 0 : index
    %40 = vector.load %arg13[%c0_26, %c0_27] : memref<4x32xbf16, #tpu.memory_space<vmem>>, vector<4x32xbf16>
    %c0_28 = arith.constant 0 : index
    %c0_29 = arith.constant 0 : index
    %41 = vector.load %arg14[%c0_28, %c0_29] : memref<1x32xf32, #tpu.memory_space<vmem>>, vector<1x32xf32>
    %c0_30 = arith.constant 0 : index
    %c0_31 = arith.constant 0 : index
    %42 = vector.load %arg15[%c0_30, %c0_31] : memref<1x32xf32, #tpu.memory_space<vmem>>, vector<1x32xf32>
    %c0_32 = arith.constant 0 : index
    %c0_33 = arith.constant 0 : index
    %43 = vector.load %arg16[%c0_32, %c0_33] : memref<16x64xbf16, #tpu.memory_space<vmem>>, vector<16x64xbf16>
    %c0_34 = arith.constant 0 : index
    %c0_35 = arith.constant 0 : index
    %44 = vector.load %arg17[%c0_34, %c0_35] : memref<16x32xbf16, #tpu.memory_space<vmem>>, vector<16x32xbf16>
    %45 = arith.truncf %32 : vector<64x16xf32> to vector<64x16xbf16>
    %cst_36 = arith.constant dense<0.000000e+00> : vector<64x4xf32>
    %46 = tpu.matmul %45, %33, %cst_36 {dimension_numbers = #tpu.dot_dimension_numbers<[1], [0], [0], [1], [0, 0, 1, 1], [], []>} : vector<64x16xbf16>, vector<16x4xbf16>, vector<64x4xf32> -> vector<64x4xf32>
    %47 = vector.broadcast %34 : vector<1x4xf32> to vector<64x4xf32>
    %48 = arith.mulf %46, %47 : vector<64x4xf32>
    %49 = vector.broadcast %35 : vector<1x4xf32> to vector<64x4xf32>
    %50 = arith.addf %48, %49 : vector<64x4xf32>
    %cst_37 = arith.constant 0.000000e+00 : f32
    %51 = vector.broadcast %cst_37 : f32 to vector<64x4xf32>
    %52 = arith.maximumf %50, %51 : vector<64x4xf32>
    %53 = arith.truncf %52 : vector<64x4xf32> to vector<64x4xbf16>
    %cst_38 = arith.constant dense<0.000000e+00> : vector<144x4xf32>
    %54 = tpu.matmul %36, %53, %cst_38 {dimension_numbers = #tpu.dot_dimension_numbers<[1], [0], [0], [1], [0, 0, 1, 1], [], []>} : vector<144x64xbf16>, vector<64x4xbf16>, vector<144x4xf32> -> vector<144x4xf32>
    %55 = arith.mulf %54, %37 : vector<144x4xf32>
    %56 = arith.truncf %55 : vector<144x4xf32> to vector<144x4xbf16>
    %cst_39 = arith.constant dense<0.000000e+00> : vector<16x4xf32>
    %57 = tpu.matmul %39, %56, %cst_39 {dimension_numbers = #tpu.dot_dimension_numbers<[1], [0], [0], [1], [0, 0, 1, 1], [], []>} : vector<16x144xbf16>, vector<144x4xbf16>, vector<16x4xf32> -> vector<16x4xf32>
    %58 = vector.broadcast %38 : vector<1x4xf32> to vector<16x4xf32>
    %59 = arith.addf %57, %58 : vector<16x4xf32>
    %60 = arith.truncf %59 : vector<16x4xf32> to vector<16x4xbf16>
    %cst_40 = arith.constant dense<0.000000e+00> : vector<16x32xf32>
    %61 = tpu.matmul %60, %40, %cst_40 {dimension_numbers = #tpu.dot_dimension_numbers<[1], [0], [0], [1], [0, 0, 1, 1], [], []>} : vector<16x4xbf16>, vector<4x32xbf16>, vector<16x32xf32> -> vector<16x32xf32>
    %62 = vector.broadcast %41 : vector<1x32xf32> to vector<16x32xf32>
    %63 = arith.mulf %61, %62 : vector<16x32xf32>
    %64 = vector.broadcast %42 : vector<1x32xf32> to vector<16x32xf32>
    %65 = arith.addf %63, %64 : vector<16x32xf32>
    %cst_41 = arith.constant dense<0.000000e+00> : vector<16x16xf32>
    %66 = tpu.matmul %43, %45, %cst_41 {dimension_numbers = #tpu.dot_dimension_numbers<[1], [0], [0], [1], [0, 0, 1, 1], [], []>} : vector<16x64xbf16>, vector<64x16xbf16>, vector<16x16xf32> -> vector<16x16xf32>
    %cst_42 = arith.constant 0.111111112 : f32
    %67 = vector.broadcast %cst_42 : f32 to vector<16x16xf32>
    %68 = arith.mulf %66, %67 : vector<16x16xf32>
    %69 = arith.truncf %68 : vector<16x16xf32> to vector<16x16xbf16>
    %cst_43 = arith.constant dense<0.000000e+00> : vector<16x32xf32>
    %70 = tpu.matmul %69, %44, %cst_43 {dimension_numbers = #tpu.dot_dimension_numbers<[1], [0], [0], [1], [0, 0, 1, 1], [], []>} : vector<16x16xbf16>, vector<16x32xbf16>, vector<16x32xf32> -> vector<16x32xf32>
    %71 = arith.addf %65, %70 : vector<16x32xf32>
    %cst_44 = arith.constant 0.000000e+00 : f32
    %72 = vector.broadcast %cst_44 : f32 to vector<16x32xf32>
    %73 = arith.maximumf %71, %72 : vector<16x32xf32>
    %c0_45 = arith.constant 0 : index
    %c0_46 = arith.constant 0 : index
    %74 = vector.load %arg18[%c0_45, %c0_46] : memref<32x8xbf16, #tpu.memory_space<vmem>>, vector<32x8xbf16>
    %c0_47 = arith.constant 0 : index
    %c0_48 = arith.constant 0 : index
    %75 = vector.load %arg19[%c0_47, %c0_48] : memref<1x8xf32, #tpu.memory_space<vmem>>, vector<1x8xf32>
    %c0_49 = arith.constant 0 : index
    %c0_50 = arith.constant 0 : index
    %76 = vector.load %arg20[%c0_49, %c0_50] : memref<1x8xf32, #tpu.memory_space<vmem>>, vector<1x8xf32>
    %c0_51 = arith.constant 0 : index
    %c0_52 = arith.constant 0 : index
    %77 = vector.load %arg21[%c0_51, %c0_52] : memref<144x16xbf16, #tpu.memory_space<vmem>>, vector<144x16xbf16>
    %c0_53 = arith.constant 0 : index
    %c0_54 = arith.constant 0 : index
    %78 = vector.load %arg22[%c0_53, %c0_54] : memref<144x8xf32, #tpu.memory_space<vmem>>, vector<144x8xf32>
    %c0_55 = arith.constant 0 : index
    %c0_56 = arith.constant 0 : index
    %79 = vector.load %arg23[%c0_55, %c0_56] : memref<1x8xf32, #tpu.memory_space<vmem>>, vector<1x8xf32>
    %c0_57 = arith.constant 0 : index
    %c0_58 = arith.constant 0 : index
    %80 = vector.load %arg24[%c0_57, %c0_58] : memref<16x144xbf16, #tpu.memory_space<vmem>>, vector<16x144xbf16>
    %c0_59 = arith.constant 0 : index
    %c0_60 = arith.constant 0 : index
    %81 = vector.load %arg25[%c0_59, %c0_60] : memref<8x32xbf16, #tpu.memory_space<vmem>>, vector<8x32xbf16>
    %c0_61 = arith.constant 0 : index
    %c0_62 = arith.constant 0 : index
    %82 = vector.load %arg26[%c0_61, %c0_62] : memref<1x32xf32, #tpu.memory_space<vmem>>, vector<1x32xf32>
    %c0_63 = arith.constant 0 : index
    %c0_64 = arith.constant 0 : index
    %83 = vector.load %arg27[%c0_63, %c0_64] : memref<1x32xf32, #tpu.memory_space<vmem>>, vector<1x32xf32>
    %84 = arith.truncf %73 : vector<16x32xf32> to vector<16x32xbf16>
    %cst_65 = arith.constant dense<0.000000e+00> : vector<16x8xf32>
    %85 = tpu.matmul %84, %74, %cst_65 {dimension_numbers = #tpu.dot_dimension_numbers<[1], [0], [0], [1], [0, 0, 1, 1], [], []>} : vector<16x32xbf16>, vector<32x8xbf16>, vector<16x8xf32> -> vector<16x8xf32>
    %86 = vector.broadcast %75 : vector<1x8xf32> to vector<16x8xf32>
    %87 = arith.mulf %85, %86 : vector<16x8xf32>
    %88 = vector.broadcast %76 : vector<1x8xf32> to vector<16x8xf32>
    %89 = arith.addf %87, %88 : vector<16x8xf32>
    %cst_66 = arith.constant 0.000000e+00 : f32
    %90 = vector.broadcast %cst_66 : f32 to vector<16x8xf32>
    %91 = arith.maximumf %89, %90 : vector<16x8xf32>
    %92 = arith.truncf %91 : vector<16x8xf32> to vector<16x8xbf16>
    %cst_67 = arith.constant dense<0.000000e+00> : vector<144x8xf32>
    %93 = tpu.matmul %77, %92, %cst_67 {dimension_numbers = #tpu.dot_dimension_numbers<[1], [0], [0], [1], [0, 0, 1, 1], [], []>} : vector<144x16xbf16>, vector<16x8xbf16>, vector<144x8xf32> -> vector<144x8xf32>
    %94 = arith.mulf %93, %78 : vector<144x8xf32>
    %95 = arith.truncf %94 : vector<144x8xf32> to vector<144x8xbf16>
    %cst_68 = arith.constant dense<0.000000e+00> : vector<16x8xf32>
    %96 = tpu.matmul %80, %95, %cst_68 {dimension_numbers = #tpu.dot_dimension_numbers<[1], [0], [0], [1], [0, 0, 1, 1], [], []>} : vector<16x144xbf16>, vector<144x8xbf16>, vector<16x8xf32> -> vector<16x8xf32>
    %97 = vector.broadcast %79 : vector<1x8xf32> to vector<16x8xf32>
    %98 = arith.addf %96, %97 : vector<16x8xf32>
    %99 = arith.truncf %98 : vector<16x8xf32> to vector<16x8xbf16>
    %cst_69 = arith.constant dense<0.000000e+00> : vector<16x32xf32>
    %100 = tpu.matmul %99, %81, %cst_69 {dimension_numbers = #tpu.dot_dimension_numbers<[1], [0], [0], [1], [0, 0, 1, 1], [], []>} : vector<16x8xbf16>, vector<8x32xbf16>, vector<16x32xf32> -> vector<16x32xf32>
    %101 = vector.broadcast %82 : vector<1x32xf32> to vector<16x32xf32>
    %102 = arith.mulf %100, %101 : vector<16x32xf32>
    %103 = vector.broadcast %83 : vector<1x32xf32> to vector<16x32xf32>
    %104 = arith.addf %102, %103 : vector<16x32xf32>
    %105 = arith.addf %104, %73 : vector<16x32xf32>
    %cst_70 = arith.constant 0.000000e+00 : f32
    %106 = vector.broadcast %cst_70 : f32 to vector<16x32xf32>
    %107 = arith.maximumf %105, %106 : vector<16x32xf32>
    %c0_71 = arith.constant 0 : index
    %c0_72 = arith.constant 0 : index
    %108 = vector.load %arg28[%c0_71, %c0_72] : memref<32x8xbf16, #tpu.memory_space<vmem>>, vector<32x8xbf16>
    %c0_73 = arith.constant 0 : index
    %c0_74 = arith.constant 0 : index
    %109 = vector.load %arg29[%c0_73, %c0_74] : memref<1x8xf32, #tpu.memory_space<vmem>>, vector<1x8xf32>
    %c0_75 = arith.constant 0 : index
    %c0_76 = arith.constant 0 : index
    %110 = vector.load %arg30[%c0_75, %c0_76] : memref<1x8xf32, #tpu.memory_space<vmem>>, vector<1x8xf32>
    %c0_77 = arith.constant 0 : index
    %c0_78 = arith.constant 0 : index
    %111 = vector.load %arg31[%c0_77, %c0_78] : memref<36x16xbf16, #tpu.memory_space<vmem>>, vector<36x16xbf16>
    %c0_79 = arith.constant 0 : index
    %c0_80 = arith.constant 0 : index
    %112 = vector.load %arg32[%c0_79, %c0_80] : memref<36x8xf32, #tpu.memory_space<vmem>>, vector<36x8xf32>
    %c0_81 = arith.constant 0 : index
    %c0_82 = arith.constant 0 : index
    %113 = vector.load %arg33[%c0_81, %c0_82] : memref<1x8xf32, #tpu.memory_space<vmem>>, vector<1x8xf32>
    %c0_83 = arith.constant 0 : index
    %c0_84 = arith.constant 0 : index
    %114 = vector.load %arg34[%c0_83, %c0_84] : memref<4x36xbf16, #tpu.memory_space<vmem>>, vector<4x36xbf16>
    %c0_85 = arith.constant 0 : index
    %c0_86 = arith.constant 0 : index
    %115 = vector.load %arg35[%c0_85, %c0_86] : memref<8x64xbf16, #tpu.memory_space<vmem>>, vector<8x64xbf16>
    %c0_87 = arith.constant 0 : index
    %c0_88 = arith.constant 0 : index
    %116 = vector.load %arg36[%c0_87, %c0_88] : memref<1x64xf32, #tpu.memory_space<vmem>>, vector<1x64xf32>
    %c0_89 = arith.constant 0 : index
    %c0_90 = arith.constant 0 : index
    %117 = vector.load %arg37[%c0_89, %c0_90] : memref<1x64xf32, #tpu.memory_space<vmem>>, vector<1x64xf32>
    %c0_91 = arith.constant 0 : index
    %c0_92 = arith.constant 0 : index
    %118 = vector.load %arg38[%c0_91, %c0_92] : memref<4x16xbf16, #tpu.memory_space<vmem>>, vector<4x16xbf16>
    %c0_93 = arith.constant 0 : index
    %c0_94 = arith.constant 0 : index
    %119 = vector.load %arg39[%c0_93, %c0_94] : memref<32x64xbf16, #tpu.memory_space<vmem>>, vector<32x64xbf16>
    %120 = arith.truncf %107 : vector<16x32xf32> to vector<16x32xbf16>
    %cst_95 = arith.constant dense<0.000000e+00> : vector<16x8xf32>
    %121 = tpu.matmul %120, %108, %cst_95 {dimension_numbers = #tpu.dot_dimension_numbers<[1], [0], [0], [1], [0, 0, 1, 1], [], []>} : vector<16x32xbf16>, vector<32x8xbf16>, vector<16x8xf32> -> vector<16x8xf32>
    %122 = vector.broadcast %109 : vector<1x8xf32> to vector<16x8xf32>
    %123 = arith.mulf %121, %122 : vector<16x8xf32>
    %124 = vector.broadcast %110 : vector<1x8xf32> to vector<16x8xf32>
    %125 = arith.addf %123, %124 : vector<16x8xf32>
    %cst_96 = arith.constant 0.000000e+00 : f32
    %126 = vector.broadcast %cst_96 : f32 to vector<16x8xf32>
    %127 = arith.maximumf %125, %126 : vector<16x8xf32>
    %128 = arith.truncf %127 : vector<16x8xf32> to vector<16x8xbf16>
    %cst_97 = arith.constant dense<0.000000e+00> : vector<36x8xf32>
    %129 = tpu.matmul %111, %128, %cst_97 {dimension_numbers = #tpu.dot_dimension_numbers<[1], [0], [0], [1], [0, 0, 1, 1], [], []>} : vector<36x16xbf16>, vector<16x8xbf16>, vector<36x8xf32> -> vector<36x8xf32>
    %130 = arith.mulf %129, %112 : vector<36x8xf32>
    %131 = arith.truncf %130 : vector<36x8xf32> to vector<36x8xbf16>
    %cst_98 = arith.constant dense<0.000000e+00> : vector<4x8xf32>
    %132 = tpu.matmul %114, %131, %cst_98 {dimension_numbers = #tpu.dot_dimension_numbers<[1], [0], [0], [1], [0, 0, 1, 1], [], []>} : vector<4x36xbf16>, vector<36x8xbf16>, vector<4x8xf32> -> vector<4x8xf32>
    %133 = vector.broadcast %113 : vector<1x8xf32> to vector<4x8xf32>
    %134 = arith.addf %132, %133 : vector<4x8xf32>
    %135 = arith.truncf %134 : vector<4x8xf32> to vector<4x8xbf16>
    %cst_99 = arith.constant dense<0.000000e+00> : vector<4x64xf32>
    %136 = tpu.matmul %135, %115, %cst_99 {dimension_numbers = #tpu.dot_dimension_numbers<[1], [0], [0], [1], [0, 0, 1, 1], [], []>} : vector<4x8xbf16>, vector<8x64xbf16>, vector<4x64xf32> -> vector<4x64xf32>
    %137 = vector.broadcast %116 : vector<1x64xf32> to vector<4x64xf32>
    %138 = arith.mulf %136, %137 : vector<4x64xf32>
    %139 = vector.broadcast %117 : vector<1x64xf32> to vector<4x64xf32>
    %140 = arith.addf %138, %139 : vector<4x64xf32>
    %cst_100 = arith.constant dense<0.000000e+00> : vector<4x32xf32>
    %141 = tpu.matmul %118, %120, %cst_100 {dimension_numbers = #tpu.dot_dimension_numbers<[1], [0], [0], [1], [0, 0, 1, 1], [], []>} : vector<4x16xbf16>, vector<16x32xbf16>, vector<4x32xf32> -> vector<4x32xf32>
    %cst_101 = arith.constant 0.111111112 : f32
    %142 = vector.broadcast %cst_101 : f32 to vector<4x32xf32>
    %143 = arith.mulf %141, %142 : vector<4x32xf32>
    %144 = arith.truncf %143 : vector<4x32xf32> to vector<4x32xbf16>
    %cst_102 = arith.constant dense<0.000000e+00> : vector<4x64xf32>
    %145 = tpu.matmul %144, %119, %cst_102 {dimension_numbers = #tpu.dot_dimension_numbers<[1], [0], [0], [1], [0, 0, 1, 1], [], []>} : vector<4x32xbf16>, vector<32x64xbf16>, vector<4x64xf32> -> vector<4x64xf32>
    %146 = arith.addf %140, %145 : vector<4x64xf32>
    %cst_103 = arith.constant 0.000000e+00 : f32
    %147 = vector.broadcast %cst_103 : f32 to vector<4x64xf32>
    %148 = arith.maximumf %146, %147 : vector<4x64xf32>
    %c0_104 = arith.constant 0 : index
    %c0_105 = arith.constant 0 : index
    %149 = vector.load %arg40[%c0_104, %c0_105] : memref<64x16xbf16, #tpu.memory_space<vmem>>, vector<64x16xbf16>
    %c0_106 = arith.constant 0 : index
    %c0_107 = arith.constant 0 : index
    %150 = vector.load %arg41[%c0_106, %c0_107] : memref<1x16xf32, #tpu.memory_space<vmem>>, vector<1x16xf32>
    %c0_108 = arith.constant 0 : index
    %c0_109 = arith.constant 0 : index
    %151 = vector.load %arg42[%c0_108, %c0_109] : memref<1x16xf32, #tpu.memory_space<vmem>>, vector<1x16xf32>
    %c0_110 = arith.constant 0 : index
    %c0_111 = arith.constant 0 : index
    %152 = vector.load %arg43[%c0_110, %c0_111] : memref<36x4xbf16, #tpu.memory_space<vmem>>, vector<36x4xbf16>
    %c0_112 = arith.constant 0 : index
    %c0_113 = arith.constant 0 : index
    %153 = vector.load %arg44[%c0_112, %c0_113] : memref<36x16xf32, #tpu.memory_space<vmem>>, vector<36x16xf32>
    %c0_114 = arith.constant 0 : index
    %c0_115 = arith.constant 0 : index
    %154 = vector.load %arg45[%c0_114, %c0_115] : memref<1x16xf32, #tpu.memory_space<vmem>>, vector<1x16xf32>
    %c0_116 = arith.constant 0 : index
    %c0_117 = arith.constant 0 : index
    %155 = vector.load %arg46[%c0_116, %c0_117] : memref<4x36xbf16, #tpu.memory_space<vmem>>, vector<4x36xbf16>
    %c0_118 = arith.constant 0 : index
    %c0_119 = arith.constant 0 : index
    %156 = vector.load %arg47[%c0_118, %c0_119] : memref<16x64xbf16, #tpu.memory_space<vmem>>, vector<16x64xbf16>
    %c0_120 = arith.constant 0 : index
    %c0_121 = arith.constant 0 : index
    %157 = vector.load %arg48[%c0_120, %c0_121] : memref<1x64xf32, #tpu.memory_space<vmem>>, vector<1x64xf32>
    %c0_122 = arith.constant 0 : index
    %c0_123 = arith.constant 0 : index
    %158 = vector.load %arg49[%c0_122, %c0_123] : memref<1x64xf32, #tpu.memory_space<vmem>>, vector<1x64xf32>
    %159 = arith.truncf %148 : vector<4x64xf32> to vector<4x64xbf16>
    %cst_124 = arith.constant dense<0.000000e+00> : vector<4x16xf32>
    %160 = tpu.matmul %159, %149, %cst_124 {dimension_numbers = #tpu.dot_dimension_numbers<[1], [0], [0], [1], [0, 0, 1, 1], [], []>} : vector<4x64xbf16>, vector<64x16xbf16>, vector<4x16xf32> -> vector<4x16xf32>
    %161 = vector.broadcast %150 : vector<1x16xf32> to vector<4x16xf32>
    %162 = arith.mulf %160, %161 : vector<4x16xf32>
    %163 = vector.broadcast %151 : vector<1x16xf32> to vector<4x16xf32>
    %164 = arith.addf %162, %163 : vector<4x16xf32>
    %cst_125 = arith.constant 0.000000e+00 : f32
    %165 = vector.broadcast %cst_125 : f32 to vector<4x16xf32>
    %166 = arith.maximumf %164, %165 : vector<4x16xf32>
    %167 = arith.truncf %166 : vector<4x16xf32> to vector<4x16xbf16>
    %cst_126 = arith.constant dense<0.000000e+00> : vector<36x16xf32>
    %168 = tpu.matmul %152, %167, %cst_126 {dimension_numbers = #tpu.dot_dimension_numbers<[1], [0], [0], [1], [0, 0, 1, 1], [], []>} : vector<36x4xbf16>, vector<4x16xbf16>, vector<36x16xf32> -> vector<36x16xf32>
    %169 = arith.mulf %168, %153 : vector<36x16xf32>
    %170 = arith.truncf %169 : vector<36x16xf32> to vector<36x16xbf16>
    %cst_127 = arith.constant dense<0.000000e+00> : vector<4x16xf32>
    %171 = tpu.matmul %155, %170, %cst_127 {dimension_numbers = #tpu.dot_dimension_numbers<[1], [0], [0], [1], [0, 0, 1, 1], [], []>} : vector<4x36xbf16>, vector<36x16xbf16>, vector<4x16xf32> -> vector<4x16xf32>
    %172 = vector.broadcast %154 : vector<1x16xf32> to vector<4x16xf32>
    %173 = arith.addf %171, %172 : vector<4x16xf32>
    %174 = arith.truncf %173 : vector<4x16xf32> to vector<4x16xbf16>
    %cst_128 = arith.constant dense<0.000000e+00> : vector<4x64xf32>
    %175 = tpu.matmul %174, %156, %cst_128 {dimension_numbers = #tpu.dot_dimension_numbers<[1], [0], [0], [1], [0, 0, 1, 1], [], []>} : vector<4x16xbf16>, vector<16x64xbf16>, vector<4x64xf32> -> vector<4x64xf32>
    %176 = vector.broadcast %157 : vector<1x64xf32> to vector<4x64xf32>
    %177 = arith.mulf %175, %176 : vector<4x64xf32>
    %178 = vector.broadcast %158 : vector<1x64xf32> to vector<4x64xf32>
    %179 = arith.addf %177, %178 : vector<4x64xf32>
    %180 = arith.addf %179, %148 : vector<4x64xf32>
    %cst_129 = arith.constant 0.000000e+00 : f32
    %181 = vector.broadcast %cst_129 : f32 to vector<4x64xf32>
    %182 = arith.maximumf %180, %181 : vector<4x64xf32>
    %c0_130 = arith.constant 0 : index
    %c0_131 = arith.constant 0 : index
    %183 = vector.load %arg50[%c0_130, %c0_131] : memref<64x16xbf16, #tpu.memory_space<vmem>>, vector<64x16xbf16>
    %c0_132 = arith.constant 0 : index
    %c0_133 = arith.constant 0 : index
    %184 = vector.load %arg51[%c0_132, %c0_133] : memref<1x16xf32, #tpu.memory_space<vmem>>, vector<1x16xf32>
    %c0_134 = arith.constant 0 : index
    %c0_135 = arith.constant 0 : index
    %185 = vector.load %arg52[%c0_134, %c0_135] : memref<1x16xf32, #tpu.memory_space<vmem>>, vector<1x16xf32>
    %c0_136 = arith.constant 0 : index
    %c0_137 = arith.constant 0 : index
    %186 = vector.load %arg53[%c0_136, %c0_137] : memref<9x4xbf16, #tpu.memory_space<vmem>>, vector<9x4xbf16>
    %c0_138 = arith.constant 0 : index
    %c0_139 = arith.constant 0 : index
    %187 = vector.load %arg54[%c0_138, %c0_139] : memref<9x16xf32, #tpu.memory_space<vmem>>, vector<9x16xf32>
    %c0_140 = arith.constant 0 : index
    %c0_141 = arith.constant 0 : index
    %188 = vector.load %arg55[%c0_140, %c0_141] : memref<1x16xf32, #tpu.memory_space<vmem>>, vector<1x16xf32>
    %c0_142 = arith.constant 0 : index
    %c0_143 = arith.constant 0 : index
    %189 = vector.load %arg56[%c0_142, %c0_143] : memref<1x9xbf16, #tpu.memory_space<vmem>>, vector<1x9xbf16>
    %c0_144 = arith.constant 0 : index
    %c0_145 = arith.constant 0 : index
    %190 = vector.load %arg57[%c0_144, %c0_145] : memref<16x128xbf16, #tpu.memory_space<vmem>>, vector<16x128xbf16>
    %c0_146 = arith.constant 0 : index
    %c0_147 = arith.constant 0 : index
    %191 = vector.load %arg58[%c0_146, %c0_147] : memref<1x128xf32, #tpu.memory_space<vmem>>, vector<1x128xf32>
    %c0_148 = arith.constant 0 : index
    %c0_149 = arith.constant 0 : index
    %192 = vector.load %arg59[%c0_148, %c0_149] : memref<1x128xf32, #tpu.memory_space<vmem>>, vector<1x128xf32>
    %c0_150 = arith.constant 0 : index
    %c0_151 = arith.constant 0 : index
    %193 = vector.load %arg60[%c0_150, %c0_151] : memref<1x4xbf16, #tpu.memory_space<vmem>>, vector<1x4xbf16>
    %c0_152 = arith.constant 0 : index
    %c0_153 = arith.constant 0 : index
    %194 = vector.load %arg61[%c0_152, %c0_153] : memref<64x128xbf16, #tpu.memory_space<vmem>>, vector<64x128xbf16>
    %195 = arith.truncf %182 : vector<4x64xf32> to vector<4x64xbf16>
    %cst_154 = arith.constant dense<0.000000e+00> : vector<4x16xf32>
    %196 = tpu.matmul %195, %183, %cst_154 {dimension_numbers = #tpu.dot_dimension_numbers<[1], [0], [0], [1], [0, 0, 1, 1], [], []>} : vector<4x64xbf16>, vector<64x16xbf16>, vector<4x16xf32> -> vector<4x16xf32>
    %197 = vector.broadcast %184 : vector<1x16xf32> to vector<4x16xf32>
    %198 = arith.mulf %196, %197 : vector<4x16xf32>
    %199 = vector.broadcast %185 : vector<1x16xf32> to vector<4x16xf32>
    %200 = arith.addf %198, %199 : vector<4x16xf32>
    %cst_155 = arith.constant 0.000000e+00 : f32
    %201 = vector.broadcast %cst_155 : f32 to vector<4x16xf32>
    %202 = arith.maximumf %200, %201 : vector<4x16xf32>
    %203 = arith.truncf %202 : vector<4x16xf32> to vector<4x16xbf16>
    %cst_156 = arith.constant dense<0.000000e+00> : vector<9x16xf32>
    %204 = tpu.matmul %186, %203, %cst_156 {dimension_numbers = #tpu.dot_dimension_numbers<[1], [0], [0], [1], [0, 0, 1, 1], [], []>} : vector<9x4xbf16>, vector<4x16xbf16>, vector<9x16xf32> -> vector<9x16xf32>
    %205 = arith.mulf %204, %187 : vector<9x16xf32>
    %206 = arith.truncf %205 : vector<9x16xf32> to vector<9x16xbf16>
    %cst_157 = arith.constant dense<0.000000e+00> : vector<1x16xf32>
    %207 = tpu.matmul %189, %206, %cst_157 {dimension_numbers = #tpu.dot_dimension_numbers<[1], [0], [0], [1], [0, 0, 1, 1], [], []>} : vector<1x9xbf16>, vector<9x16xbf16>, vector<1x16xf32> -> vector<1x16xf32>
    %208 = arith.addf %207, %188 : vector<1x16xf32>
    %209 = arith.truncf %208 : vector<1x16xf32> to vector<1x16xbf16>
    %cst_158 = arith.constant dense<0.000000e+00> : vector<1x128xf32>
    %210 = tpu.matmul %209, %190, %cst_158 {dimension_numbers = #tpu.dot_dimension_numbers<[1], [0], [0], [1], [0, 0, 1, 1], [], []>} : vector<1x16xbf16>, vector<16x128xbf16>, vector<1x128xf32> -> vector<1x128xf32>
    %211 = arith.mulf %210, %191 : vector<1x128xf32>
    %212 = arith.addf %211, %192 : vector<1x128xf32>
    %cst_159 = arith.constant dense<0.000000e+00> : vector<1x64xf32>
    %213 = tpu.matmul %193, %195, %cst_159 {dimension_numbers = #tpu.dot_dimension_numbers<[1], [0], [0], [1], [0, 0, 1, 1], [], []>} : vector<1x4xbf16>, vector<4x64xbf16>, vector<1x64xf32> -> vector<1x64xf32>
    %cst_160 = arith.constant 0.111111112 : f32
    %214 = vector.broadcast %cst_160 : f32 to vector<1x64xf32>
    %215 = arith.mulf %213, %214 : vector<1x64xf32>
    %216 = arith.truncf %215 : vector<1x64xf32> to vector<1x64xbf16>
    %cst_161 = arith.constant dense<0.000000e+00> : vector<1x128xf32>
    %217 = tpu.matmul %216, %194, %cst_161 {dimension_numbers = #tpu.dot_dimension_numbers<[1], [0], [0], [1], [0, 0, 1, 1], [], []>} : vector<1x64xbf16>, vector<64x128xbf16>, vector<1x128xf32> -> vector<1x128xf32>
    %218 = arith.addf %212, %217 : vector<1x128xf32>
    %cst_162 = arith.constant 0.000000e+00 : f32
    %219 = vector.broadcast %cst_162 : f32 to vector<1x128xf32>
    %220 = arith.maximumf %218, %219 : vector<1x128xf32>
    %c0_163 = arith.constant 0 : index
    %c0_164 = arith.constant 0 : index
    %221 = vector.load %arg62[%c0_163, %c0_164] : memref<128x32xbf16, #tpu.memory_space<vmem>>, vector<128x32xbf16>
    %c0_165 = arith.constant 0 : index
    %c0_166 = arith.constant 0 : index
    %222 = vector.load %arg63[%c0_165, %c0_166] : memref<1x32xf32, #tpu.memory_space<vmem>>, vector<1x32xf32>
    %c0_167 = arith.constant 0 : index
    %c0_168 = arith.constant 0 : index
    %223 = vector.load %arg64[%c0_167, %c0_168] : memref<1x32xf32, #tpu.memory_space<vmem>>, vector<1x32xf32>
    %c0_169 = arith.constant 0 : index
    %c0_170 = arith.constant 0 : index
    %224 = vector.load %arg65[%c0_169, %c0_170] : memref<9x1xbf16, #tpu.memory_space<vmem>>, vector<9x1xbf16>
    %c0_171 = arith.constant 0 : index
    %c0_172 = arith.constant 0 : index
    %225 = vector.load %arg66[%c0_171, %c0_172] : memref<9x32xf32, #tpu.memory_space<vmem>>, vector<9x32xf32>
    %c0_173 = arith.constant 0 : index
    %c0_174 = arith.constant 0 : index
    %226 = vector.load %arg67[%c0_173, %c0_174] : memref<1x32xf32, #tpu.memory_space<vmem>>, vector<1x32xf32>
    %c0_175 = arith.constant 0 : index
    %c0_176 = arith.constant 0 : index
    %227 = vector.load %arg68[%c0_175, %c0_176] : memref<1x9xbf16, #tpu.memory_space<vmem>>, vector<1x9xbf16>
    %c0_177 = arith.constant 0 : index
    %c0_178 = arith.constant 0 : index
    %228 = vector.load %arg69[%c0_177, %c0_178] : memref<32x128xbf16, #tpu.memory_space<vmem>>, vector<32x128xbf16>
    %c0_179 = arith.constant 0 : index
    %c0_180 = arith.constant 0 : index
    %229 = vector.load %arg70[%c0_179, %c0_180] : memref<1x128xf32, #tpu.memory_space<vmem>>, vector<1x128xf32>
    %c0_181 = arith.constant 0 : index
    %c0_182 = arith.constant 0 : index
    %230 = vector.load %arg71[%c0_181, %c0_182] : memref<1x128xf32, #tpu.memory_space<vmem>>, vector<1x128xf32>
    %231 = arith.truncf %220 : vector<1x128xf32> to vector<1x128xbf16>
    %cst_183 = arith.constant dense<0.000000e+00> : vector<1x32xf32>
    %232 = tpu.matmul %231, %221, %cst_183 {dimension_numbers = #tpu.dot_dimension_numbers<[1], [0], [0], [1], [0, 0, 1, 1], [], []>} : vector<1x128xbf16>, vector<128x32xbf16>, vector<1x32xf32> -> vector<1x32xf32>
    %233 = arith.mulf %232, %222 : vector<1x32xf32>
    %234 = arith.addf %233, %223 : vector<1x32xf32>
    %cst_184 = arith.constant 0.000000e+00 : f32
    %235 = vector.broadcast %cst_184 : f32 to vector<1x32xf32>
    %236 = arith.maximumf %234, %235 : vector<1x32xf32>
    %237 = arith.truncf %236 : vector<1x32xf32> to vector<1x32xbf16>
    %cst_185 = arith.constant dense<0.000000e+00> : vector<9x32xf32>
    %238 = tpu.matmul %224, %237, %cst_185 {dimension_numbers = #tpu.dot_dimension_numbers<[1], [0], [0], [1], [0, 0, 1, 1], [], []>} : vector<9x1xbf16>, vector<1x32xbf16>, vector<9x32xf32> -> vector<9x32xf32>
    %239 = arith.mulf %238, %225 : vector<9x32xf32>
    %240 = arith.truncf %239 : vector<9x32xf32> to vector<9x32xbf16>
    %cst_186 = arith.constant dense<0.000000e+00> : vector<1x32xf32>
    %241 = tpu.matmul %227, %240, %cst_186 {dimension_numbers = #tpu.dot_dimension_numbers<[1], [0], [0], [1], [0, 0, 1, 1], [], []>} : vector<1x9xbf16>, vector<9x32xbf16>, vector<1x32xf32> -> vector<1x32xf32>
    %242 = arith.addf %241, %226 : vector<1x32xf32>
    %243 = arith.truncf %242 : vector<1x32xf32> to vector<1x32xbf16>
    %cst_187 = arith.constant dense<0.000000e+00> : vector<1x128xf32>
    %244 = tpu.matmul %243, %228, %cst_187 {dimension_numbers = #tpu.dot_dimension_numbers<[1], [0], [0], [1], [0, 0, 1, 1], [], []>} : vector<1x32xbf16>, vector<32x128xbf16>, vector<1x128xf32> -> vector<1x128xf32>
    %245 = arith.mulf %244, %229 : vector<1x128xf32>
    %246 = arith.addf %245, %230 : vector<1x128xf32>
    %247 = arith.addf %246, %220 : vector<1x128xf32>
    %cst_188 = arith.constant 0.000000e+00 : f32
    %248 = vector.broadcast %cst_188 : f32 to vector<1x128xf32>
    %249 = arith.maximumf %247, %248 : vector<1x128xf32>
    %250 = vector.shape_cast %249 : vector<1x128xf32> to vector<1x1x128xf32>
    %c0_189 = arith.constant 0 : index
    %c0_190 = arith.constant 0 : index
    %c0_191 = arith.constant 0 : index
    %251 = vector.load %arg72[%c0_189, %c0_190, %c0_191] : memref<1x1x128xf32, #tpu.memory_space<vmem>>, vector<1x1x128xf32>
    tpu.vector_store %arg72[%c0_189, %c0_190, %c0_191], %250 {strides = array<i32>} : memref<1x1x128xf32, #tpu.memory_space<vmem>>, vector<1x1x128xf32>,
    return
  }
  func.func @transform_0(%arg0: i32) -> (i32, i32, i32) {
    %c0_i32 = arith.constant 0 : i32
    %c0_i32_0 = arith.constant 0 : i32
    %c0_i32_1 = arith.constant 0 : i32
    return %arg0, %c0_i32, %c0_i32_0 : i32, i32, i32
  }
  func.func @transform_1(%arg0: i32) -> (i32, i32) {
    %c0_i32 = arith.constant 0 : i32
    %c0_i32_0 = arith.constant 0 : i32
    %c0_i32_1 = arith.constant 0 : i32
    return %c0_i32, %c0_i32_0 : i32, i32
  }
  func.func @transform_2(%arg0: i32) -> (i32, i32) {
    %c0_i32 = arith.constant 0 : i32
    %c0_i32_0 = arith.constant 0 : i32
    %c0_i32_1 = arith.constant 0 : i32
    return %c0_i32, %c0_i32_0 : i32, i32
  }
  func.func @transform_3(%arg0: i32) -> (i32, i32) {
    %c0_i32 = arith.constant 0 : i32
    %c0_i32_0 = arith.constant 0 : i32
    %c0_i32_1 = arith.constant 0 : i32
    return %c0_i32, %c0_i32_0 : i32, i32
  }
  func.func @transform_4(%arg0: i32) -> (i32, i32) {
    %c0_i32 = arith.constant 0 : i32
    %c0_i32_0 = arith.constant 0 : i32
    %c0_i32_1 = arith.constant 0 : i32
    return %c0_i32, %c0_i32_0 : i32, i32
  }
  func.func @transform_5(%arg0: i32) -> (i32, i32) {
    %c0_i32 = arith.constant 0 : i32
    %c0_i32_0 = arith.constant 0 : i32
    %c0_i32_1 = arith.constant 0 : i32
    return %c0_i32, %c0_i32_0 : i32, i32
  }
  func.func @transform_6(%arg0: i32) -> (i32, i32) {
    %c0_i32 = arith.constant 0 : i32
    %c0_i32_0 = arith.constant 0 : i32
    %c0_i32_1 = arith.constant 0 : i32
    return %c0_i32, %c0_i32_0 : i32, i32
  }
  func.func @transform_7(%arg0: i32) -> (i32, i32) {
    %c0_i32 = arith.constant 0 : i32
    %c0_i32_0 = arith.constant 0 : i32
    %c0_i32_1 = arith.constant 0 : i32
    return %c0_i32, %c0_i32_0 : i32, i32
  }
  func.func @transform_8(%arg0: i32) -> (i32, i32) {
    %c0_i32 = arith.constant 0 : i32
    %c0_i32_0 = arith.constant 0 : i32
    %c0_i32_1 = arith.constant 0 : i32
    return %c0_i32, %c0_i32_0 : i32, i32
  }
  func.func @transform_9(%arg0: i32) -> (i32, i32) {
    %c0_i32 = arith.constant 0 : i32
    %c0_i32_0 = arith.constant 0 : i32
    %c0_i32_1 = arith.constant 0 : i32
    return %c0_i32, %c0_i32_0 : i32, i32
  }
  func.func @transform_10(%arg0: i32) -> (i32, i32) {
    %c0_i32 = arith.constant 0 : i32
    %c0_i32_0 = arith.constant 0 : i32
    %c0_i32_1 = arith.constant 0 : i32
    return %c0_i32, %c0_i32_0 : i32, i32
  }
  func.func @transform_11(%arg0: i32) -> (i32, i32) {
    %c0_i32 = arith.constant 0 : i32
    %c0_i32_0 = arith.constant 0 : i32
    %c0_i32_1 = arith.constant 0 : i32
    return %c0_i32, %c0_i32_0 : i32, i32
  }
  func.func @transform_12(%arg0: i32) -> (i32, i32) {
    %c0_i32 = arith.constant 0 : i32
    %c0_i32_0 = arith.constant 0 : i32
    %c0_i32_1 = arith.constant 0 : i32
    return %c0_i32, %c0_i32_0 : i32, i32
  }
  func.func @transform_13(%arg0: i32) -> (i32, i32) {
    %c0_i32 = arith.constant 0 : i32
    %c0_i32_0 = arith.constant 0 : i32
    %c0_i32_1 = arith.constant 0 : i32
    return %c0_i32, %c0_i32_0 : i32, i32
  }
  func.func @transform_14(%arg0: i32) -> (i32, i32) {
    %c0_i32 = arith.constant 0 : i32
    %c0_i32_0 = arith.constant 0 : i32
    %c0_i32_1 = arith.constant 0 : i32
    return %c0_i32, %c0_i32_0 : i32, i32
  }
  func.func @transform_15(%arg0: i32) -> (i32, i32) {
    %c0_i32 = arith.constant 0 : i32
    %c0_i32_0 = arith.constant 0 : i32
    %c0_i32_1 = arith.constant 0 : i32
    return %c0_i32, %c0_i32_0 : i32, i32
  }
  func.func @transform_16(%arg0: i32) -> (i32, i32) {
    %c0_i32 = arith.constant 0 : i32
    %c0_i32_0 = arith.constant 0 : i32
    %c0_i32_1 = arith.constant 0 : i32
    return %c0_i32, %c0_i32_0 : i32, i32
  }
  func.func @transform_17(%arg0: i32) -> (i32, i32) {
    %c0_i32 = arith.constant 0 : i32
    %c0_i32_0 = arith.constant 0 : i32
    %c0_i32_1 = arith.constant 0 : i32
    return %c0_i32, %c0_i32_0 : i32, i32
  }
  func.func @transform_18(%arg0: i32) -> (i32, i32) {
    %c0_i32 = arith.constant 0 : i32
    %c0_i32_0 = arith.constant 0 : i32
    %c0_i32_1 = arith.constant 0 : i32
    return %c0_i32, %c0_i32_0 : i32, i32
  }
  func.func @transform_19(%arg0: i32) -> (i32, i32) {
    %c0_i32 = arith.constant 0 : i32
    %c0_i32_0 = arith.constant 0 : i32
    %c0_i32_1 = arith.constant 0 : i32
    return %c0_i32, %c0_i32_0 : i32, i32
  }
  func.func @transform_20(%arg0: i32) -> (i32, i32) {
    %c0_i32 = arith.constant 0 : i32
    %c0_i32_0 = arith.constant 0 : i32
    %c0_i32_1 = arith.constant 0 : i32
    return %c0_i32, %c0_i32_0 : i32, i32
  }
  func.func @transform_21(%arg0: i32) -> (i32, i32) {
    %c0_i32 = arith.constant 0 : i32
    %c0_i32_0 = arith.constant 0 : i32
    %c0_i32_1 = arith.constant 0 : i32
    return %c0_i32, %c0_i32_0 : i32, i32
  }
  func.func @transform_22(%arg0: i32) -> (i32, i32) {
    %c0_i32 = arith.constant 0 : i32
    %c0_i32_0 = arith.constant 0 : i32
    %c0_i32_1 = arith.constant 0 : i32
    return %c0_i32, %c0_i32_0 : i32, i32
  }
  func.func @transform_23(%arg0: i32) -> (i32, i32) {
    %c0_i32 = arith.constant 0 : i32
    %c0_i32_0 = arith.constant 0 : i32
    %c0_i32_1 = arith.constant 0 : i32
    return %c0_i32, %c0_i32_0 : i32, i32
  }
  func.func @transform_24(%arg0: i32) -> (i32, i32) {
    %c0_i32 = arith.constant 0 : i32
    %c0_i32_0 = arith.constant 0 : i32
    %c0_i32_1 = arith.constant 0 : i32
    return %c0_i32, %c0_i32_0 : i32, i32
  }
  func.func @transform_25(%arg0: i32) -> (i32, i32) {
    %c0_i32 = arith.constant 0 : i32
    %c0_i32_0 = arith.constant 0 : i32
    %c0_i32_1 = arith.constant 0 : i32
    return %c0_i32, %c0_i32_0 : i32, i32
  }
  func.func @transform_26(%arg0: i32) -> (i32, i32) {
    %c0_i32 = arith.constant 0 : i32
    %c0_i32_0 = arith.constant 0 : i32
    %c0_i32_1 = arith.constant 0 : i32
    return %c0_i32, %c0_i32_0 : i32, i32
  }
  func.func @transform_27(%arg0: i32) -> (i32, i32) {
    %c0_i32 = arith.constant 0 : i32
    %c0_i32_0 = arith.constant 0 : i32
    %c0_i32_1 = arith.constant 0 : i32
    return %c0_i32, %c0_i32_0 : i32, i32
  }
  func.func @transform_28(%arg0: i32) -> (i32, i32) {
    %c0_i32 = arith.constant 0 : i32
    %c0_i32_0 = arith.constant 0 : i32
    %c0_i32_1 = arith.constant 0 : i32
    return %c0_i32, %c0_i32_0 : i32, i32
  }
  func.func @transform_29(%arg0: i32) -> (i32, i32) {
    %c0_i32 = arith.constant 0 : i32
    %c0_i32_0 = arith.constant 0 : i32
    %c0_i32_1 = arith.constant 0 : i32
    return %c0_i32, %c0_i32_0 : i32, i32
  }
  func.func @transform_30(%arg0: i32) -> (i32, i32) {
    %c0_i32 = arith.constant 0 : i32
    %c0_i32_0 = arith.constant 0 : i32
    %c0_i32_1 = arith.constant 0 : i32
    return %c0_i32, %c0_i32_0 : i32, i32
  }
  func.func @transform_31(%arg0: i32) -> (i32, i32) {
    %c0_i32 = arith.constant 0 : i32
    %c0_i32_0 = arith.constant 0 : i32
    %c0_i32_1 = arith.constant 0 : i32
    return %c0_i32, %c0_i32_0 : i32, i32
  }
  func.func @transform_32(%arg0: i32) -> (i32, i32) {
    %c0_i32 = arith.constant 0 : i32
    %c0_i32_0 = arith.constant 0 : i32
    %c0_i32_1 = arith.constant 0 : i32
    return %c0_i32, %c0_i32_0 : i32, i32
  }
  func.func @transform_33(%arg0: i32) -> (i32, i32) {
    %c0_i32 = arith.constant 0 : i32
    %c0_i32_0 = arith.constant 0 : i32
    %c0_i32_1 = arith.constant 0 : i32
    return %c0_i32, %c0_i32_0 : i32, i32
  }
  func.func @transform_34(%arg0: i32) -> (i32, i32) {
    %c0_i32 = arith.constant 0 : i32
    %c0_i32_0 = arith.constant 0 : i32
    %c0_i32_1 = arith.constant 0 : i32
    return %c0_i32, %c0_i32_0 : i32, i32
  }
  func.func @transform_35(%arg0: i32) -> (i32, i32) {
    %c0_i32 = arith.constant 0 : i32
    %c0_i32_0 = arith.constant 0 : i32
    %c0_i32_1 = arith.constant 0 : i32
    return %c0_i32, %c0_i32_0 : i32, i32
  }
  func.func @transform_36(%arg0: i32) -> (i32, i32) {
    %c0_i32 = arith.constant 0 : i32
    %c0_i32_0 = arith.constant 0 : i32
    %c0_i32_1 = arith.constant 0 : i32
    return %c0_i32, %c0_i32_0 : i32, i32
  }
  func.func @transform_37(%arg0: i32) -> (i32, i32) {
    %c0_i32 = arith.constant 0 : i32
    %c0_i32_0 = arith.constant 0 : i32
    %c0_i32_1 = arith.constant 0 : i32
    return %c0_i32, %c0_i32_0 : i32, i32
  }
  func.func @transform_38(%arg0: i32) -> (i32, i32) {
    %c0_i32 = arith.constant 0 : i32
    %c0_i32_0 = arith.constant 0 : i32
    %c0_i32_1 = arith.constant 0 : i32
    return %c0_i32, %c0_i32_0 : i32, i32
  }
  func.func @transform_39(%arg0: i32) -> (i32, i32) {
    %c0_i32 = arith.constant 0 : i32
    %c0_i32_0 = arith.constant 0 : i32
    %c0_i32_1 = arith.constant 0 : i32
    return %c0_i32, %c0_i32_0 : i32, i32
  }
  func.func @transform_40(%arg0: i32) -> (i32, i32) {
    %c0_i32 = arith.constant 0 : i32
    %c0_i32_0 = arith.constant 0 : i32
    %c0_i32_1 = arith.constant 0 : i32
    return %c0_i32, %c0_i32_0 : i32, i32
  }
  func.func @transform_41(%arg0: i32) -> (i32, i32) {
    %c0_i32 = arith.constant 0 : i32
    %c0_i32_0 = arith.constant 0 : i32
    %c0_i32_1 = arith.constant 0 : i32
    return %c0_i32, %c0_i32_0 : i32, i32
  }
  func.func @transform_42(%arg0: i32) -> (i32, i32) {
    %c0_i32 = arith.constant 0 : i32
    %c0_i32_0 = arith.constant 0 : i32
    %c0_i32_1 = arith.constant 0 : i32
    return %c0_i32, %c0_i32_0 : i32, i32
  }
  func.func @transform_43(%arg0: i32) -> (i32, i32) {
    %c0_i32 = arith.constant 0 : i32
    %c0_i32_0 = arith.constant 0 : i32
    %c0_i32_1 = arith.constant 0 : i32
    return %c0_i32, %c0_i32_0 : i32, i32
  }
  func.func @transform_44(%arg0: i32) -> (i32, i32) {
    %c0_i32 = arith.constant 0 : i32
    %c0_i32_0 = arith.constant 0 : i32
    %c0_i32_1 = arith.constant 0 : i32
    return %c0_i32, %c0_i32_0 : i32, i32
  }
  func.func @transform_45(%arg0: i32) -> (i32, i32) {
    %c0_i32 = arith.constant 0 : i32
    %c0_i32_0 = arith.constant 0 : i32
    %c0_i32_1 = arith.constant 0 : i32
    return %c0_i32, %c0_i32_0 : i32, i32
  }
  func.func @transform_46(%arg0: i32) -> (i32, i32) {
    %c0_i32 = arith.constant 0 : i32
    %c0_i32_0 = arith.constant 0 : i32
    %c0_i32_1 = arith.constant 0 : i32
    return %c0_i32, %c0_i32_0 : i32, i32
  }
  func.func @transform_47(%arg0: i32) -> (i32, i32) {
    %c0_i32 = arith.constant 0 : i32
    %c0_i32_0 = arith.constant 0 : i32
    %c0_i32_1 = arith.constant 0 : i32
    return %c0_i32, %c0_i32_0 : i32, i32
  }
  func.func @transform_48(%arg0: i32) -> (i32, i32) {
    %c0_i32 = arith.constant 0 : i32
    %c0_i32_0 = arith.constant 0 : i32
    %c0_i32_1 = arith.constant 0 : i32
    return %c0_i32, %c0_i32_0 : i32, i32
  }
  func.func @transform_49(%arg0: i32) -> (i32, i32) {
    %c0_i32 = arith.constant 0 : i32
    %c0_i32_0 = arith.constant 0 : i32
    %c0_i32_1 = arith.constant 0 : i32
    return %c0_i32, %c0_i32_0 : i32, i32
  }
  func.func @transform_50(%arg0: i32) -> (i32, i32) {
    %c0_i32 = arith.constant 0 : i32
    %c0_i32_0 = arith.constant 0 : i32
    %c0_i32_1 = arith.constant 0 : i32
    return %c0_i32, %c0_i32_0 : i32, i32
  }
  func.func @transform_51(%arg0: i32) -> (i32, i32) {
    %c0_i32 = arith.constant 0 : i32
    %c0_i32_0 = arith.constant 0 : i32
    %c0_i32_1 = arith.constant 0 : i32
    return %c0_i32, %c0_i32_0 : i32, i32
  }
  func.func @transform_52(%arg0: i32) -> (i32, i32) {
    %c0_i32 = arith.constant 0 : i32
    %c0_i32_0 = arith.constant 0 : i32
    %c0_i32_1 = arith.constant 0 : i32
    return %c0_i32, %c0_i32_0 : i32, i32
  }
  func.func @transform_53(%arg0: i32) -> (i32, i32) {
    %c0_i32 = arith.constant 0 : i32
    %c0_i32_0 = arith.constant 0 : i32
    %c0_i32_1 = arith.constant 0 : i32
    return %c0_i32, %c0_i32_0 : i32, i32
  }
  func.func @transform_54(%arg0: i32) -> (i32, i32) {
    %c0_i32 = arith.constant 0 : i32
    %c0_i32_0 = arith.constant 0 : i32
    %c0_i32_1 = arith.constant 0 : i32
    return %c0_i32, %c0_i32_0 : i32, i32
  }
  func.func @transform_55(%arg0: i32) -> (i32, i32) {
    %c0_i32 = arith.constant 0 : i32
    %c0_i32_0 = arith.constant 0 : i32
    %c0_i32_1 = arith.constant 0 : i32
    return %c0_i32, %c0_i32_0 : i32, i32
  }
  func.func @transform_56(%arg0: i32) -> (i32, i32) {
    %c0_i32 = arith.constant 0 : i32
    %c0_i32_0 = arith.constant 0 : i32
    %c0_i32_1 = arith.constant 0 : i32
    return %c0_i32, %c0_i32_0 : i32, i32
  }
  func.func @transform_57(%arg0: i32) -> (i32, i32) {
    %c0_i32 = arith.constant 0 : i32
    %c0_i32_0 = arith.constant 0 : i32
    %c0_i32_1 = arith.constant 0 : i32
    return %c0_i32, %c0_i32_0 : i32, i32
  }
  func.func @transform_58(%arg0: i32) -> (i32, i32) {
    %c0_i32 = arith.constant 0 : i32
    %c0_i32_0 = arith.constant 0 : i32
    %c0_i32_1 = arith.constant 0 : i32
    return %c0_i32, %c0_i32_0 : i32, i32
  }
  func.func @transform_59(%arg0: i32) -> (i32, i32) {
    %c0_i32 = arith.constant 0 : i32
    %c0_i32_0 = arith.constant 0 : i32
    %c0_i32_1 = arith.constant 0 : i32
    return %c0_i32, %c0_i32_0 : i32, i32
  }
  func.func @transform_60(%arg0: i32) -> (i32, i32) {
    %c0_i32 = arith.constant 0 : i32
    %c0_i32_0 = arith.constant 0 : i32
    %c0_i32_1 = arith.constant 0 : i32
    return %c0_i32, %c0_i32_0 : i32, i32
  }
  func.func @transform_61(%arg0: i32) -> (i32, i32) {
    %c0_i32 = arith.constant 0 : i32
    %c0_i32_0 = arith.constant 0 : i32
    %c0_i32_1 = arith.constant 0 : i32
    return %c0_i32, %c0_i32_0 : i32, i32
  }
  func.func @transform_62(%arg0: i32) -> (i32, i32) {
    %c0_i32 = arith.constant 0 : i32
    %c0_i32_0 = arith.constant 0 : i32
    %c0_i32_1 = arith.constant 0 : i32
    return %c0_i32, %c0_i32_0 : i32, i32
  }
  func.func @transform_63(%arg0: i32) -> (i32, i32) {
    %c0_i32 = arith.constant 0 : i32
    %c0_i32_0 = arith.constant 0 : i32
    %c0_i32_1 = arith.constant 0 : i32
    return %c0_i32, %c0_i32_0 : i32, i32
  }
  func.func @transform_64(%arg0: i32) -> (i32, i32) {
    %c0_i32 = arith.constant 0 : i32
    %c0_i32_0 = arith.constant 0 : i32
    %c0_i32_1 = arith.constant 0 : i32
    return %c0_i32, %c0_i32_0 : i32, i32
  }
  func.func @transform_65(%arg0: i32) -> (i32, i32) {
    %c0_i32 = arith.constant 0 : i32
    %c0_i32_0 = arith.constant 0 : i32
    %c0_i32_1 = arith.constant 0 : i32
    return %c0_i32, %c0_i32_0 : i32, i32
  }
  func.func @transform_66(%arg0: i32) -> (i32, i32) {
    %c0_i32 = arith.constant 0 : i32
    %c0_i32_0 = arith.constant 0 : i32
    %c0_i32_1 = arith.constant 0 : i32
    return %c0_i32, %c0_i32_0 : i32, i32
  }
  func.func @transform_67(%arg0: i32) -> (i32, i32) {
    %c0_i32 = arith.constant 0 : i32
    %c0_i32_0 = arith.constant 0 : i32
    %c0_i32_1 = arith.constant 0 : i32
    return %c0_i32, %c0_i32_0 : i32, i32
  }
  func.func @transform_68(%arg0: i32) -> (i32, i32) {
    %c0_i32 = arith.constant 0 : i32
    %c0_i32_0 = arith.constant 0 : i32
    %c0_i32_1 = arith.constant 0 : i32
    return %c0_i32, %c0_i32_0 : i32, i32
  }
  func.func @transform_69(%arg0: i32) -> (i32, i32) {
    %c0_i32 = arith.constant 0 : i32
    %c0_i32_0 = arith.constant 0 : i32
    %c0_i32_1 = arith.constant 0 : i32
    return %c0_i32, %c0_i32_0 : i32, i32
  }
  func.func @transform_70(%arg0: i32) -> (i32, i32) {
    %c0_i32 = arith.constant 0 : i32
    %c0_i32_0 = arith.constant 0 : i32
    %c0_i32_1 = arith.constant 0 : i32
    return %c0_i32, %c0_i32_0 : i32, i32
  }
  func.func @transform_71(%arg0: i32) -> (i32, i32, i32) {
    %c0_i32 = arith.constant 0 : i32
    %c0_i32_0 = arith.constant 0 : i32
    %c0_i32_1 = arith.constant 0 : i32
    return %arg0, %c0_i32, %c0_i32_0 : i32, i32, i32
  }
}

</mosaic_0001>

<llo_original>
// kernel: forward.1
$region0: #{forward.1}
  #allocation0 [shape = 'u32[]', space=smem, size = 0x4, offset = 0x4, fixed_abs, tag = 'smem constant byte address 0x4 - core index']
  #allocation1 [shape = 'u32[72,128]{1,0:T(1,128)}', space=vmem, size = 0x9000, scoped, tag = 'internal scratch']
  %s0 = inlined_call_operand.smem [shape: u32[72], index: -1, kind: input, shape index: {}]
  %s1 = sld [smem:[%s0]]
  %s2 = scalar_lea.smem %s0, 1
  %s3 = sld [smem:[%s2]]
  %s4 = scalar_lea.smem %s0, 2
  %s5 = sld [smem:[%s4]]
  %s6 = scalar_lea.smem %s0, 3
  %s7 = sld [smem:[%s6]]
  %s8 = scalar_lea.smem %s0, 4
  %s9 = sld [smem:[%s8]]
  %s10 = scalar_lea.smem %s0, 5
  %s11 = sld [smem:[%s10]]
  %s12 = scalar_lea.smem %s0, 6
  %s13 = sld [smem:[%s12]]
  %s14 = scalar_lea.smem %s0, 7
  %s15 = sld [smem:[%s14]]
  %s16 = scalar_lea.smem %s0, 8
  %s17 = sld [smem:[%s16]]
  %s18 = scalar_lea.smem %s0, 9
  %s19 = sld [smem:[%s18]]
  %s20 = scalar_lea.smem %s0, 10
  %s21 = sld [smem:[%s20]]
  %s22 = scalar_lea.smem %s0, 11
  %s23 = sld [smem:[%s22]]
  %s24 = scalar_lea.smem %s0, 12
  %s25 = sld [smem:[%s24]]
  %s26 = scalar_lea.smem %s0, 13
  %s27 = sld [smem:[%s26]]
  %s28 = scalar_lea.smem %s0, 14
  %s29 = sld [smem:[%s28]]
  %s30 = scalar_lea.smem %s0, 15
  %s31 = sld [smem:[%s30]]
  %s32 = scalar_lea.smem %s0, 16
  %s33 = sld [smem:[%s32]]
  %s34 = scalar_lea.smem %s0, 17
  %s35 = sld [smem:[%s34]]
  %s36 = scalar_lea.smem %s0, 18
  %s37 = sld [smem:[%s36]]
  %s38 = scalar_lea.smem %s0, 19
  %s39 = sld [smem:[%s38]]
  %s40 = scalar_lea.smem %s0, 20
  %s41 = sld [smem:[%s40]]
  %s42 = scalar_lea.smem %s0, 21
  %s43 = sld [smem:[%s42]]
  %s44 = scalar_lea.smem %s0, 22
  %s45 = sld [smem:[%s44]]
  %s46 = scalar_lea.smem %s0, 23
  %s47 = sld [smem:[%s46]]
  %s48 = scalar_lea.smem %s0, 24
  %s49 = sld [smem:[%s48]]
  %s50 = scalar_lea.smem %s0, 25
  %s51 = sld [smem:[%s50]]
  %s52 = scalar_lea.smem %s0, 26
  %s53 = sld [smem:[%s52]]
  %s54 = scalar_lea.smem %s0, 27
  %s55 = sld [smem:[%s54]]
  %s56 = scalar_lea.smem %s0, 28
  %s57 = sld [smem:[%s56]]
  %s58 = scalar_lea.smem %s0, 29
  %s59 = sld [smem:[%s58]]
  %s60 = scalar_lea.smem %s0, 30
  %s61 = sld [smem:[%s60]]
  %s62 = scalar_lea.smem %s0, 31
  %s63 = sld [smem:[%s62]]
  %s64 = scalar_lea.smem %s0, 32
  %s65 = sld [smem:[%s64]]
  %s66 = scalar_lea.smem %s0, 33
  %s67 = sld [smem:[%s66]]
  %s68 = scalar_lea.smem %s0, 34
  %s69 = sld [smem:[%s68]]
  %s70 = scalar_lea.smem %s0, 35
  %s71 = sld [smem:[%s70]]
  %s72 = scalar_lea.smem %s0, 36
  %s73 = sld [smem:[%s72]]
  %s74 = scalar_lea.smem %s0, 37
  %s75 = sld [smem:[%s74]]
  %s76 = scalar_lea.smem %s0, 38
  %s77 = sld [smem:[%s76]]
  %s78 = scalar_lea.smem %s0, 39
  %s79 = sld [smem:[%s78]]
  %s80 = scalar_lea.smem %s0, 40
  %s81 = sld [smem:[%s80]]
  %s82 = scalar_lea.smem %s0, 41
  %s83 = sld [smem:[%s82]]
  %s84 = scalar_lea.smem %s0, 42
  %s85 = sld [smem:[%s84]]
  %s86 = scalar_lea.smem %s0, 43
  %s87 = sld [smem:[%s86]]
  %s88 = scalar_lea.smem %s0, 44
  %s89 = sld [smem:[%s88]]
  %s90 = scalar_lea.smem %s0, 45
  %s91 = sld [smem:[%s90]]
  %s92 = scalar_lea.smem %s0, 46
  %s93 = sld [smem:[%s92]]
  %s94 = scalar_lea.smem %s0, 47
  %s95 = sld [smem:[%s94]]
  %s96 = scalar_lea.smem %s0, 48
  %s97 = sld [smem:[%s96]]
  %s98 = scalar_lea.smem %s0, 49
  %s99 = sld [smem:[%s98]]
  %s100 = scalar_lea.smem %s0, 50
  %s101 = sld [smem:[%s100]]
  %s102 = scalar_lea.smem %s0, 51
  %s103 = sld [smem:[%s102]]
  %s104 = scalar_lea.smem %s0, 52
  %s105 = sld [smem:[%s104]]
  %s106 = scalar_lea.smem %s0, 53
  %s107 = sld [smem:[%s106]]
  %s108 = scalar_lea.smem %s0, 54
  %s109 = sld [smem:[%s108]]
  %s110 = scalar_lea.smem %s0, 55
  %s111 = sld [smem:[%s110]]
  %s112 = scalar_lea.smem %s0, 56
  %s113 = sld [smem:[%s112]]
  %s114 = scalar_lea.smem %s0, 57
  %s115 = sld [smem:[%s114]]
  %s116 = scalar_lea.smem %s0, 58
  %s117 = sld [smem:[%s116]]
  %s118 = scalar_lea.smem %s0, 59
  %s119 = sld [smem:[%s118]]
  %s120 = scalar_lea.smem %s0, 60
  %s121 = sld [smem:[%s120]]
  %s122 = scalar_lea.smem %s0, 61
  %s123 = sld [smem:[%s122]]
  %s124 = scalar_lea.smem %s0, 62
  %s125 = sld [smem:[%s124]]
  %s126 = scalar_lea.smem %s0, 63
  %s127 = sld [smem:[%s126]]
  %s128 = scalar_lea.smem %s0, 64
  %s129 = sld [smem:[%s128]]
  %s130 = scalar_lea.smem %s0, 65
  %s131 = sld [smem:[%s130]]
  %s132 = scalar_lea.smem %s0, 66
  %s133 = sld [smem:[%s132]]
  %s134 = scalar_lea.smem %s0, 67
  %s135 = sld [smem:[%s134]]
  %s136 = scalar_lea.smem %s0, 68
  %s137 = sld [smem:[%s136]]
  %s138 = scalar_lea.smem %s0, 69
  %s139 = sld [smem:[%s138]]
  %s140 = scalar_lea.smem %s0, 70
  %s141 = sld [smem:[%s140]]
  %s142 = scalar_lea.smem %s0, 71
  %s143 = sld [smem:[%s142]]
  %s144 = sld [smem:[#allocation0]]
  $region417: #{forward.1} parent=0
    _
  %s146 = ssub.s32 1, %s144
  %s147 = scalar_select 0, %s146, %s144
  $region1: #{forward.1} parent=0
    #allocation2 [shape = 'u8[512]{0}', space=vmem, size = 0x400, scoped, tag = 'input window, operand 2, single buffered']
    #allocation3 [shape = 's32[2]{0}', space=sflag, size = 0x8, scoped, tag = 'scoped memory for forward.1']
    #allocation4 [shape = 's32[2]{0}', space=sflag, size = 0x8, scoped, tag = 'scoped memory for forward.1']
    #allocation5 [shape = 'u8[512]{0}', space=vmem, size = 0x400, scoped, tag = 'input window, operand 3, single buffered']
    #allocation6 [shape = 's32[1]{0}', space=sflag, size = 0x4, scoped, tag = 'scoped memory for forward.1']
    #allocation7 [shape = 'u8[512]{0}', space=vmem, size = 0x400, scoped, tag = 'input window, operand 6, single buffered']
    #allocation8 [shape = 'u8[512]{0}', space=vmem, size = 0x400, scoped, tag = 'input window, operand 7, single buffered']
    #allocation9 [shape = 's32[1]{0}', space=sflag, size = 0x4, scoped, tag = 'scoped memory for forward.1']
    #allocation10 [shape = 'u8[512]{0}', space=vmem, size = 0x400, scoped, tag = 'input window, operand 10, single buffered']
    #allocation11 [shape = 'u8[512]{0}', space=vmem, size = 0x400, scoped, tag = 'input window, operand 13, single buffered']
    #allocation12 [shape = 's32[1]{0}', space=sflag, size = 0x4, scoped, tag = 'scoped memory for forward.1']
    #allocation13 [shape = 'u8[512]{0}', space=vmem, size = 0x400, scoped, tag = 'input window, operand 14, single buffered']
    #allocation14 [shape = 'u8[512]{0}', space=vmem, size = 0x400, scoped, tag = 'input window, operand 18, single buffered']
    #allocation15 [shape = 's32[1]{0}', space=sflag, size = 0x4, scoped, tag = 'scoped memory for forward.1']
    #allocation16 [shape = 'u8[512]{0}', space=vmem, size = 0x400, scoped, tag = 'input window, operand 19, single buffered']
    #allocation17 [shape = 'u8[512]{0}', space=vmem, size = 0x400, scoped, tag = 'input window, operand 22, single buffered']
    #allocation18 [shape = 's32[1]{0}', space=sflag, size = 0x4, scoped, tag = 'scoped memory for forward.1']
    #allocation19 [shape = 'u8[512]{0}', space=vmem, size = 0x400, scoped, tag = 'input window, operand 25, single buffered']
    #allocation20 [shape = 'u8[512]{0}', space=vmem, size = 0x400, scoped, tag = 'input window, operand 26, single buffered']
    #allocation21 [shape = 's32[1]{0}', space=sflag, size = 0x4, scoped, tag = 'scoped memory for forward.1']
    #allocation22 [shape = 'u8[512]{0}', space=vmem, size = 0x400, scoped, tag = 'input window, operand 28, single buffered']
    #allocation23 [shape = 'u8[512]{0}', space=vmem, size = 0x400, scoped, tag = 'input window, operand 29, single buffered']
    #allocation24 [shape = 's32[1]{0}', space=sflag, size = 0x4, scoped, tag = 'scoped memory for forward.1']
    #allocation25 [shape = 'u8[512]{0}', space=vmem, size = 0x400, scoped, tag = 'input window, operand 32, single buffered']
    #allocation26 [shape = 'u8[512]{0}', space=vmem, size = 0x400, scoped, tag = 'input window, operand 50, single buffered']
    #allocation27 [shape = 's32[1]{0}', space=sflag, size = 0x4, scoped, tag = 'scoped memory for forward.1']
    #allocation28 [shape = 'u8[512]{0}', space=vmem, size = 0x400, scoped, tag = 'input window, operand 51, single buffered']
    #allocation29 [shape = 'u8[512]{0}', space=vmem, size = 0x400, scoped, tag = 'input window, operand 54, single buffered']
    #allocation30 [shape = 's32[1]{0}', space=sflag, size = 0x4, scoped, tag = 'scoped memory for forward.1']
    #allocation31 [shape = 'u8[512]{0}', space=vmem, size = 0x400, scoped, tag = 'input window, operand 57, single buffered']
    #allocation32 [shape = 'u8[512]{0}', space=vmem, size = 0x400, scoped, tag = 'input window, operand 58, single buffered']
    #allocation33 [shape = 's32[1]{0}', space=sflag, size = 0x4, scoped, tag = 'scoped memory for forward.1']
    #allocation34 [shape = 'u8[512]{0}', space=vmem, size = 0x400, scoped, tag = 'input window, operand 62, single buffered']
    #allocation35 [shape = 'u8[512]{0}', space=vmem, size = 0x400, scoped, tag = 'input window, operand 63, single buffered']
    #allocation36 [shape = 's32[1]{0}', space=sflag, size = 0x4, scoped, tag = 'scoped memory for forward.1']
    #allocation37 [shape = 'u8[512]{0}', space=vmem, size = 0x400, scoped, tag = 'input window, operand 66, single buffered']
    #allocation38 [shape = 'u8[512]{0}', space=vmem, size = 0x400, scoped, tag = 'input window, operand 69, single buffered']
    #allocation39 [shape = 's32[1]{0}', space=sflag, size = 0x4, scoped, tag = 'scoped memory for forward.1']
    #allocation40 [shape = 'u8[512]{0}', space=vmem, size = 0x400, scoped, tag = 'input window, operand 70, single buffered']
    #allocation41 [shape = 'u8[1024]{0}', space=vmem, size = 0x400, scoped, tag = 'output window, operand 0']
    %148 = vsyncpa [#allocation3], 0
    %149 = vsyncpa [#allocation6], 0
    %150 = vsyncpa [#allocation9], 0
    %151 = vsyncpa [#allocation12], 0
    %152 = vsyncpa [#allocation15], 0
    %153 = vsyncpa [#allocation18], 0
    %154 = vsyncpa [#allocation21], 0
    %155 = vsyncpa [#allocation24], 0
    %156 = vsyncpa [#allocation27], 0
    %157 = vsyncpa [#allocation30], 0
    %158 = vsyncpa [#allocation33], 0
    %159 = vsyncpa [#allocation36], 0
    %160 = vsyncpa [#allocation39], 0
    %161 = vsyncpa [#allocation4], 0
    %s162 = scalar_lea.sflag [#allocation4], 1
    %163 = vsyncpa %s162, 0
    loop: start=0, step=1, limit=4
    $region2: #{forward.1} parent=1 // loop_pre_header
      _
    $region3: #{forward.1} parent=1 // loop_header
      %s165 = sphi 0, %s169
      %p166 = scmp.ge.s32.totalorder %s165, 4
      %s175 = sphi 0, %s177
      %s178 = sphi 0, %s175
      %s179 = sphi 0, %s178
      %s195 = sphi 0, %s179
      %s199 = sphi 0, %s199
      %s201 = sphi 0, %s199
      %s202 = sphi 0, %s201
      %s216 = sphi 0, %s202
      %s220 = sphi 0, %s220
      %s222 = sphi 0, %s220
      %s223 = sphi 0, %s222
      %s237 = sphi 0, %s223
      %s241 = sphi 0, %s241
      %s243 = sphi 0, %s241
      %s244 = sphi 0, %s243
      %s258 = sphi 0, %s244
      %s262 = sphi 0, %s262
      %s264 = sphi 0, %s262
      %s265 = sphi 0, %s264
      %s279 = sphi 0, %s265
      %s283 = sphi 0, %s283
      %s285 = sphi 0, %s283
      %s286 = sphi 0, %s285
      %s300 = sphi 0, %s286
      %s304 = sphi 0, %s304
      %s306 = sphi 0, %s304
      %s307 = sphi 0, %s306
      %s321 = sphi 0, %s307
      %s325 = sphi 0, %s325
      %s327 = sphi 0, %s325
      %s328 = sphi 0, %s327
      %s342 = sphi 0, %s328
      %s346 = sphi 0, %s346
      %s348 = sphi 0, %s346
      %s349 = sphi 0, %s348
      %s363 = sphi 0, %s349
      %s367 = sphi 0, %s367
      %s369 = sphi 0, %s367
      %s370 = sphi 0, %s369
      %s384 = sphi 0, %s370
      %s388 = sphi 0, %s388
      %s390 = sphi 0, %s388
      %s391 = sphi 0, %s390
      %s405 = sphi 0, %s391
      %s409 = sphi 0, %s409
      %s411 = sphi 0, %s409
      %s412 = sphi 0, %s411
      %s426 = sphi 0, %s412
      %s430 = sphi 0, %s430
      %s432 = sphi 0, %s430
      %s433 = sphi 0, %s432
      %s447 = sphi 0, %s433
      %s451 = sphi 0, %s451
      %s453 = sphi 0, %s451
      %s454 = sphi 0, %s453
      %s468 = sphi 0, %s454
      %s472 = sphi 0, %s472
      %s474 = sphi 0, %s472
      %s475 = sphi 0, %s474
      %s489 = sphi 0, %s475
      %s493 = sphi 0, %s493
      %s495 = sphi 0, %s493
      %s496 = sphi 0, %s495
      %s510 = sphi 0, %s496
      %s514 = sphi 0, %s514
      %s516 = sphi 0, %s514
      %s517 = sphi 0, %s516
      %s531 = sphi 0, %s517
      %s535 = sphi 0, %s535
      %s537 = sphi 0, %s535
      %s538 = sphi 0, %s537
      %s552 = sphi 0, %s538
      %s556 = sphi 0, %s556
      %s558 = sphi 0, %s556
      %s559 = sphi 0, %s558
      %s573 = sphi 0, %s559
      %s577 = sphi 0, %s577
      %s579 = sphi 0, %s577
      %s580 = sphi 0, %s579
      %s594 = sphi 0, %s580
      %s598 = sphi 0, %s598
      %s600 = sphi 0, %s598
      %s601 = sphi 0, %s600
      %s615 = sphi 0, %s601
      %s619 = sphi 0, %s619
      %s621 = sphi 0, %s619
      %s622 = sphi 0, %s621
      %s636 = sphi 0, %s622
      %s640 = sphi 0, %s640
      %s642 = sphi 0, %s640
      %s643 = sphi 0, %s642
      %s657 = sphi 0, %s643
      %s661 = sphi 0, %s661
      %s663 = sphi 0, %s661
      %s664 = sphi 0, %s663
      %s678 = sphi 0, %s664
      %s682 = sphi 0, %s682
      %s684 = sphi 0, %s682
      %s685 = sphi 0, %s684
      %s699 = sphi 0, %s685
      %s703 = sphi 0, %s703
      %s705 = sphi 0, %s703
      %s706 = sphi 0, %s705
      %s720 = sphi 0, %s706
      %s724 = sphi 0, %s724
      %s726 = sphi 0, %s724
      %s727 = sphi 0, %s726
      %s741 = sphi 0, %s727
      %s745 = sphi 0, %s745
      %s747 = sphi 0, %s745
      %s748 = sphi 0, %s747
      %s762 = sphi 0, %s748
      %s766 = sphi 0, %s766
      %s768 = sphi 0, %s766
      %s769 = sphi 0, %s768
      %s783 = sphi 0, %s769
      %s787 = sphi 0, %s787
      %s789 = sphi 0, %s787
      %s790 = sphi 0, %s789
      %s804 = sphi 0, %s790
      %s808 = sphi 0, %s808
      %s810 = sphi 0, %s808
      %s811 = sphi 0, %s810
      %s825 = sphi 0, %s811
      %s829 = sphi 0, %s829
      %s831 = sphi 0, %s829
      %s832 = sphi 0, %s831
      %s846 = sphi 0, %s832
      %s850 = sphi 0, %s850
      %s852 = sphi 0, %s850
      %s853 = sphi 0, %s852
      %s867 = sphi 0, %s853
      %s871 = sphi 0, %s871
      %s873 = sphi 0, %s871
      %s874 = sphi 0, %s873
      %s888 = sphi 0, %s874
      %s892 = sphi 0, %s892
      %s894 = sphi 0, %s892
      %s895 = sphi 0, %s894
      %s909 = sphi 0, %s895
      %s913 = sphi 0, %s913
      %s915 = sphi 0, %s913
      %s916 = sphi 0, %s915
      %s930 = sphi 0, %s916
      %s934 = sphi 0, %s934
      %s936 = sphi 0, %s934
      %s937 = sphi 0, %s936
      %s951 = sphi 0, %s937
      %s955 = sphi 0, %s955
      %s957 = sphi 0, %s955
      %s958 = sphi 0, %s957
      %s972 = sphi 0, %s958
      %s976 = sphi 0, %s976
      %s978 = sphi 0, %s976
      %s979 = sphi 0, %s978
      %s993 = sphi 0, %s979
      %s997 = sphi 0, %s997
      %s999 = sphi 0, %s997
      %s1000 = sphi 0, %s999
      %s1014 = sphi 0, %s1000
      %s1018 = sphi 0, %s1018
      %s1020 = sphi 0, %s1018
      %s1021 = sphi 0, %s1020
      %s1035 = sphi 0, %s1021
      %s1039 = sphi 0, %s1039
      %s1041 = sphi 0, %s1039
      %s1042 = sphi 0, %s1041
      %s1056 = sphi 0, %s1042
      %s1060 = sphi 0, %s1060
      %s1062 = sphi 0, %s1060
      %s1063 = sphi 0, %s1062
      %s1077 = sphi 0, %s1063
      %s1081 = sphi 0, %s1081
      %s1083 = sphi 0, %s1081
      %s1084 = sphi 0, %s1083
      %s1098 = sphi 0, %s1084
      %s1102 = sphi 0, %s1102
      %s1104 = sphi 0, %s1102
      %s1105 = sphi 0, %s1104
      %s1119 = sphi 0, %s1105
      %s1123 = sphi 0, %s1123
      %s1125 = sphi 0, %s1123
      %s1126 = sphi 0, %s1125
      %s1140 = sphi 0, %s1126
      %s1144 = sphi 0, %s1144
      %s1146 = sphi 0, %s1144
      %s1147 = sphi 0, %s1146
      %s1161 = sphi 0, %s1147
      %s1165 = sphi 0, %s1165
      %s1167 = sphi 0, %s1165
      %s1168 = sphi 0, %s1167
      %s1182 = sphi 0, %s1168
      %s1186 = sphi 0, %s1186
      %s1188 = sphi 0, %s1186
      %s1189 = sphi 0, %s1188
      %s1203 = sphi 0, %s1189
      %s1207 = sphi 0, %s1207
      %s1209 = sphi 0, %s1207
      %s1210 = sphi 0, %s1209
      %s1224 = sphi 0, %s1210
      %s1228 = sphi 0, %s1228
      %s1230 = sphi 0, %s1228
      %s1231 = sphi 0, %s1230
      %s1245 = sphi 0, %s1231
      %s1249 = sphi 0, %s1249
      %s1251 = sphi 0, %s1249
      %s1252 = sphi 0, %s1251
      %s1266 = sphi 0, %s1252
      %s1270 = sphi 0, %s1270
      %s1272 = sphi 0, %s1270
      %s1273 = sphi 0, %s1272
      %s1287 = sphi 0, %s1273
      %s1291 = sphi 0, %s1291
      %s1293 = sphi 0, %s1291
      %s1294 = sphi 0, %s1293
      %s1308 = sphi 0, %s1294
      %s1312 = sphi 0, %s1312
      %s1314 = sphi 0, %s1312
      %s1315 = sphi 0, %s1314
      %s1329 = sphi 0, %s1315
      %s1333 = sphi 0, %s1333
      %s1335 = sphi 0, %s1333
      %s1336 = sphi 0, %s1335
      %s1350 = sphi 0, %s1336
      %s1354 = sphi 0, %s1354
      %s1356 = sphi 0, %s1354
      %s1357 = sphi 0, %s1356
      %s1371 = sphi 0, %s1357
      %s1375 = sphi 0, %s1375
      %s1377 = sphi 0, %s1375
      %s1378 = sphi 0, %s1377
      %s1392 = sphi 0, %s1378
      %s1396 = sphi 0, %s1396
      %s1398 = sphi 0, %s1396
      %s1399 = sphi 0, %s1398
      %s1413 = sphi 0, %s1399
      %s1417 = sphi 0, %s1417
      %s1419 = sphi 0, %s1417
      %s1420 = sphi 0, %s1419
      %s1434 = sphi 0, %s1420
      %s1438 = sphi 0, %s1438
      %s1440 = sphi 0, %s1438
      %s1441 = sphi 0, %s1440
      %s1455 = sphi 0, %s1441
      %s1459 = sphi 0, %s1459
      %s1461 = sphi 0, %s1459
      %s1462 = sphi 0, %s1461
      %s1476 = sphi 0, %s1462
      %s1480 = sphi 0, %s1480
      %s1482 = sphi 0, %s1480
      %s1483 = sphi 0, %s1482
      %s1497 = sphi 0, %s1483
      %s1501 = sphi 0, %s1501
      %s1503 = sphi 0, %s1501
      %s1504 = sphi 0, %s1503
      %s1518 = sphi 0, %s1504
      %s1522 = sphi 0, %s1522
      %s1524 = sphi 0, %s1522
      %s1525 = sphi 0, %s1524
      %s1539 = sphi 0, %s1525
      %s1543 = sphi 0, %s1543
      %s1545 = sphi 0, %s1543
      %s1546 = sphi 0, %s1545
      %s1560 = sphi 0, %s1546
      %s1564 = sphi 0, %s1564
      %s1566 = sphi 0, %s1564
      %s1567 = sphi 0, %s1566
      %s1581 = sphi 0, %s1567
      %s1585 = sphi 0, %s1585
      %s1587 = sphi 0, %s1585
      %s1588 = sphi 0, %s1587
      %s1602 = sphi 0, %s1588
      %s1606 = sphi 0, %s1606
      %s1608 = sphi 0, %s1606
      %s1609 = sphi 0, %s1608
      %s1623 = sphi 0, %s1609
      %s1627 = sphi 0, %s1627
      %s1629 = sphi 0, %s1627
      %s1630 = sphi 0, %s1629
      %s1644 = sphi 0, %s1630
      %s1648 = sphi 0, %s1648
      %s1650 = sphi 0, %s1648
      %s1651 = sphi 0, %s1650
      %s1665 = sphi 0, %s1651
      %s1671 = sphi 0, %s1673
      %s1674 = sphi 0, %s1671
      %s1675 = sphi 0, %s1674
      %s1691 = sphi 0, %s1675
    $region4: #{forward.1} parent=1 // loop_header_branch
      %168 = sbr.rel (%p166) target = $region8
    $region5: #{forward.1} parent=1 // loop_body
      %s170 = ssub.s32 %s165, 1
      %s171 = ssub.s32 %s165, 2
      %s172 = sadd.s32 %s165, 1
      %s173 = ssub.s32 %s165, %s172
      %p174 = scmp.eq.s32.totalorder %s173, 0
      %s176 = sadd.s32 %s175, 1
      %s177 = scalar_select %p174, %s175, %s176
      %p180 = pneg %p174
      %p181 = scmp.eq.s32.totalorder %s165, 1
      %p182 = por %p180, %p181
      %p183 = scmp.ne.s32.totalorder %s175, %s178
      %p184 = scmp.eq.s32.totalorder %s165, 0
      %p185 = por %p183, %p184
      %p186 = scmp.ne.s32.totalorder %s175, %s178
      %p187 = scmp.eq.s32.totalorder %s170, 1
      %p188 = por %p186, %p187
      %p189 = scmp.ne.s32.totalorder %s178, %s179
      %p190 = scmp.eq.s32.totalorder %s170, 0
      %p191 = por %p189, %p190
      %p192 = scmp.ne.s32.totalorder %s178, %s179
      %p193 = scmp.eq.s32.totalorder %s171, 1
      %p194 = por %p192, %p193
      %p196 = scmp.ne.s32.totalorder %s179, %s195
      %p197 = scmp.eq.s32.totalorder %s171, 0
      %p198 = por %p196, %p197
      %s200 = sadd.s32 %s199, 1
      %p203 = scmp.eq.s32.totalorder %s165, 1
      %p204 = scmp.ne.s32.totalorder %s199, %s201
      %p205 = scmp.eq.s32.totalorder %s165, 0
      %p206 = por %p204, %p205
      %p207 = scmp.ne.s32.totalorder %s199, %s201
      %p208 = scmp.eq.s32.totalorder %s170, 1
      %p209 = por %p207, %p208
      %p210 = scmp.ne.s32.totalorder %s201, %s202
      %p211 = scmp.eq.s32.totalorder %s170, 0
      %p212 = por %p210, %p211
      %p213 = scmp.ne.s32.totalorder %s201, %s202
      %p214 = scmp.eq.s32.totalorder %s171, 1
      %p215 = por %p213, %p214
      %p217 = scmp.ne.s32.totalorder %s202, %s216
      %p218 = scmp.eq.s32.totalorder %s171, 0
      %p219 = por %p217, %p218
      %s221 = sadd.s32 %s220, 1
      %p224 = scmp.eq.s32.totalorder %s165, 1
      %p225 = scmp.ne.s32.totalorder %s220, %s222
      %p226 = scmp.eq.s32.totalorder %s165, 0
      %p227 = por %p225, %p226
      %p228 = scmp.ne.s32.totalorder %s220, %s222
      %p229 = scmp.eq.s32.totalorder %s170, 1
      %p230 = por %p228, %p229
      %p231 = scmp.ne.s32.totalorder %s222, %s223
      %p232 = scmp.eq.s32.totalorder %s170, 0
      %p233 = por %p231, %p232
      %p234 = scmp.ne.s32.totalorder %s222, %s223
      %p235 = scmp.eq.s32.totalorder %s171, 1
      %p236 = por %p234, %p235
      %p238 = scmp.ne.s32.totalorder %s223, %s237
      %p239 = scmp.eq.s32.totalorder %s171, 0
      %p240 = por %p238, %p239
      %s242 = sadd.s32 %s241, 1
      %p245 = scmp.eq.s32.totalorder %s165, 1
      %p246 = scmp.ne.s32.totalorder %s241, %s243
      %p247 = scmp.eq.s32.totalorder %s165, 0
      %p248 = por %p246, %p247
      %p249 = scmp.ne.s32.totalorder %s241, %s243
      %p250 = scmp.eq.s32.totalorder %s170, 1
      %p251 = por %p249, %p250
      %p252 = scmp.ne.s32.totalorder %s243, %s244
      %p253 = scmp.eq.s32.totalorder %s170, 0
      %p254 = por %p252, %p253
      %p255 = scmp.ne.s32.totalorder %s243, %s244
      %p256 = scmp.eq.s32.totalorder %s171, 1
      %p257 = por %p255, %p256
      %p259 = scmp.ne.s32.totalorder %s244, %s258
      %p260 = scmp.eq.s32.totalorder %s171, 0
      %p261 = por %p259, %p260
      %s263 = sadd.s32 %s262, 1
      %p266 = scmp.eq.s32.totalorder %s165, 1
      %p267 = scmp.ne.s32.totalorder %s262, %s264
      %p268 = scmp.eq.s32.totalorder %s165, 0
      %p269 = por %p267, %p268
      %p270 = scmp.ne.s32.totalorder %s262, %s264
      %p271 = scmp.eq.s32.totalorder %s170, 1
      %p272 = por %p270, %p271
      %p273 = scmp.ne.s32.totalorder %s264, %s265
      %p274 = scmp.eq.s32.totalorder %s170, 0
      %p275 = por %p273, %p274
      %p276 = scmp.ne.s32.totalorder %s264, %s265
      %p277 = scmp.eq.s32.totalorder %s171, 1
      %p278 = por %p276, %p277
      %p280 = scmp.ne.s32.totalorder %s265, %s279
      %p281 = scmp.eq.s32.totalorder %s171, 0
      %p282 = por %p280, %p281
      %s284 = sadd.s32 %s283, 1
      %p287 = scmp.eq.s32.totalorder %s165, 1
      %p288 = scmp.ne.s32.totalorder %s283, %s285
      %p289 = scmp.eq.s32.totalorder %s165, 0
      %p290 = por %p288, %p289
      %p291 = scmp.ne.s32.totalorder %s283, %s285
      %p292 = scmp.eq.s32.totalorder %s170, 1
      %p293 = por %p291, %p292
      %p294 = scmp.ne.s32.totalorder %s285, %s286
      %p295 = scmp.eq.s32.totalorder %s170, 0
      %p296 = por %p294, %p295
      %p297 = scmp.ne.s32.totalorder %s285, %s286
      %p298 = scmp.eq.s32.totalorder %s171, 1
      %p299 = por %p297, %p298
      %p301 = scmp.ne.s32.totalorder %s286, %s300
      %p302 = scmp.eq.s32.totalorder %s171, 0
      %p303 = por %p301, %p302
      %s305 = sadd.s32 %s304, 1
      %p308 = scmp.eq.s32.totalorder %s165, 1
      %p309 = scmp.ne.s32.totalorder %s304, %s306
      %p310 = scmp.eq.s32.totalorder %s165, 0
      %p311 = por %p309, %p310
      %p312 = scmp.ne.s32.totalorder %s304, %s306
      %p313 = scmp.eq.s32.totalorder %s170, 1
      %p314 = por %p312, %p313
      %p315 = scmp.ne.s32.totalorder %s306, %s307
      %p316 = scmp.eq.s32.totalorder %s170, 0
      %p317 = por %p315, %p316
      %p318 = scmp.ne.s32.totalorder %s306, %s307
      %p319 = scmp.eq.s32.totalorder %s171, 1
      %p320 = por %p318, %p319
      %p322 = scmp.ne.s32.totalorder %s307, %s321
      %p323 = scmp.eq.s32.totalorder %s171, 0
      %p324 = por %p322, %p323
      %s326 = sadd.s32 %s325, 1
      %p329 = scmp.eq.s32.totalorder %s165, 1
      %p330 = scmp.ne.s32.totalorder %s325, %s327
      %p331 = scmp.eq.s32.totalorder %s165, 0
      %p332 = por %p330, %p331
      %p333 = scmp.ne.s32.totalorder %s325, %s327
      %p334 = scmp.eq.s32.totalorder %s170, 1
      %p335 = por %p333, %p334
      %p336 = scmp.ne.s32.totalorder %s327, %s328
      %p337 = scmp.eq.s32.totalorder %s170, 0
      %p338 = por %p336, %p337
      %p339 = scmp.ne.s32.totalorder %s327, %s328
      %p340 = scmp.eq.s32.totalorder %s171, 1
      %p341 = por %p339, %p340
      %p343 = scmp.ne.s32.totalorder %s328, %s342
      %p344 = scmp.eq.s32.totalorder %s171, 0
      %p345 = por %p343, %p344
      %s347 = sadd.s32 %s346, 1
      %p350 = scmp.eq.s32.totalorder %s165, 1
      %p351 = scmp.ne.s32.totalorder %s346, %s348
      %p352 = scmp.eq.s32.totalorder %s165, 0
      %p353 = por %p351, %p352
      %p354 = scmp.ne.s32.totalorder %s346, %s348
      %p355 = scmp.eq.s32.totalorder %s170, 1
      %p356 = por %p354, %p355
      %p357 = scmp.ne.s32.totalorder %s348, %s349
      %p358 = scmp.eq.s32.totalorder %s170, 0
      %p359 = por %p357, %p358
      %p360 = scmp.ne.s32.totalorder %s348, %s349
      %p361 = scmp.eq.s32.totalorder %s171, 1
      %p362 = por %p360, %p361
      %p364 = scmp.ne.s32.totalorder %s349, %s363
      %p365 = scmp.eq.s32.totalorder %s171, 0
      %p366 = por %p364, %p365
      %s368 = sadd.s32 %s367, 1
      %p371 = scmp.eq.s32.totalorder %s165, 1
      %p372 = scmp.ne.s32.totalorder %s367, %s369
      %p373 = scmp.eq.s32.totalorder %s165, 0
      %p374 = por %p372, %p373
      %p375 = scmp.ne.s32.totalorder %s367, %s369
      %p376 = scmp.eq.s32.totalorder %s170, 1
      %p377 = por %p375, %p376
      %p378 = scmp.ne.s32.totalorder %s369, %s370
      %p379 = scmp.eq.s32.totalorder %s170, 0
      %p380 = por %p378, %p379
      %p381 = scmp.ne.s32.totalorder %s369, %s370
      %p382 = scmp.eq.s32.totalorder %s171, 1
      %p383 = por %p381, %p382
      %p385 = scmp.ne.s32.totalorder %s370, %s384
      %p386 = scmp.eq.s32.totalorder %s171, 0
      %p387 = por %p385, %p386
      %s389 = sadd.s32 %s388, 1
      %p392 = scmp.eq.s32.totalorder %s165, 1
      %p393 = scmp.ne.s32.totalorder %s388, %s390
      %p394 = scmp.eq.s32.totalorder %s165, 0
      %p395 = por %p393, %p394
      %p396 = scmp.ne.s32.totalorder %s388, %s390
      %p397 = scmp.eq.s32.totalorder %s170, 1
      %p398 = por %p396, %p397
      %p399 = scmp.ne.s32.totalorder %s390, %s391
      %p400 = scmp.eq.s32.totalorder %s170, 0
      %p401 = por %p399, %p400
      %p402 = scmp.ne.s32.totalorder %s390, %s391
      %p403 = scmp.eq.s32.totalorder %s171, 1
      %p404 = por %p402, %p403
      %p406 = scmp.ne.s32.totalorder %s391, %s405
      %p407 = scmp.eq.s32.totalorder %s171, 0
      %p408 = por %p406, %p407
      %s410 = sadd.s32 %s409, 1
      %p413 = scmp.eq.s32.totalorder %s165, 1
      %p414 = scmp.ne.s32.totalorder %s409, %s411
      %p415 = scmp.eq.s32.totalorder %s165, 0
      %p416 = por %p414, %p415
      %p417 = scmp.ne.s32.totalorder %s409, %s411
      %p418 = scmp.eq.s32.totalorder %s170, 1
      %p419 = por %p417, %p418
      %p420 = scmp.ne.s32.totalorder %s411, %s412
      %p421 = scmp.eq.s32.totalorder %s170, 0
      %p422 = por %p420, %p421
      %p423 = scmp.ne.s32.totalorder %s411, %s412
      %p424 = scmp.eq.s32.totalorder %s171, 1
      %p425 = por %p423, %p424
      %p427 = scmp.ne.s32.totalorder %s412, %s426
      %p428 = scmp.eq.s32.totalorder %s171, 0
      %p429 = por %p427, %p428
      %s431 = sadd.s32 %s430, 1
      %p434 = scmp.eq.s32.totalorder %s165, 1
      %p435 = scmp.ne.s32.totalorder %s430, %s432
      %p436 = scmp.eq.s32.totalorder %s165, 0
      %p437 = por %p435, %p436
      %p438 = scmp.ne.s32.totalorder %s430, %s432
      %p439 = scmp.eq.s32.totalorder %s170, 1
      %p440 = por %p438, %p439
      %p441 = scmp.ne.s32.totalorder %s432, %s433
      %p442 = scmp.eq.s32.totalorder %s170, 0
      %p443 = por %p441, %p442
      %p444 = scmp.ne.s32.totalorder %s432, %s433
      %p445 = scmp.eq.s32.totalorder %s171, 1
      %p446 = por %p444, %p445
      %p448 = scmp.ne.s32.totalorder %s433, %s447
      %p449 = scmp.eq.s32.totalorder %s171, 0
      %p450 = por %p448, %p449
      %s452 = sadd.s32 %s451, 1
      %p455 = scmp.eq.s32.totalorder %s165, 1
      %p456 = scmp.ne.s32.totalorder %s451, %s453
      %p457 = scmp.eq.s32.totalorder %s165, 0
      %p458 = por %p456, %p457
      %p459 = scmp.ne.s32.totalorder %s451, %s453
      %p460 = scmp.eq.s32.totalorder %s170, 1
      %p461 = por %p459, %p460
      %p462 = scmp.ne.s32.totalorder %s453, %s454
      %p463 = scmp.eq.s32.totalorder %s170, 0
      %p464 = por %p462, %p463
      %p465 = scmp.ne.s32.totalorder %s453, %s454
      %p466 = scmp.eq.s32.totalorder %s171, 1
      %p467 = por %p465, %p466
      %p469 = scmp.ne.s32.totalorder %s454, %s468
      %p470 = scmp.eq.s32.totalorder %s171, 0
      %p471 = por %p469, %p470
      %s473 = sadd.s32 %s472, 1
      %p476 = scmp.eq.s32.totalorder %s165, 1
      %p477 = scmp.ne.s32.totalorder %s472, %s474
      %p478 = scmp.eq.s32.totalorder %s165, 0
      %p479 = por %p477, %p478
      %p480 = scmp.ne.s32.totalorder %s472, %s474
      %p481 = scmp.eq.s32.totalorder %s170, 1
      %p482 = por %p480, %p481
      %p483 = scmp.ne.s32.totalorder %s474, %s475
      %p484 = scmp.eq.s32.totalorder %s170, 0
      %p485 = por %p483, %p484
      %p486 = scmp.ne.s32.totalorder %s474, %s475
      %p487 = scmp.eq.s32.totalorder %s171, 1
      %p488 = por %p486, %p487
      %p490 = scmp.ne.s32.totalorder %s475, %s489
      %p491 = scmp.eq.s32.totalorder %s171, 0
      %p492 = por %p490, %p491
      %s494 = sadd.s32 %s493, 1
      %p497 = scmp.eq.s32.totalorder %s165, 1
      %p498 = scmp.ne.s32.totalorder %s493, %s495
      %p499 = scmp.eq.s32.totalorder %s165, 0
      %p500 = por %p498, %p499
      %p501 = scmp.ne.s32.totalorder %s493, %s495
      %p502 = scmp.eq.s32.totalorder %s170, 1
      %p503 = por %p501, %p502
      %p504 = scmp.ne.s32.totalorder %s495, %s496
      %p505 = scmp.eq.s32.totalorder %s170, 0
      %p506 = por %p504, %p505
      %p507 = scmp.ne.s32.totalorder %s495, %s496
      %p508 = scmp.eq.s32.totalorder %s171, 1
      %p509 = por %p507, %p508
      %p511 = scmp.ne.s32.totalorder %s496, %s510
      %p512 = scmp.eq.s32.totalorder %s171, 0
      %p513 = por %p511, %p512
      %s515 = sadd.s32 %s514, 1
      %p518 = scmp.eq.s32.totalorder %s165, 1
      %p519 = scmp.ne.s32.totalorder %s514, %s516
      %p520 = scmp.eq.s32.totalorder %s165, 0
      %p521 = por %p519, %p520
      %p522 = scmp.ne.s32.totalorder %s514, %s516
      %p523 = scmp.eq.s32.totalorder %s170, 1
      %p524 = por %p522, %p523
      %p525 = scmp.ne.s32.totalorder %s516, %s517
      %p526 = scmp.eq.s32.totalorder %s170, 0
      %p527 = por %p525, %p526
      %p528 = scmp.ne.s32.totalorder %s516, %s517
      %p529 = scmp.eq.s32.totalorder %s171, 1
      %p530 = por %p528, %p529
      %p532 = scmp.ne.s32.totalorder %s517, %s531
      %p533 = scmp.eq.s32.totalorder %s171, 0
      %p534 = por %p532, %p533
      %s536 = sadd.s32 %s535, 1
      %p539 = scmp.eq.s32.totalorder %s165, 1
      %p540 = scmp.ne.s32.totalorder %s535, %s537
      %p541 = scmp.eq.s32.totalorder %s165, 0
      %p542 = por %p540, %p541
      %p543 = scmp.ne.s32.totalorder %s535, %s537
      %p544 = scmp.eq.s32.totalorder %s170, 1
      %p545 = por %p543, %p544
      %p546 = scmp.ne.s32.totalorder %s537, %s538
      %p547 = scmp.eq.s32.totalorder %s170, 0
      %p548 = por %p546, %p547
      %p549 = scmp.ne.s32.totalorder %s537, %s538
      %p550 = scmp.eq.s32.totalorder %s171, 1
      %p551 = por %p549, %p550
      %p553 = scmp.ne.s32.totalorder %s538, %s552
      %p554 = scmp.eq.s32.totalorder %s171, 0
      %p555 = por %p553, %p554
      %s557 = sadd.s32 %s556, 1
      %p560 = scmp.eq.s32.totalorder %s165, 1
      %p561 = scmp.ne.s32.totalorder %s556, %s558
      %p562 = scmp.eq.s32.totalorder %s165, 0
      %p563 = por %p561, %p562
      %p564 = scmp.ne.s32.totalorder %s556, %s558
      %p565 = scmp.eq.s32.totalorder %s170, 1
      %p566 = por %p564, %p565
      %p567 = scmp.ne.s32.totalorder %s558, %s559
      %p568 = scmp.eq.s32.totalorder %s170, 0
      %p569 = por %p567, %p568
      %p570 = scmp.ne.s32.totalorder %s558, %s559
      %p571 = scmp.eq.s32.totalorder %s171, 1
      %p572 = por %p570, %p571
      %p574 = scmp.ne.s32.totalorder %s559, %s573
      %p575 = scmp.eq.s32.totalorder %s171, 0
      %p576 = por %p574, %p575
      %s578 = sadd.s32 %s577, 1
      %p581 = scmp.eq.s32.totalorder %s165, 1
      %p582 = scmp.ne.s32.totalorder %s577, %s579
      %p583 = scmp.eq.s32.totalorder %s165, 0
      %p584 = por %p582, %p583
      %p585 = scmp.ne.s32.totalorder %s577, %s579
      %p586 = scmp.eq.s32.totalorder %s170, 1
      %p587 = por %p585, %p586
      %p588 = scmp.ne.s32.totalorder %s579, %s580
      %p589 = scmp.eq.s32.totalorder %s170, 0
      %p590 = por %p588, %p589
      %p591 = scmp.ne.s32.totalorder %s579, %s580
      %p592 = scmp.eq.s32.totalorder %s171, 1
      %p593 = por %p591, %p592
      %p595 = scmp.ne.s32.totalorder %s580, %s594
      %p596 = scmp.eq.s32.totalorder %s171, 0
      %p597 = por %p595, %p596
      %s599 = sadd.s32 %s598, 1
      %p602 = scmp.eq.s32.totalorder %s165, 1
      %p603 = scmp.ne.s32.totalorder %s598, %s600
      %p604 = scmp.eq.s32.totalorder %s165, 0
      %p605 = por %p603, %p604
      %p606 = scmp.ne.s32.totalorder %s598, %s600
      %p607 = scmp.eq.s32.totalorder %s170, 1
      %p608 = por %p606, %p607
      %p609 = scmp.ne.s32.totalorder %s600, %s601
      %p610 = scmp.eq.s32.totalorder %s170, 0
      %p611 = por %p609, %p610
      %p612 = scmp.ne.s32.totalorder %s600, %s601
      %p613 = scmp.eq.s32.totalorder %s171, 1
      %p614 = por %p612, %p613
      %p616 = scmp.ne.s32.totalorder %s601, %s615
      %p617 = scmp.eq.s32.totalorder %s171, 0
      %p618 = por %p616, %p617
      %s620 = sadd.s32 %s619, 1
      %p623 = scmp.eq.s32.totalorder %s165, 1
      %p624 = scmp.ne.s32.totalorder %s619, %s621
      %p625 = scmp.eq.s32.totalorder %s165, 0
      %p626 = por %p624, %p625
      %p627 = scmp.ne.s32.totalorder %s619, %s621
      %p628 = scmp.eq.s32.totalorder %s170, 1
      %p629 = por %p627, %p628
      %p630 = scmp.ne.s32.totalorder %s621, %s622
      %p631 = scmp.eq.s32.totalorder %s170, 0
      %p632 = por %p630, %p631
      %p633 = scmp.ne.s32.totalorder %s621, %s622
      %p634 = scmp.eq.s32.totalorder %s171, 1
      %p635 = por %p633, %p634
      %p637 = scmp.ne.s32.totalorder %s622, %s636
      %p638 = scmp.eq.s32.totalorder %s171, 0
      %p639 = por %p637, %p638
      %s641 = sadd.s32 %s640, 1
      %p644 = scmp.eq.s32.totalorder %s165, 1
      %p645 = scmp.ne.s32.totalorder %s640, %s642
      %p646 = scmp.eq.s32.totalorder %s165, 0
      %p647 = por %p645, %p646
      %p648 = scmp.ne.s32.totalorder %s640, %s642
      %p649 = scmp.eq.s32.totalorder %s170, 1
      %p650 = por %p648, %p649
      %p651 = scmp.ne.s32.totalorder %s642, %s643
      %p652 = scmp.eq.s32.totalorder %s170, 0
      %p653 = por %p651, %p652
      %p654 = scmp.ne.s32.totalorder %s642, %s643
      %p655 = scmp.eq.s32.totalorder %s171, 1
      %p656 = por %p654, %p655
      %p658 = scmp.ne.s32.totalorder %s643, %s657
      %p659 = scmp.eq.s32.totalorder %s171, 0
      %p660 = por %p658, %p659
      %s662 = sadd.s32 %s661, 1
      %p665 = scmp.eq.s32.totalorder %s165, 1
      %p666 = scmp.ne.s32.totalorder %s661, %s663
      %p667 = scmp.eq.s32.totalorder %s165, 0
      %p668 = por %p666, %p667
      %p669 = scmp.ne.s32.totalorder %s661, %s663
      %p670 = scmp.eq.s32.totalorder %s170, 1
      %p671 = por %p669, %p670
      %p672 = scmp.ne.s32.totalorder %s663, %s664
      %p673 = scmp.eq.s32.totalorder %s170, 0
      %p674 = por %p672, %p673
      %p675 = scmp.ne.s32.totalorder %s663, %s664
      %p676 = scmp.eq.s32.totalorder %s171, 1
      %p677 = por %p675, %p676
      %p679 = scmp.ne.s32.totalorder %s664, %s678
      %p680 = scmp.eq.s32.totalorder %s171, 0
      %p681 = por %p679, %p680
      %s683 = sadd.s32 %s682, 1
      %p686 = scmp.eq.s32.totalorder %s165, 1
      %p687 = scmp.ne.s32.totalorder %s682, %s684
      %p688 = scmp.eq.s32.totalorder %s165, 0
      %p689 = por %p687, %p688
      %p690 = scmp.ne.s32.totalorder %s682, %s684
      %p691 = scmp.eq.s32.totalorder %s170, 1
      %p692 = por %p690, %p691
      %p693 = scmp.ne.s32.totalorder %s684, %s685
      %p694 = scmp.eq.s32.totalorder %s170, 0
      %p695 = por %p693, %p694
      %p696 = scmp.ne.s32.totalorder %s684, %s685
      %p697 = scmp.eq.s32.totalorder %s171, 1
      %p698 = por %p696, %p697
      %p700 = scmp.ne.s32.totalorder %s685, %s699
      %p701 = scmp.eq.s32.totalorder %s171, 0
      %p702 = por %p700, %p701
      %s704 = sadd.s32 %s703, 1
      %p707 = scmp.eq.s32.totalorder %s165, 1
      %p708 = scmp.ne.s32.totalorder %s703, %s705
      %p709 = scmp.eq.s32.totalorder %s165, 0
      %p710 = por %p708, %p709
      %p711 = scmp.ne.s32.totalorder %s703, %s705
      %p712 = scmp.eq.s32.totalorder %s170, 1
      %p713 = por %p711, %p712
      %p714 = scmp.ne.s32.totalorder %s705, %s706
      %p715 = scmp.eq.s32.totalorder %s170, 0
      %p716 = por %p714, %p715
      %p717 = scmp.ne.s32.totalorder %s705, %s706
      %p718 = scmp.eq.s32.totalorder %s171, 1
      %p719 = por %p717, %p718
      %p721 = scmp.ne.s32.totalorder %s706, %s720
      %p722 = scmp.eq.s32.totalorder %s171, 0
      %p723 = por %p721, %p722
      %s725 = sadd.s32 %s724, 1
      %p728 = scmp.eq.s32.totalorder %s165, 1
      %p729 = scmp.ne.s32.totalorder %s724, %s726
      %p730 = scmp.eq.s32.totalorder %s165, 0
      %p731 = por %p729, %p730
      %p732 = scmp.ne.s32.totalorder %s724, %s726
      %p733 = scmp.eq.s32.totalorder %s170, 1
      %p734 = por %p732, %p733
      %p735 = scmp.ne.s32.totalorder %s726, %s727
      %p736 = scmp.eq.s32.totalorder %s170, 0
      %p737 = por %p735, %p736
      %p738 = scmp.ne.s32.totalorder %s726, %s727
      %p739 = scmp.eq.s32.totalorder %s171, 1
      %p740 = por %p738, %p739
      %p742 = scmp.ne.s32.totalorder %s727, %s741
      %p743 = scmp.eq.s32.totalorder %s171, 0
      %p744 = por %p742, %p743
      %s746 = sadd.s32 %s745, 1
      %p749 = scmp.eq.s32.totalorder %s165, 1
      %p750 = scmp.ne.s32.totalorder %s745, %s747
      %p751 = scmp.eq.s32.totalorder %s165, 0
      %p752 = por %p750, %p751
      %p753 = scmp.ne.s32.totalorder %s745, %s747
      %p754 = scmp.eq.s32.totalorder %s170, 1
      %p755 = por %p753, %p754
      %p756 = scmp.ne.s32.totalorder %s747, %s748
      %p757 = scmp.eq.s32.totalorder %s170, 0
      %p758 = por %p756, %p757
      %p759 = scmp.ne.s32.totalorder %s747, %s748
      %p760 = scmp.eq.s32.totalorder %s171, 1
      %p761 = por %p759, %p760
      %p763 = scmp.ne.s32.totalorder %s748, %s762
      %p764 = scmp.eq.s32.totalorder %s171, 0
      %p765 = por %p763, %p764
      %s767 = sadd.s32 %s766, 1
      %p770 = scmp.eq.s32.totalorder %s165, 1
      %p771 = scmp.ne.s32.totalorder %s766, %s768
      %p772 = scmp.eq.s32.totalorder %s165, 0
      %p773 = por %p771, %p772
      %p774 = scmp.ne.s32.totalorder %s766, %s768
      %p775 = scmp.eq.s32.totalorder %s170, 1
      %p776 = por %p774, %p775
      %p777 = scmp.ne.s32.totalorder %s768, %s769
      %p778 = scmp.eq.s32.totalorder %s170, 0
      %p779 = por %p777, %p778
      %p780 = scmp.ne.s32.totalorder %s768, %s769
      %p781 = scmp.eq.s32.totalorder %s171, 1
      %p782 = por %p780, %p781
      %p784 = scmp.ne.s32.totalorder %s769, %s783
      %p785 = scmp.eq.s32.totalorder %s171, 0
      %p786 = por %p784, %p785
      %s788 = sadd.s32 %s787, 1
      %p791 = scmp.eq.s32.totalorder %s165, 1
      %p792 = scmp.ne.s32.totalorder %s787, %s789
      %p793 = scmp.eq.s32.totalorder %s165, 0
      %p794 = por %p792, %p793
      %p795 = scmp.ne.s32.totalorder %s787, %s789
      %p796 = scmp.eq.s32.totalorder %s170, 1
      %p797 = por %p795, %p796
      %p798 = scmp.ne.s32.totalorder %s789, %s790
      %p799 = scmp.eq.s32.totalorder %s170, 0
      %p800 = por %p798, %p799
      %p801 = scmp.ne.s32.totalorder %s789, %s790
      %p802 = scmp.eq.s32.totalorder %s171, 1
      %p803 = por %p801, %p802
      %p805 = scmp.ne.s32.totalorder %s790, %s804
      %p806 = scmp.eq.s32.totalorder %s171, 0
      %p807 = por %p805, %p806
      %s809 = sadd.s32 %s808, 1
      %p812 = scmp.eq.s32.totalorder %s165, 1
      %p813 = scmp.ne.s32.totalorder %s808, %s810
      %p814 = scmp.eq.s32.totalorder %s165, 0
      %p815 = por %p813, %p814
      %p816 = scmp.ne.s32.totalorder %s808, %s810
      %p817 = scmp.eq.s32.totalorder %s170, 1
      %p818 = por %p816, %p817
      %p819 = scmp.ne.s32.totalorder %s810, %s811
      %p820 = scmp.eq.s32.totalorder %s170, 0
      %p821 = por %p819, %p820
      %p822 = scmp.ne.s32.totalorder %s810, %s811
      %p823 = scmp.eq.s32.totalorder %s171, 1
      %p824 = por %p822, %p823
      %p826 = scmp.ne.s32.totalorder %s811, %s825
      %p827 = scmp.eq.s32.totalorder %s171, 0
      %p828 = por %p826, %p827
      %s830 = sadd.s32 %s829, 1
      %p833 = scmp.eq.s32.totalorder %s165, 1
      %p834 = scmp.ne.s32.totalorder %s829, %s831
      %p835 = scmp.eq.s32.totalorder %s165, 0
      %p836 = por %p834, %p835
      %p837 = scmp.ne.s32.totalorder %s829, %s831
      %p838 = scmp.eq.s32.totalorder %s170, 1
      %p839 = por %p837, %p838
      %p840 = scmp.ne.s32.totalorder %s831, %s832
      %p841 = scmp.eq.s32.totalorder %s170, 0
      %p842 = por %p840, %p841
      %p843 = scmp.ne.s32.totalorder %s831, %s832
      %p844 = scmp.eq.s32.totalorder %s171, 1
      %p845 = por %p843, %p844
      %p847 = scmp.ne.s32.totalorder %s832, %s846
      %p848 = scmp.eq.s32.totalorder %s171, 0
      %p849 = por %p847, %p848
      %s851 = sadd.s32 %s850, 1
      %p854 = scmp.eq.s32.totalorder %s165, 1
      %p855 = scmp.ne.s32.totalorder %s850, %s852
      %p856 = scmp.eq.s32.totalorder %s165, 0
      %p857 = por %p855, %p856
      %p858 = scmp.ne.s32.totalorder %s850, %s852
      %p859 = scmp.eq.s32.totalorder %s170, 1
      %p860 = por %p858, %p859
      %p861 = scmp.ne.s32.totalorder %s852, %s853
      %p862 = scmp.eq.s32.totalorder %s170, 0
      %p863 = por %p861, %p862
      %p864 = scmp.ne.s32.totalorder %s852, %s853
      %p865 = scmp.eq.s32.totalorder %s171, 1
      %p866 = por %p864, %p865
      %p868 = scmp.ne.s32.totalorder %s853, %s867
      %p869 = scmp.eq.s32.totalorder %s171, 0
      %p870 = por %p868, %p869
      %s872 = sadd.s32 %s871, 1
      %p875 = scmp.eq.s32.totalorder %s165, 1
      %p876 = scmp.ne.s32.totalorder %s871, %s873
      %p877 = scmp.eq.s32.totalorder %s165, 0
      %p878 = por %p876, %p877
      %p879 = scmp.ne.s32.totalorder %s871, %s873
      %p880 = scmp.eq.s32.totalorder %s170, 1
      %p881 = por %p879, %p880
      %p882 = scmp.ne.s32.totalorder %s873, %s874
      %p883 = scmp.eq.s32.totalorder %s170, 0
      %p884 = por %p882, %p883
      %p885 = scmp.ne.s32.totalorder %s873, %s874
      %p886 = scmp.eq.s32.totalorder %s171, 1
      %p887 = por %p885, %p886
      %p889 = scmp.ne.s32.totalorder %s874, %s888
      %p890 = scmp.eq.s32.totalorder %s171, 0
      %p891 = por %p889, %p890
      %s893 = sadd.s32 %s892, 1
      %p896 = scmp.eq.s32.totalorder %s165, 1
      %p897 = scmp.ne.s32.totalorder %s892, %s894
      %p898 = scmp.eq.s32.totalorder %s165, 0
      %p899 = por %p897, %p898
      %p900 = scmp.ne.s32.totalorder %s892, %s894
      %p901 = scmp.eq.s32.totalorder %s170, 1
      %p902 = por %p900, %p901
      %p903 = scmp.ne.s32.totalorder %s894, %s895
      %p904 = scmp.eq.s32.totalorder %s170, 0
      %p905 = por %p903, %p904
      %p906 = scmp.ne.s32.totalorder %s894, %s895
      %p907 = scmp.eq.s32.totalorder %s171, 1
      %p908 = por %p906, %p907
      %p910 = scmp.ne.s32.totalorder %s895, %s909
      %p911 = scmp.eq.s32.totalorder %s171, 0
      %p912 = por %p910, %p911
      %s914 = sadd.s32 %s913, 1
      %p917 = scmp.eq.s32.totalorder %s165, 1
      %p918 = scmp.ne.s32.totalorder %s913, %s915
      %p919 = scmp.eq.s32.totalorder %s165, 0
      %p920 = por %p918, %p919
      %p921 = scmp.ne.s32.totalorder %s913, %s915
      %p922 = scmp.eq.s32.totalorder %s170, 1
      %p923 = por %p921, %p922
      %p924 = scmp.ne.s32.totalorder %s915, %s916
      %p925 = scmp.eq.s32.totalorder %s170, 0
      %p926 = por %p924, %p925
      %p927 = scmp.ne.s32.totalorder %s915, %s916
      %p928 = scmp.eq.s32.totalorder %s171, 1
      %p929 = por %p927, %p928
      %p931 = scmp.ne.s32.totalorder %s916, %s930
      %p932 = scmp.eq.s32.totalorder %s171, 0
      %p933 = por %p931, %p932
      %s935 = sadd.s32 %s934, 1
      %p938 = scmp.eq.s32.totalorder %s165, 1
      %p939 = scmp.ne.s32.totalorder %s934, %s936
      %p940 = scmp.eq.s32.totalorder %s165, 0
      %p941 = por %p939, %p940
      %p942 = scmp.ne.s32.totalorder %s934, %s936
      %p943 = scmp.eq.s32.totalorder %s170, 1
      %p944 = por %p942, %p943
      %p945 = scmp.ne.s32.totalorder %s936, %s937
      %p946 = scmp.eq.s32.totalorder %s170, 0
      %p947 = por %p945, %p946
      %p948 = scmp.ne.s32.totalorder %s936, %s937
      %p949 = scmp.eq.s32.totalorder %s171, 1
      %p950 = por %p948, %p949
      %p952 = scmp.ne.s32.totalorder %s937, %s951
      %p953 = scmp.eq.s32.totalorder %s171, 0
      %p954 = por %p952, %p953
      %s956 = sadd.s32 %s955, 1
      %p959 = scmp.eq.s32.totalorder %s165, 1
      %p960 = scmp.ne.s32.totalorder %s955, %s957
      %p961 = scmp.eq.s32.totalorder %s165, 0
      %p962 = por %p960, %p961
      %p963 = scmp.ne.s32.totalorder %s955, %s957
      %p964 = scmp.eq.s32.totalorder %s170, 1
      %p965 = por %p963, %p964
      %p966 = scmp.ne.s32.totalorder %s957, %s958
      %p967 = scmp.eq.s32.totalorder %s170, 0
      %p968 = por %p966, %p967
      %p969 = scmp.ne.s32.totalorder %s957, %s958
      %p970 = scmp.eq.s32.totalorder %s171, 1
      %p971 = por %p969, %p970
      %p973 = scmp.ne.s32.totalorder %s958, %s972
      %p974 = scmp.eq.s32.totalorder %s171, 0
      %p975 = por %p973, %p974
      %s977 = sadd.s32 %s976, 1
      %p980 = scmp.eq.s32.totalorder %s165, 1
      %p981 = scmp.ne.s32.totalorder %s976, %s978
      %p982 = scmp.eq.s32.totalorder %s165, 0
      %p983 = por %p981, %p982
      %p984 = scmp.ne.s32.totalorder %s976, %s978
      %p985 = scmp.eq.s32.totalorder %s170, 1
      %p986 = por %p984, %p985
      %p987 = scmp.ne.s32.totalorder %s978, %s979
      %p988 = scmp.eq.s32.totalorder %s170, 0
      %p989 = por %p987, %p988
      %p990 = scmp.ne.s32.totalorder %s978, %s979
      %p991 = scmp.eq.s32.totalorder %s171, 1
      %p992 = por %p990, %p991
      %p994 = scmp.ne.s32.totalorder %s979, %s993
      %p995 = scmp.eq.s32.totalorder %s171, 0
      %p996 = por %p994, %p995
      %s998 = sadd.s32 %s997, 1
      %p1001 = scmp.eq.s32.totalorder %s165, 1
      %p1002 = scmp.ne.s32.totalorder %s997, %s999
      %p1003 = scmp.eq.s32.totalorder %s165, 0
      %p1004 = por %p1002, %p1003
      %p1005 = scmp.ne.s32.totalorder %s997, %s999
      %p1006 = scmp.eq.s32.totalorder %s170, 1
      %p1007 = por %p1005, %p1006
      %p1008 = scmp.ne.s32.totalorder %s999, %s1000
      %p1009 = scmp.eq.s32.totalorder %s170, 0
      %p1010 = por %p1008, %p1009
      %p1011 = scmp.ne.s32.totalorder %s999, %s1000
      %p1012 = scmp.eq.s32.totalorder %s171, 1
      %p1013 = por %p1011, %p1012
      %p1015 = scmp.ne.s32.totalorder %s1000, %s1014
      %p1016 = scmp.eq.s32.totalorder %s171, 0
      %p1017 = por %p1015, %p1016
      %s1019 = sadd.s32 %s1018, 1
      %p1022 = scmp.eq.s32.totalorder %s165, 1
      %p1023 = scmp.ne.s32.totalorder %s1018, %s1020
      %p1024 = scmp.eq.s32.totalorder %s165, 0
      %p1025 = por %p1023, %p1024
      %p1026 = scmp.ne.s32.totalorder %s1018, %s1020
      %p1027 = scmp.eq.s32.totalorder %s170, 1
      %p1028 = por %p1026, %p1027
      %p1029 = scmp.ne.s32.totalorder %s1020, %s1021
      %p1030 = scmp.eq.s32.totalorder %s170, 0
      %p1031 = por %p1029, %p1030
      %p1032 = scmp.ne.s32.totalorder %s1020, %s1021
      %p1033 = scmp.eq.s32.totalorder %s171, 1
      %p1034 = por %p1032, %p1033
      %p1036 = scmp.ne.s32.totalorder %s1021, %s1035
      %p1037 = scmp.eq.s32.totalorder %s171, 0
      %p1038 = por %p1036, %p1037
      %s1040 = sadd.s32 %s1039, 1
      %p1043 = scmp.eq.s32.totalorder %s165, 1
      %p1044 = scmp.ne.s32.totalorder %s1039, %s1041
      %p1045 = scmp.eq.s32.totalorder %s165, 0
      %p1046 = por %p1044, %p1045
      %p1047 = scmp.ne.s32.totalorder %s1039, %s1041
      %p1048 = scmp.eq.s32.totalorder %s170, 1
      %p1049 = por %p1047, %p1048
      %p1050 = scmp.ne.s32.totalorder %s1041, %s1042
      %p1051 = scmp.eq.s32.totalorder %s170, 0
      %p1052 = por %p1050, %p1051
      %p1053 = scmp.ne.s32.totalorder %s1041, %s1042
      %p1054 = scmp.eq.s32.totalorder %s171, 1
      %p1055 = por %p1053, %p1054
      %p1057 = scmp.ne.s32.totalorder %s1042, %s1056
      %p1058 = scmp.eq.s32.totalorder %s171, 0
      %p1059 = por %p1057, %p1058
      %s1061 = sadd.s32 %s1060, 1
      %p1064 = scmp.eq.s32.totalorder %s165, 1
      %p1065 = scmp.ne.s32.totalorder %s1060, %s1062
      %p1066 = scmp.eq.s32.totalorder %s165, 0
      %p1067 = por %p1065, %p1066
      %p1068 = scmp.ne.s32.totalorder %s1060, %s1062
      %p1069 = scmp.eq.s32.totalorder %s170, 1
      %p1070 = por %p1068, %p1069
      %p1071 = scmp.ne.s32.totalorder %s1062, %s1063
      %p1072 = scmp.eq.s32.totalorder %s170, 0
      %p1073 = por %p1071, %p1072
      %p1074 = scmp.ne.s32.totalorder %s1062, %s1063
      %p1075 = scmp.eq.s32.totalorder %s171, 1
      %p1076 = por %p1074, %p1075
      %p1078 = scmp.ne.s32.totalorder %s1063, %s1077
      %p1079 = scmp.eq.s32.totalorder %s171, 0
      %p1080 = por %p1078, %p1079
      %s1082 = sadd.s32 %s1081, 1
      %p1085 = scmp.eq.s32.totalorder %s165, 1
      %p1086 = scmp.ne.s32.totalorder %s1081, %s1083
      %p1087 = scmp.eq.s32.totalorder %s165, 0
      %p1088 = por %p1086, %p1087
      %p1089 = scmp.ne.s32.totalorder %s1081, %s1083
      %p1090 = scmp.eq.s32.totalorder %s170, 1
      %p1091 = por %p1089, %p1090
      %p1092 = scmp.ne.s32.totalorder %s1083, %s1084
      %p1093 = scmp.eq.s32.totalorder %s170, 0
      %p1094 = por %p1092, %p1093
      %p1095 = scmp.ne.s32.totalorder %s1083, %s1084
      %p1096 = scmp.eq.s32.totalorder %s171, 1
      %p1097 = por %p1095, %p1096
      %p1099 = scmp.ne.s32.totalorder %s1084, %s1098
      %p1100 = scmp.eq.s32.totalorder %s171, 0
      %p1101 = por %p1099, %p1100
      %s1103 = sadd.s32 %s1102, 1
      %p1106 = scmp.eq.s32.totalorder %s165, 1
      %p1107 = scmp.ne.s32.totalorder %s1102, %s1104
      %p1108 = scmp.eq.s32.totalorder %s165, 0
      %p1109 = por %p1107, %p1108
      %p1110 = scmp.ne.s32.totalorder %s1102, %s1104
      %p1111 = scmp.eq.s32.totalorder %s170, 1
      %p1112 = por %p1110, %p1111
      %p1113 = scmp.ne.s32.totalorder %s1104, %s1105
      %p1114 = scmp.eq.s32.totalorder %s170, 0
      %p1115 = por %p1113, %p1114
      %p1116 = scmp.ne.s32.totalorder %s1104, %s1105
      %p1117 = scmp.eq.s32.totalorder %s171, 1
      %p1118 = por %p1116, %p1117
      %p1120 = scmp.ne.s32.totalorder %s1105, %s1119
      %p1121 = scmp.eq.s32.totalorder %s171, 0
      %p1122 = por %p1120, %p1121
      %s1124 = sadd.s32 %s1123, 1
      %p1127 = scmp.eq.s32.totalorder %s165, 1
      %p1128 = scmp.ne.s32.totalorder %s1123, %s1125
      %p1129 = scmp.eq.s32.totalorder %s165, 0
      %p1130 = por %p1128, %p1129
      %p1131 = scmp.ne.s32.totalorder %s1123, %s1125
      %p1132 = scmp.eq.s32.totalorder %s170, 1
      %p1133 = por %p1131, %p1132
      %p1134 = scmp.ne.s32.totalorder %s1125, %s1126
      %p1135 = scmp.eq.s32.totalorder %s170, 0
      %p1136 = por %p1134, %p1135
      %p1137 = scmp.ne.s32.totalorder %s1125, %s1126
      %p1138 = scmp.eq.s32.totalorder %s171, 1
      %p1139 = por %p1137, %p1138
      %p1141 = scmp.ne.s32.totalorder %s1126, %s1140
      %p1142 = scmp.eq.s32.totalorder %s171, 0
      %p1143 = por %p1141, %p1142
      %s1145 = sadd.s32 %s1144, 1
      %p1148 = scmp.eq.s32.totalorder %s165, 1
      %p1149 = scmp.ne.s32.totalorder %s1144, %s1146
      %p1150 = scmp.eq.s32.totalorder %s165, 0
      %p1151 = por %p1149, %p1150
      %p1152 = scmp.ne.s32.totalorder %s1144, %s1146
      %p1153 = scmp.eq.s32.totalorder %s170, 1
      %p1154 = por %p1152, %p1153
      %p1155 = scmp.ne.s32.totalorder %s1146, %s1147
      %p1156 = scmp.eq.s32.totalorder %s170, 0
      %p1157 = por %p1155, %p1156
      %p1158 = scmp.ne.s32.totalorder %s1146, %s1147
      %p1159 = scmp.eq.s32.totalorder %s171, 1
      %p1160 = por %p1158, %p1159
      %p1162 = scmp.ne.s32.totalorder %s1147, %s1161
      %p1163 = scmp.eq.s32.totalorder %s171, 0
      %p1164 = por %p1162, %p1163
      %s1166 = sadd.s32 %s1165, 1
      %p1169 = scmp.eq.s32.totalorder %s165, 1
      %p1170 = scmp.ne.s32.totalorder %s1165, %s1167
      %p1171 = scmp.eq.s32.totalorder %s165, 0
      %p1172 = por %p1170, %p1171
      %p1173 = scmp.ne.s32.totalorder %s1165, %s1167
      %p1174 = scmp.eq.s32.totalorder %s170, 1
      %p1175 = por %p1173, %p1174
      %p1176 = scmp.ne.s32.totalorder %s1167, %s1168
      %p1177 = scmp.eq.s32.totalorder %s170, 0
      %p1178 = por %p1176, %p1177
      %p1179 = scmp.ne.s32.totalorder %s1167, %s1168
      %p1180 = scmp.eq.s32.totalorder %s171, 1
      %p1181 = por %p1179, %p1180
      %p1183 = scmp.ne.s32.totalorder %s1168, %s1182
      %p1184 = scmp.eq.s32.totalorder %s171, 0
      %p1185 = por %p1183, %p1184
      %s1187 = sadd.s32 %s1186, 1
      %p1190 = scmp.eq.s32.totalorder %s165, 1
      %p1191 = scmp.ne.s32.totalorder %s1186, %s1188
      %p1192 = scmp.eq.s32.totalorder %s165, 0
      %p1193 = por %p1191, %p1192
      %p1194 = scmp.ne.s32.totalorder %s1186, %s1188
      %p1195 = scmp.eq.s32.totalorder %s170, 1
      %p1196 = por %p1194, %p1195
      %p1197 = scmp.ne.s32.totalorder %s1188, %s1189
      %p1198 = scmp.eq.s32.totalorder %s170, 0
      %p1199 = por %p1197, %p1198
      %p1200 = scmp.ne.s32.totalorder %s1188, %s1189
      %p1201 = scmp.eq.s32.totalorder %s171, 1
      %p1202 = por %p1200, %p1201
      %p1204 = scmp.ne.s32.totalorder %s1189, %s1203
      %p1205 = scmp.eq.s32.totalorder %s171, 0
      %p1206 = por %p1204, %p1205
      %s1208 = sadd.s32 %s1207, 1
      %p1211 = scmp.eq.s32.totalorder %s165, 1
      %p1212 = scmp.ne.s32.totalorder %s1207, %s1209
      %p1213 = scmp.eq.s32.totalorder %s165, 0
      %p1214 = por %p1212, %p1213
      %p1215 = scmp.ne.s32.totalorder %s1207, %s1209
      %p1216 = scmp.eq.s32.totalorder %s170, 1
      %p1217 = por %p1215, %p1216
      %p1218 = scmp.ne.s32.totalorder %s1209, %s1210
      %p1219 = scmp.eq.s32.totalorder %s170, 0
      %p1220 = por %p1218, %p1219
      %p1221 = scmp.ne.s32.totalorder %s1209, %s1210
      %p1222 = scmp.eq.s32.totalorder %s171, 1
      %p1223 = por %p1221, %p1222
      %p1225 = scmp.ne.s32.totalorder %s1210, %s1224
      %p1226 = scmp.eq.s32.totalorder %s171, 0
      %p1227 = por %p1225, %p1226
      %s1229 = sadd.s32 %s1228, 1
      %p1232 = scmp.eq.s32.totalorder %s165, 1
      %p1233 = scmp.ne.s32.totalorder %s1228, %s1230
      %p1234 = scmp.eq.s32.totalorder %s165, 0
      %p1235 = por %p1233, %p1234
      %p1236 = scmp.ne.s32.totalorder %s1228, %s1230
      %p1237 = scmp.eq.s32.totalorder %s170, 1
      %p1238 = por %p1236, %p1237
      %p1239 = scmp.ne.s32.totalorder %s1230, %s1231
      %p1240 = scmp.eq.s32.totalorder %s170, 0
      %p1241 = por %p1239, %p1240
      %p1242 = scmp.ne.s32.totalorder %s1230, %s1231
      %p1243 = scmp.eq.s32.totalorder %s171, 1
      %p1244 = por %p1242, %p1243
      %p1246 = scmp.ne.s32.totalorder %s1231, %s1245
      %p1247 = scmp.eq.s32.totalorder %s171, 0
      %p1248 = por %p1246, %p1247
      %s1250 = sadd.s32 %s1249, 1
      %p1253 = scmp.eq.s32.totalorder %s165, 1
      %p1254 = scmp.ne.s32.totalorder %s1249, %s1251
      %p1255 = scmp.eq.s32.totalorder %s165, 0
      %p1256 = por %p1254, %p1255
      %p1257 = scmp.ne.s32.totalorder %s1249, %s1251
      %p1258 = scmp.eq.s32.totalorder %s170, 1
      %p1259 = por %p1257, %p1258
      %p1260 = scmp.ne.s32.totalorder %s1251, %s1252
      %p1261 = scmp.eq.s32.totalorder %s170, 0
      %p1262 = por %p1260, %p1261
      %p1263 = scmp.ne.s32.totalorder %s1251, %s1252
      %p1264 = scmp.eq.s32.totalorder %s171, 1
      %p1265 = por %p1263, %p1264
      %p1267 = scmp.ne.s32.totalorder %s1252, %s1266
      %p1268 = scmp.eq.s32.totalorder %s171, 0
      %p1269 = por %p1267, %p1268
      %s1271 = sadd.s32 %s1270, 1
      %p1274 = scmp.eq.s32.totalorder %s165, 1
      %p1275 = scmp.ne.s32.totalorder %s1270, %s1272
      %p1276 = scmp.eq.s32.totalorder %s165, 0
      %p1277 = por %p1275, %p1276
      %p1278 = scmp.ne.s32.totalorder %s1270, %s1272
      %p1279 = scmp.eq.s32.totalorder %s170, 1
      %p1280 = por %p1278, %p1279
      %p1281 = scmp.ne.s32.totalorder %s1272, %s1273
      %p1282 = scmp.eq.s32.totalorder %s170, 0
      %p1283 = por %p1281, %p1282
      %p1284 = scmp.ne.s32.totalorder %s1272, %s1273
      %p1285 = scmp.eq.s32.totalorder %s171, 1
      %p1286 = por %p1284, %p1285
      %p1288 = scmp.ne.s32.totalorder %s1273, %s1287
      %p1289 = scmp.eq.s32.totalorder %s171, 0
      %p1290 = por %p1288, %p1289
      %s1292 = sadd.s32 %s1291, 1
      %p1295 = scmp.eq.s32.totalorder %s165, 1
      %p1296 = scmp.ne.s32.totalorder %s1291, %s1293
      %p1297 = scmp.eq.s32.totalorder %s165, 0
      %p1298 = por %p1296, %p1297
      %p1299 = scmp.ne.s32.totalorder %s1291, %s1293
      %p1300 = scmp.eq.s32.totalorder %s170, 1
      %p1301 = por %p1299, %p1300
      %p1302 = scmp.ne.s32.totalorder %s1293, %s1294
      %p1303 = scmp.eq.s32.totalorder %s170, 0
      %p1304 = por %p1302, %p1303
      %p1305 = scmp.ne.s32.totalorder %s1293, %s1294
      %p1306 = scmp.eq.s32.totalorder %s171, 1
      %p1307 = por %p1305, %p1306
      %p1309 = scmp.ne.s32.totalorder %s1294, %s1308
      %p1310 = scmp.eq.s32.totalorder %s171, 0
      %p1311 = por %p1309, %p1310
      %s1313 = sadd.s32 %s1312, 1
      %p1316 = scmp.eq.s32.totalorder %s165, 1
      %p1317 = scmp.ne.s32.totalorder %s1312, %s1314
      %p1318 = scmp.eq.s32.totalorder %s165, 0
      %p1319 = por %p1317, %p1318
      %p1320 = scmp.ne.s32.totalorder %s1312, %s1314
      %p1321 = scmp.eq.s32.totalorder %s170, 1
      %p1322 = por %p1320, %p1321
      %p1323 = scmp.ne.s32.totalorder %s1314, %s1315
      %p1324 = scmp.eq.s32.totalorder %s170, 0
      %p1325 = por %p1323, %p1324
      %p1326 = scmp.ne.s32.totalorder %s1314, %s1315
      %p1327 = scmp.eq.s32.totalorder %s171, 1
      %p1328 = por %p1326, %p1327
      %p1330 = scmp.ne.s32.totalorder %s1315, %s1329
      %p1331 = scmp.eq.s32.totalorder %s171, 0
      %p1332 = por %p1330, %p1331
      %s1334 = sadd.s32 %s1333, 1
      %p1337 = scmp.eq.s32.totalorder %s165, 1
      %p1338 = scmp.ne.s32.totalorder %s1333, %s1335
      %p1339 = scmp.eq.s32.totalorder %s165, 0
      %p1340 = por %p1338, %p1339
      %p1341 = scmp.ne.s32.totalorder %s1333, %s1335
      %p1342 = scmp.eq.s32.totalorder %s170, 1
      %p1343 = por %p1341, %p1342
      %p1344 = scmp.ne.s32.totalorder %s1335, %s1336
      %p1345 = scmp.eq.s32.totalorder %s170, 0
      %p1346 = por %p1344, %p1345
      %p1347 = scmp.ne.s32.totalorder %s1335, %s1336
      %p1348 = scmp.eq.s32.totalorder %s171, 1
      %p1349 = por %p1347, %p1348
      %p1351 = scmp.ne.s32.totalorder %s1336, %s1350
      %p1352 = scmp.eq.s32.totalorder %s171, 0
      %p1353 = por %p1351, %p1352
      %s1355 = sadd.s32 %s1354, 1
      %p1358 = scmp.eq.s32.totalorder %s165, 1
      %p1359 = scmp.ne.s32.totalorder %s1354, %s1356
      %p1360 = scmp.eq.s32.totalorder %s165, 0
      %p1361 = por %p1359, %p1360
      %p1362 = scmp.ne.s32.totalorder %s1354, %s1356
      %p1363 = scmp.eq.s32.totalorder %s170, 1
      %p1364 = por %p1362, %p1363
      %p1365 = scmp.ne.s32.totalorder %s1356, %s1357
      %p1366 = scmp.eq.s32.totalorder %s170, 0
      %p1367 = por %p1365, %p1366
      %p1368 = scmp.ne.s32.totalorder %s1356, %s1357
      %p1369 = scmp.eq.s32.totalorder %s171, 1
      %p1370 = por %p1368, %p1369
      %p1372 = scmp.ne.s32.totalorder %s1357, %s1371
      %p1373 = scmp.eq.s32.totalorder %s171, 0
      %p1374 = por %p1372, %p1373
      %s1376 = sadd.s32 %s1375, 1
      %p1379 = scmp.eq.s32.totalorder %s165, 1
      %p1380 = scmp.ne.s32.totalorder %s1375, %s1377
      %p1381 = scmp.eq.s32.totalorder %s165, 0
      %p1382 = por %p1380, %p1381
      %p1383 = scmp.ne.s32.totalorder %s1375, %s1377
      %p1384 = scmp.eq.s32.totalorder %s170, 1
      %p1385 = por %p1383, %p1384
      %p1386 = scmp.ne.s32.totalorder %s1377, %s1378
      %p1387 = scmp.eq.s32.totalorder %s170, 0
      %p1388 = por %p1386, %p1387
      %p1389 = scmp.ne.s32.totalorder %s1377, %s1378
      %p1390 = scmp.eq.s32.totalorder %s171, 1
      %p1391 = por %p1389, %p1390
      %p1393 = scmp.ne.s32.totalorder %s1378, %s1392
      %p1394 = scmp.eq.s32.totalorder %s171, 0
      %p1395 = por %p1393, %p1394
      %s1397 = sadd.s32 %s1396, 1
      %p1400 = scmp.eq.s32.totalorder %s165, 1
      %p1401 = scmp.ne.s32.totalorder %s1396, %s1398
      %p1402 = scmp.eq.s32.totalorder %s165, 0
      %p1403 = por %p1401, %p1402
      %p1404 = scmp.ne.s32.totalorder %s1396, %s1398
      %p1405 = scmp.eq.s32.totalorder %s170, 1
      %p1406 = por %p1404, %p1405
      %p1407 = scmp.ne.s32.totalorder %s1398, %s1399
      %p1408 = scmp.eq.s32.totalorder %s170, 0
      %p1409 = por %p1407, %p1408
      %p1410 = scmp.ne.s32.totalorder %s1398, %s1399
      %p1411 = scmp.eq.s32.totalorder %s171, 1
      %p1412 = por %p1410, %p1411
      %p1414 = scmp.ne.s32.totalorder %s1399, %s1413
      %p1415 = scmp.eq.s32.totalorder %s171, 0
      %p1416 = por %p1414, %p1415
      %s1418 = sadd.s32 %s1417, 1
      %p1421 = scmp.eq.s32.totalorder %s165, 1
      %p1422 = scmp.ne.s32.totalorder %s1417, %s1419
      %p1423 = scmp.eq.s32.totalorder %s165, 0
      %p1424 = por %p1422, %p1423
      %p1425 = scmp.ne.s32.totalorder %s1417, %s1419
      %p1426 = scmp.eq.s32.totalorder %s170, 1
      %p1427 = por %p1425, %p1426
      %p1428 = scmp.ne.s32.totalorder %s1419, %s1420
      %p1429 = scmp.eq.s32.totalorder %s170, 0
      %p1430 = por %p1428, %p1429
      %p1431 = scmp.ne.s32.totalorder %s1419, %s1420
      %p1432 = scmp.eq.s32.totalorder %s171, 1
      %p1433 = por %p1431, %p1432
      %p1435 = scmp.ne.s32.totalorder %s1420, %s1434
      %p1436 = scmp.eq.s32.totalorder %s171, 0
      %p1437 = por %p1435, %p1436
      %s1439 = sadd.s32 %s1438, 1
      %p1442 = scmp.eq.s32.totalorder %s165, 1
      %p1443 = scmp.ne.s32.totalorder %s1438, %s1440
      %p1444 = scmp.eq.s32.totalorder %s165, 0
      %p1445 = por %p1443, %p1444
      %p1446 = scmp.ne.s32.totalorder %s1438, %s1440
      %p1447 = scmp.eq.s32.totalorder %s170, 1
      %p1448 = por %p1446, %p1447
      %p1449 = scmp.ne.s32.totalorder %s1440, %s1441
      %p1450 = scmp.eq.s32.totalorder %s170, 0
      %p1451 = por %p1449, %p1450
      %p1452 = scmp.ne.s32.totalorder %s1440, %s1441
      %p1453 = scmp.eq.s32.totalorder %s171, 1
      %p1454 = por %p1452, %p1453
      %p1456 = scmp.ne.s32.totalorder %s1441, %s1455
      %p1457 = scmp.eq.s32.totalorder %s171, 0
      %p1458 = por %p1456, %p1457
      %s1460 = sadd.s32 %s1459, 1
      %p1463 = scmp.eq.s32.totalorder %s165, 1
      %p1464 = scmp.ne.s32.totalorder %s1459, %s1461
      %p1465 = scmp.eq.s32.totalorder %s165, 0
      %p1466 = por %p1464, %p1465
      %p1467 = scmp.ne.s32.totalorder %s1459, %s1461
      %p1468 = scmp.eq.s32.totalorder %s170, 1
      %p1469 = por %p1467, %p1468
      %p1470 = scmp.ne.s32.totalorder %s1461, %s1462
      %p1471 = scmp.eq.s32.totalorder %s170, 0
      %p1472 = por %p1470, %p1471
      %p1473 = scmp.ne.s32.totalorder %s1461, %s1462
      %p1474 = scmp.eq.s32.totalorder %s171, 1
      %p1475 = por %p1473, %p1474
      %p1477 = scmp.ne.s32.totalorder %s1462, %s1476
      %p1478 = scmp.eq.s32.totalorder %s171, 0
      %p1479 = por %p1477, %p1478
      %s1481 = sadd.s32 %s1480, 1
      %p1484 = scmp.eq.s32.totalorder %s165, 1
      %p1485 = scmp.ne.s32.totalorder %s1480, %s1482
      %p1486 = scmp.eq.s32.totalorder %s165, 0
      %p1487 = por %p1485, %p1486
      %p1488 = scmp.ne.s32.totalorder %s1480, %s1482
      %p1489 = scmp.eq.s32.totalorder %s170, 1
      %p1490 = por %p1488, %p1489
      %p1491 = scmp.ne.s32.totalorder %s1482, %s1483
      %p1492 = scmp.eq.s32.totalorder %s170, 0
      %p1493 = por %p1491, %p1492
      %p1494 = scmp.ne.s32.totalorder %s1482, %s1483
      %p1495 = scmp.eq.s32.totalorder %s171, 1
      %p1496 = por %p1494, %p1495
      %p1498 = scmp.ne.s32.totalorder %s1483, %s1497
      %p1499 = scmp.eq.s32.totalorder %s171, 0
      %p1500 = por %p1498, %p1499
      %s1502 = sadd.s32 %s1501, 1
      %p1505 = scmp.eq.s32.totalorder %s165, 1
      %p1506 = scmp.ne.s32.totalorder %s1501, %s1503
      %p1507 = scmp.eq.s32.totalorder %s165, 0
      %p1508 = por %p1506, %p1507
      %p1509 = scmp.ne.s32.totalorder %s1501, %s1503
      %p1510 = scmp.eq.s32.totalorder %s170, 1
      %p1511 = por %p1509, %p1510
      %p1512 = scmp.ne.s32.totalorder %s1503, %s1504
      %p1513 = scmp.eq.s32.totalorder %s170, 0
      %p1514 = por %p1512, %p1513
      %p1515 = scmp.ne.s32.totalorder %s1503, %s1504
      %p1516 = scmp.eq.s32.totalorder %s171, 1
      %p1517 = por %p1515, %p1516
      %p1519 = scmp.ne.s32.totalorder %s1504, %s1518
      %p1520 = scmp.eq.s32.totalorder %s171, 0
      %p1521 = por %p1519, %p1520
      %s1523 = sadd.s32 %s1522, 1
      %p1526 = scmp.eq.s32.totalorder %s165, 1
      %p1527 = scmp.ne.s32.totalorder %s1522, %s1524
      %p1528 = scmp.eq.s32.totalorder %s165, 0
      %p1529 = por %p1527, %p1528
      %p1530 = scmp.ne.s32.totalorder %s1522, %s1524
      %p1531 = scmp.eq.s32.totalorder %s170, 1
      %p1532 = por %p1530, %p1531
      %p1533 = scmp.ne.s32.totalorder %s1524, %s1525
      %p1534 = scmp.eq.s32.totalorder %s170, 0
      %p1535 = por %p1533, %p1534
      %p1536 = scmp.ne.s32.totalorder %s1524, %s1525
      %p1537 = scmp.eq.s32.totalorder %s171, 1
      %p1538 = por %p1536, %p1537
      %p1540 = scmp.ne.s32.totalorder %s1525, %s1539
      %p1541 = scmp.eq.s32.totalorder %s171, 0
      %p1542 = por %p1540, %p1541
      %s1544 = sadd.s32 %s1543, 1
      %p1547 = scmp.eq.s32.totalorder %s165, 1
      %p1548 = scmp.ne.s32.totalorder %s1543, %s1545
      %p1549 = scmp.eq.s32.totalorder %s165, 0
      %p1550 = por %p1548, %p1549
      %p1551 = scmp.ne.s32.totalorder %s1543, %s1545
      %p1552 = scmp.eq.s32.totalorder %s170, 1
      %p1553 = por %p1551, %p1552
      %p1554 = scmp.ne.s32.totalorder %s1545, %s1546
      %p1555 = scmp.eq.s32.totalorder %s170, 0
      %p1556 = por %p1554, %p1555
      %p1557 = scmp.ne.s32.totalorder %s1545, %s1546
      %p1558 = scmp.eq.s32.totalorder %s171, 1
      %p1559 = por %p1557, %p1558
      %p1561 = scmp.ne.s32.totalorder %s1546, %s1560
      %p1562 = scmp.eq.s32.totalorder %s171, 0
      %p1563 = por %p1561, %p1562
      %s1565 = sadd.s32 %s1564, 1
      %p1568 = scmp.eq.s32.totalorder %s165, 1
      %p1569 = scmp.ne.s32.totalorder %s1564, %s1566
      %p1570 = scmp.eq.s32.totalorder %s165, 0
      %p1571 = por %p1569, %p1570
      %p1572 = scmp.ne.s32.totalorder %s1564, %s1566
      %p1573 = scmp.eq.s32.totalorder %s170, 1
      %p1574 = por %p1572, %p1573
      %p1575 = scmp.ne.s32.totalorder %s1566, %s1567
      %p1576 = scmp.eq.s32.totalorder %s170, 0
      %p1577 = por %p1575, %p1576
      %p1578 = scmp.ne.s32.totalorder %s1566, %s1567
      %p1579 = scmp.eq.s32.totalorder %s171, 1
      %p1580 = por %p1578, %p1579
      %p1582 = scmp.ne.s32.totalorder %s1567, %s1581
      %p1583 = scmp.eq.s32.totalorder %s171, 0
      %p1584 = por %p1582, %p1583
      %s1586 = sadd.s32 %s1585, 1
      %p1589 = scmp.eq.s32.totalorder %s165, 1
      %p1590 = scmp.ne.s32.totalorder %s1585, %s1587
      %p1591 = scmp.eq.s32.totalorder %s165, 0
      %p1592 = por %p1590, %p1591
      %p1593 = scmp.ne.s32.totalorder %s1585, %s1587
      %p1594 = scmp.eq.s32.totalorder %s170, 1
      %p1595 = por %p1593, %p1594
      %p1596 = scmp.ne.s32.totalorder %s1587, %s1588
      %p1597 = scmp.eq.s32.totalorder %s170, 0
      %p1598 = por %p1596, %p1597
      %p1599 = scmp.ne.s32.totalorder %s1587, %s1588
      %p1600 = scmp.eq.s32.totalorder %s171, 1
      %p1601 = por %p1599, %p1600
      %p1603 = scmp.ne.s32.totalorder %s1588, %s1602
      %p1604 = scmp.eq.s32.totalorder %s171, 0
      %p1605 = por %p1603, %p1604
      %s1607 = sadd.s32 %s1606, 1
      %p1610 = scmp.eq.s32.totalorder %s165, 1
      %p1611 = scmp.ne.s32.totalorder %s1606, %s1608
      %p1612 = scmp.eq.s32.totalorder %s165, 0
      %p1613 = por %p1611, %p1612
      %p1614 = scmp.ne.s32.totalorder %s1606, %s1608
      %p1615 = scmp.eq.s32.totalorder %s170, 1
      %p1616 = por %p1614, %p1615
      %p1617 = scmp.ne.s32.totalorder %s1608, %s1609
      %p1618 = scmp.eq.s32.totalorder %s170, 0
      %p1619 = por %p1617, %p1618
      %p1620 = scmp.ne.s32.totalorder %s1608, %s1609
      %p1621 = scmp.eq.s32.totalorder %s171, 1
      %p1622 = por %p1620, %p1621
      %p1624 = scmp.ne.s32.totalorder %s1609, %s1623
      %p1625 = scmp.eq.s32.totalorder %s171, 0
      %p1626 = por %p1624, %p1625
      %s1628 = sadd.s32 %s1627, 1
      %p1631 = scmp.eq.s32.totalorder %s165, 1
      %p1632 = scmp.ne.s32.totalorder %s1627, %s1629
      %p1633 = scmp.eq.s32.totalorder %s165, 0
      %p1634 = por %p1632, %p1633
      %p1635 = scmp.ne.s32.totalorder %s1627, %s1629
      %p1636 = scmp.eq.s32.totalorder %s170, 1
      %p1637 = por %p1635, %p1636
      %p1638 = scmp.ne.s32.totalorder %s1629, %s1630
      %p1639 = scmp.eq.s32.totalorder %s170, 0
      %p1640 = por %p1638, %p1639
      %p1641 = scmp.ne.s32.totalorder %s1629, %s1630
      %p1642 = scmp.eq.s32.totalorder %s171, 1
      %p1643 = por %p1641, %p1642
      %p1645 = scmp.ne.s32.totalorder %s1630, %s1644
      %p1646 = scmp.eq.s32.totalorder %s171, 0
      %p1647 = por %p1645, %p1646
      %s1649 = sadd.s32 %s1648, 1
      %p1652 = scmp.eq.s32.totalorder %s165, 1
      %p1653 = scmp.ne.s32.totalorder %s1648, %s1650
      %p1654 = scmp.eq.s32.totalorder %s165, 0
      %p1655 = por %p1653, %p1654
      %p1656 = scmp.ne.s32.totalorder %s1648, %s1650
      %p1657 = scmp.eq.s32.totalorder %s170, 1
      %p1658 = por %p1656, %p1657
      %p1659 = scmp.ne.s32.totalorder %s1650, %s1651
      %p1660 = scmp.eq.s32.totalorder %s170, 0
      %p1661 = por %p1659, %p1660
      %p1662 = scmp.ne.s32.totalorder %s1650, %s1651
      %p1663 = scmp.eq.s32.totalorder %s171, 1
      %p1664 = por %p1662, %p1663
      %p1666 = scmp.ne.s32.totalorder %s1651, %s1665
      %p1667 = scmp.eq.s32.totalorder %s171, 0
      %p1668 = por %p1666, %p1667
      %s1669 = ssub.s32 %s165, %s172
      %p1670 = scmp.eq.s32.totalorder %s1669, 0
      %s1672 = sadd.s32 %s1671, 1
      %s1673 = scalar_select %p1670, %s1671, %s1672
      %p1676 = pneg %p1670
      %p1677 = scmp.eq.s32.totalorder %s165, 1
      %p1678 = por %p1676, %p1677
      %p1679 = scmp.ne.s32.totalorder %s1671, %s1674
      %p1680 = scmp.eq.s32.totalorder %s165, 0
      %p1681 = por %p1679, %p1680
      %p1682 = scmp.ne.s32.totalorder %s1671, %s1674
      %p1683 = scmp.eq.s32.totalorder %s170, 1
      %p1684 = por %p1682, %p1683
      %p1685 = scmp.ne.s32.totalorder %s1674, %s1675
      %p1686 = scmp.eq.s32.totalorder %s170, 0
      %p1687 = por %p1685, %p1686
      %p1688 = scmp.ne.s32.totalorder %s1674, %s1675
      %p1689 = scmp.eq.s32.totalorder %s171, 1
      %p1690 = por %p1688, %p1689
      %p1692 = scmp.ne.s32.totalorder %s1675, %s1691
      %p1693 = scmp.eq.s32.totalorder %s171, 0
      %p1694 = por %p1692, %p1693
      %p1695 = scmp.le.s32.totalorder 1, %s165
      %p1696 = scmp.lt.s32.totalorder %s165, 3
      %p1697 = pnand %p1695, %p1696
      %p1698 = pneg %p1697
      // Predicated region
      $region9: #{forward.1} parent=5 // pred_check
        _
      $region10: #{forward.1} parent=5 // pred_check_branch
        %1700 = sbr.rel (%p1697) target = $region12
      $region11: #{forward.1} parent=5 // pred_region
        %s1701 = ssub.s32 %s165, 1
        // Predicated region
        $region13: #{forward.1} parent=11 // pred_check
          %p1702 = pneg %p212
        $region14: #{forward.1} parent=11 // pred_check_branch
          %1704 = sbr.rel (%p1702) target = $region16
        $region15: #{forward.1} parent=11 // pred_region
          _
        $region16: #{forward.1} parent=11 // pred_fallthru
          _
        // Predicated region
        $region17: #{forward.1} parent=11 // pred_check
          %p1705 = pneg %p233
        $region18: #{forward.1} parent=11 // pred_check_branch
          %1707 = sbr.rel (%p1705) target = $region20
        $region19: #{forward.1} parent=11 // pred_region
          %1709 = vsyncadd [#allocation3], 0
          %s1711 = sshll.u32 %s5, 4
          %s1712 = int_to_ptr.hbm [resolvable:$true] %s1711
          %s1713 = sshll.u32 [#allocation2], 4
          %s1714 = int_to_ptr.vmem [resolvable:$true] %s1713
          %1716 = dma.hbm_to_vmem [thread:$0]  %s1712, 16, %s1714, [#allocation3]
        $region20: #{forward.1} parent=11 // pred_fallthru
          _
        // Predicated region
        $region21: #{forward.1} parent=11 // pred_check
          %p1717 = pneg %p254
        $region22: #{forward.1} parent=11 // pred_check_branch
          %1719 = sbr.rel (%p1717) target = $region24
        $region23: #{forward.1} parent=11 // pred_region
          %1721 = vsyncadd [#allocation6], 0
          %s1723 = sshll.u32 %s7, 4
          %s1724 = int_to_ptr.hbm [resolvable:$true] %s1723
          %s1725 = sshll.u32 [#allocation5], 4
          %s1726 = int_to_ptr.vmem [resolvable:$true] %s1725
          %1728 = dma.hbm_to_vmem [thread:$0]  %s1724, 16, %s1726, [#allocation6]
        $region24: #{forward.1} parent=11 // pred_fallthru
          _
        // Predicated region
        $region25: #{forward.1} parent=11 // pred_check
          %p1729 = pneg %p275
        $region26: #{forward.1} parent=11 // pred_check_branch
          %1731 = sbr.rel (%p1729) target = $region28
        $region27: #{forward.1} parent=11 // pred_region
          _
        $region28: #{forward.1} parent=11 // pred_fallthru
          _
        // Predicated region
        $region29: #{forward.1} parent=11 // pred_check
          %p1732 = pneg %p296
        $region30: #{forward.1} parent=11 // pred_check_branch
          %1734 = sbr.rel (%p1732) target = $region32
        $region31: #{forward.1} parent=11 // pred_region
          _
        $region32: #{forward.1} parent=11 // pred_fallthru
          _
        // Predicated region
        $region33: #{forward.1} parent=11 // pred_check
          %p1735 = pneg %p317
        $region34: #{forward.1} parent=11 // pred_check_branch
          %1737 = sbr.rel (%p1735) target = $region36
        $region35: #{forward.1} parent=11 // pred_region
          %1739 = vsyncadd [#allocation6], 0
          %s1741 = sshll.u32 %s13, 4
          %s1742 = int_to_ptr.hbm [resolvable:$true] %s1741
          %s1743 = sshll.u32 [#allocation7], 4
          %s1744 = int_to_ptr.vmem [resolvable:$true] %s1743
          %1746 = dma.hbm_to_vmem [thread:$0]  %s1742, 16, %s1744, [#allocation6]
        $region36: #{forward.1} parent=11 // pred_fallthru
          _
        // Predicated region
        $region37: #{forward.1} parent=11 // pred_check
          %p1747 = pneg %p338
        $region38: #{forward.1} parent=11 // pred_check_branch
          %1749 = sbr.rel (%p1747) target = $region40
        $region39: #{forward.1} parent=11 // pred_region
          %1751 = vsyncadd [#allocation9], 0
          %s1753 = sshll.u32 %s15, 4
          %s1754 = int_to_ptr.hbm [resolvable:$true] %s1753
          %s1755 = sshll.u32 [#allocation8], 4
          %s1756 = int_to_ptr.vmem [resolvable:$true] %s1755
          %1758 = dma.hbm_to_vmem [thread:$0]  %s1754, 16, %s1756, [#allocation9]
        $region40: #{forward.1} parent=11 // pred_fallthru
          _
        // Predicated region
        $region41: #{forward.1} parent=11 // pred_check
          %p1759 = pneg %p359
        $region42: #{forward.1} parent=11 // pred_check_branch
          %1761 = sbr.rel (%p1759) target = $region44
        $region43: #{forward.1} parent=11 // pred_region
          _
        $region44: #{forward.1} parent=11 // pred_fallthru
          _
        // Predicated region
        $region45: #{forward.1} parent=11 // pred_check
          %p1762 = pneg %p380
        $region46: #{forward.1} parent=11 // pred_check_branch
          %1764 = sbr.rel (%p1762) target = $region48
        $region47: #{forward.1} parent=11 // pred_region
          _
        $region48: #{forward.1} parent=11 // pred_fallthru
          _
        // Predicated region
        $region49: #{forward.1} parent=11 // pred_check
          %p1765 = pneg %p401
        $region50: #{forward.1} parent=11 // pred_check_branch
          %1767 = sbr.rel (%p1765) target = $region52
        $region51: #{forward.1} parent=11 // pred_region
          %1769 = vsyncadd [#allocation9], 0
          %s1771 = sshll.u32 %s21, 4
          %s1772 = int_to_ptr.hbm [resolvable:$true] %s1771
          %s1773 = sshll.u32 [#allocation10], 4
          %s1774 = int_to_ptr.vmem [resolvable:$true] %s1773
          %1776 = dma.hbm_to_vmem [thread:$0]  %s1772, 16, %s1774, [#allocation9]
        $region52: #{forward.1} parent=11 // pred_fallthru
          _
        // Predicated region
        $region53: #{forward.1} parent=11 // pred_check
          %p1777 = pneg %p422
        $region54: #{forward.1} parent=11 // pred_check_branch
          %1779 = sbr.rel (%p1777) target = $region56
        $region55: #{forward.1} parent=11 // pred_region
          _
        $region56: #{forward.1} parent=11 // pred_fallthru
          _
        // Predicated region
        $region57: #{forward.1} parent=11 // pred_check
          %p1780 = pneg %p443
        $region58: #{forward.1} parent=11 // pred_check_branch
          %1782 = sbr.rel (%p1780) target = $region60
        $region59: #{forward.1} parent=11 // pred_region
          _
        $region60: #{forward.1} parent=11 // pred_fallthru
          _
        // Predicated region
        $region61: #{forward.1} parent=11 // pred_check
          %p1783 = pneg %p464
        $region62: #{forward.1} parent=11 // pred_check_branch
          %1785 = sbr.rel (%p1783) target = $region64
        $region63: #{forward.1} parent=11 // pred_region
          %1787 = vsyncadd [#allocation12], 0
          %s1789 = sshll.u32 %s27, 4
          %s1790 = int_to_ptr.hbm [resolvable:$true] %s1789
          %s1791 = sshll.u32 [#allocation11], 4
          %s1792 = int_to_ptr.vmem [resolvable:$true] %s1791
          %1794 = dma.hbm_to_vmem [thread:$0]  %s1790, 16, %s1792, [#allocation12]
        $region64: #{forward.1} parent=11 // pred_fallthru
          _
        // Predicated region
        $region65: #{forward.1} parent=11 // pred_check
          %p1795 = pneg %p485
        $region66: #{forward.1} parent=11 // pred_check_branch
          %1797 = sbr.rel (%p1795) target = $region68
        $region67: #{forward.1} parent=11 // pred_region
          %1799 = vsyncadd [#allocation12], 0
          %s1801 = sshll.u32 %s29, 4
          %s1802 = int_to_ptr.hbm [resolvable:$true] %s1801
          %s1803 = sshll.u32 [#allocation13], 4
          %s1804 = int_to_ptr.vmem [resolvable:$true] %s1803
          %1806 = dma.hbm_to_vmem [thread:$0]  %s1802, 16, %s1804, [#allocation12]
        $region68: #{forward.1} parent=11 // pred_fallthru
          _
        // Predicated region
        $region69: #{forward.1} parent=11 // pred_check
          %p1807 = pneg %p506
        $region70: #{forward.1} parent=11 // pred_check_branch
          %1809 = sbr.rel (%p1807) target = $region72
        $region71: #{forward.1} parent=11 // pred_region
          _
        $region72: #{forward.1} parent=11 // pred_fallthru
          _
        // Predicated region
        $region73: #{forward.1} parent=11 // pred_check
          %p1810 = pneg %p527
        $region74: #{forward.1} parent=11 // pred_check_branch
          %1812 = sbr.rel (%p1810) target = $region76
        $region75: #{forward.1} parent=11 // pred_region
          _
        $region76: #{forward.1} parent=11 // pred_fallthru
          _
        // Predicated region
        $region77: #{forward.1} parent=11 // pred_check
          %p1813 = pneg %p548
        $region78: #{forward.1} parent=11 // pred_check_branch
          %1815 = sbr.rel (%p1813) target = $region80
        $region79: #{forward.1} parent=11 // pred_region
          _
        $region80: #{forward.1} parent=11 // pred_fallthru
          _
        // Predicated region
        $region81: #{forward.1} parent=11 // pred_check
          %p1816 = pneg %p569
        $region82: #{forward.1} parent=11 // pred_check_branch
          %1818 = sbr.rel (%p1816) target = $region84
        $region83: #{forward.1} parent=11 // pred_region
          %1820 = vsyncadd [#allocation15], 0
          %s1822 = sshll.u32 %s37, 4
          %s1823 = int_to_ptr.hbm [resolvable:$true] %s1822
          %s1824 = sshll.u32 [#allocation14], 4
          %s1825 = int_to_ptr.vmem [resolvable:$true] %s1824
          %1827 = dma.hbm_to_vmem [thread:$0]  %s1823, 16, %s1825, [#allocation15]
        $region84: #{forward.1} parent=11 // pred_fallthru
          _
        // Predicated region
        $region85: #{forward.1} parent=11 // pred_check
          %p1828 = pneg %p590
        $region86: #{forward.1} parent=11 // pred_check_branch
          %1830 = sbr.rel (%p1828) target = $region88
        $region87: #{forward.1} parent=11 // pred_region
          %1832 = vsyncadd [#allocation15], 0
          %s1834 = sshll.u32 %s39, 4
          %s1835 = int_to_ptr.hbm [resolvable:$true] %s1834
          %s1836 = sshll.u32 [#allocation16], 4
          %s1837 = int_to_ptr.vmem [resolvable:$true] %s1836
          %1839 = dma.hbm_to_vmem [thread:$0]  %s1835, 16, %s1837, [#allocation15]
        $region88: #{forward.1} parent=11 // pred_fallthru
          _
        // Predicated region
        $region89: #{forward.1} parent=11 // pred_check
          %p1840 = pneg %p611
        $region90: #{forward.1} parent=11 // pred_check_branch
          %1842 = sbr.rel (%p1840) target = $region92
        $region91: #{forward.1} parent=11 // pred_region
          _
        $region92: #{forward.1} parent=11 // pred_fallthru
          _
        // Predicated region
        $region93: #{forward.1} parent=11 // pred_check
          %p1843 = pneg %p632
        $region94: #{forward.1} parent=11 // pred_check_branch
          %1845 = sbr.rel (%p1843) target = $region96
        $region95: #{forward.1} parent=11 // pred_region
          _
        $region96: #{forward.1} parent=11 // pred_fallthru
          _
        // Predicated region
        $region97: #{forward.1} parent=11 // pred_check
          %p1846 = pneg %p653
        $region98: #{forward.1} parent=11 // pred_check_branch
          %1848 = sbr.rel (%p1846) target = $region100
        $region99: #{forward.1} parent=11 // pred_region
          %1850 = vsyncadd [#allocation18], 0
          %s1852 = sshll.u32 %s45, 4
          %s1853 = int_to_ptr.hbm [resolvable:$true] %s1852
          %s1854 = sshll.u32 [#allocation17], 4
          %s1855 = int_to_ptr.vmem [resolvable:$true] %s1854
          %1857 = dma.hbm_to_vmem [thread:$0]  %s1853, 16, %s1855, [#allocation18]
        $region100: #{forward.1} parent=11 // pred_fallthru
          _
        // Predicated region
        $region101: #{forward.1} parent=11 // pred_check
          %p1858 = pneg %p674
        $region102: #{forward.1} parent=11 // pred_check_branch
          %1860 = sbr.rel (%p1858) target = $region104
        $region103: #{forward.1} parent=11 // pred_region
          _
        $region104: #{forward.1} parent=11 // pred_fallthru
          _
        // Predicated region
        $region105: #{forward.1} parent=11 // pred_check
          %p1861 = pneg %p695
        $region106: #{forward.1} parent=11 // pred_check_branch
          %1863 = sbr.rel (%p1861) target = $region108
        $region107: #{forward.1} parent=11 // pred_region
          _
        $region108: #{forward.1} parent=11 // pred_fallthru
          _
        // Predicated region
        $region109: #{forward.1} parent=11 // pred_check
          %p1864 = pneg %p716
        $region110: #{forward.1} parent=11 // pred_check_branch
          %1866 = sbr.rel (%p1864) target = $region112
        $region111: #{forward.1} parent=11 // pred_region
          %1868 = vsyncadd [#allocation18], 0
          %s1870 = sshll.u32 %s51, 4
          %s1871 = int_to_ptr.hbm [resolvable:$true] %s1870
          %s1872 = sshll.u32 [#allocation19], 4
          %s1873 = int_to_ptr.vmem [resolvable:$true] %s1872
          %1875 = dma.hbm_to_vmem [thread:$0]  %s1871, 16, %s1873, [#allocation18]
        $region112: #{forward.1} parent=11 // pred_fallthru
          _
        // Predicated region
        $region113: #{forward.1} parent=11 // pred_check
          %p1876 = pneg %p737
        $region114: #{forward.1} parent=11 // pred_check_branch
          %1878 = sbr.rel (%p1876) target = $region116
        $region115: #{forward.1} parent=11 // pred_region
          %1880 = vsyncadd [#allocation21], 0
          %s1882 = sshll.u32 %s53, 4
          %s1883 = int_to_ptr.hbm [resolvable:$true] %s1882
          %s1884 = sshll.u32 [#allocation20], 4
          %s1885 = int_to_ptr.vmem [resolvable:$true] %s1884
          %1887 = dma.hbm_to_vmem [thread:$0]  %s1883, 16, %s1885, [#allocation21]
        $region116: #{forward.1} parent=11 // pred_fallthru
          _
        // Predicated region
        $region117: #{forward.1} parent=11 // pred_check
          %p1888 = pneg %p758
        $region118: #{forward.1} parent=11 // pred_check_branch
          %1890 = sbr.rel (%p1888) target = $region120
        $region119: #{forward.1} parent=11 // pred_region
          _
        $region120: #{forward.1} parent=11 // pred_fallthru
          _
        // Predicated region
        $region121: #{forward.1} parent=11 // pred_check
          %p1891 = pneg %p779
        $region122: #{forward.1} parent=11 // pred_check_branch
          %1893 = sbr.rel (%p1891) target = $region124
        $region123: #{forward.1} parent=11 // pred_region
          %1895 = vsyncadd [#allocation21], 0
          %s1897 = sshll.u32 %s57, 4
          %s1898 = int_to_ptr.hbm [resolvable:$true] %s1897
          %s1899 = sshll.u32 [#allocation22], 4
          %s1900 = int_to_ptr.vmem [resolvable:$true] %s1899
          %1902 = dma.hbm_to_vmem [thread:$0]  %s1898, 16, %s1900, [#allocation21]
        $region124: #{forward.1} parent=11 // pred_fallthru
          _
        // Predicated region
        $region125: #{forward.1} parent=11 // pred_check
          %p1903 = pneg %p800
        $region126: #{forward.1} parent=11 // pred_check_branch
          %1905 = sbr.rel (%p1903) target = $region128
        $region127: #{forward.1} parent=11 // pred_region
          %1907 = vsyncadd [#allocation24], 0
          %s1909 = sshll.u32 %s59, 4
          %s1910 = int_to_ptr.hbm [resolvable:$true] %s1909
          %s1911 = sshll.u32 [#allocation23], 4
          %s1912 = int_to_ptr.vmem [resolvable:$true] %s1911
          %1914 = dma.hbm_to_vmem [thread:$0]  %s1910, 16, %s1912, [#allocation24]
        $region128: #{forward.1} parent=11 // pred_fallthru
          _
        // Predicated region
        $region129: #{forward.1} parent=11 // pred_check
          %p1915 = pneg %p821
        $region130: #{forward.1} parent=11 // pred_check_branch
          %1917 = sbr.rel (%p1915) target = $region132
        $region131: #{forward.1} parent=11 // pred_region
          _
        $region132: #{forward.1} parent=11 // pred_fallthru
          _
        // Predicated region
        $region133: #{forward.1} parent=11 // pred_check
          %p1918 = pneg %p842
        $region134: #{forward.1} parent=11 // pred_check_branch
          %1920 = sbr.rel (%p1918) target = $region136
        $region135: #{forward.1} parent=11 // pred_region
          _
        $region136: #{forward.1} parent=11 // pred_fallthru
          _
        // Predicated region
        $region137: #{forward.1} parent=11 // pred_check
          %p1921 = pneg %p863
        $region138: #{forward.1} parent=11 // pred_check_branch
          %1923 = sbr.rel (%p1921) target = $region140
        $region139: #{forward.1} parent=11 // pred_region
          %1925 = vsyncadd [#allocation24], 0
          %s1927 = sshll.u32 %s65, 4
          %s1928 = int_to_ptr.hbm [resolvable:$true] %s1927
          %s1929 = sshll.u32 [#allocation25], 4
          %s1930 = int_to_ptr.vmem [resolvable:$true] %s1929
          %1932 = dma.hbm_to_vmem [thread:$0]  %s1928, 16, %s1930, [#allocation24]
        $region140: #{forward.1} parent=11 // pred_fallthru
          _
        // Predicated region
        $region141: #{forward.1} parent=11 // pred_check
          %p1933 = pneg %p884
        $region142: #{forward.1} parent=11 // pred_check_branch
          %1935 = sbr.rel (%p1933) target = $region144
        $region143: #{forward.1} parent=11 // pred_region
          _
        $region144: #{forward.1} parent=11 // pred_fallthru
          _
        // Predicated region
        $region145: #{forward.1} parent=11 // pred_check
          %p1936 = pneg %p905
        $region146: #{forward.1} parent=11 // pred_check_branch
          %1938 = sbr.rel (%p1936) target = $region148
        $region147: #{forward.1} parent=11 // pred_region
          _
        $region148: #{forward.1} parent=11 // pred_fallthru
          _
        // Predicated region
        $region149: #{forward.1} parent=11 // pred_check
          %p1939 = pneg %p926
        $region150: #{forward.1} parent=11 // pred_check_branch
          %1941 = sbr.rel (%p1939) target = $region152
        $region151: #{forward.1} parent=11 // pred_region
          _
        $region152: #{forward.1} parent=11 // pred_fallthru
          _
        // Predicated region
        $region153: #{forward.1} parent=11 // pred_check
          %p1942 = pneg %p947
        $region154: #{forward.1} parent=11 // pred_check_branch
          %1944 = sbr.rel (%p1942) target = $region156
        $region155: #{forward.1} parent=11 // pred_region
          _
        $region156: #{forward.1} parent=11 // pred_fallthru
          _
        // Predicated region
        $region157: #{forward.1} parent=11 // pred_check
          %p1945 = pneg %p968
        $region158: #{forward.1} parent=11 // pred_check_branch
          %1947 = sbr.rel (%p1945) target = $region160
        $region159: #{forward.1} parent=11 // pred_region
          _
        $region160: #{forward.1} parent=11 // pred_fallthru
          _
        // Predicated region
        $region161: #{forward.1} parent=11 // pred_check
          %p1948 = pneg %p989
        $region162: #{forward.1} parent=11 // pred_check_branch
          %1950 = sbr.rel (%p1948) target = $region164
        $region163: #{forward.1} parent=11 // pred_region
          _
        $region164: #{forward.1} parent=11 // pred_fallthru
          _
        // Predicated region
        $region165: #{forward.1} parent=11 // pred_check
          %p1951 = pneg %p1010
        $region166: #{forward.1} parent=11 // pred_check_branch
          %1953 = sbr.rel (%p1951) target = $region168
        $region167: #{forward.1} parent=11 // pred_region
          _
        $region168: #{forward.1} parent=11 // pred_fallthru
          _
        // Predicated region
        $region169: #{forward.1} parent=11 // pred_check
          %p1954 = pneg %p1031
        $region170: #{forward.1} parent=11 // pred_check_branch
          %1956 = sbr.rel (%p1954) target = $region172
        $region171: #{forward.1} parent=11 // pred_region
          _
        $region172: #{forward.1} parent=11 // pred_fallthru
          _
        // Predicated region
        $region173: #{forward.1} parent=11 // pred_check
          %p1957 = pneg %p1052
        $region174: #{forward.1} parent=11 // pred_check_branch
          %1959 = sbr.rel (%p1957) target = $region176
        $region175: #{forward.1} parent=11 // pred_region
          _
        $region176: #{forward.1} parent=11 // pred_fallthru
          _
        // Predicated region
        $region177: #{forward.1} parent=11 // pred_check
          %p1960 = pneg %p1073
        $region178: #{forward.1} parent=11 // pred_check_branch
          %1962 = sbr.rel (%p1960) target = $region180
        $region179: #{forward.1} parent=11 // pred_region
          _
        $region180: #{forward.1} parent=11 // pred_fallthru
          _
        // Predicated region
        $region181: #{forward.1} parent=11 // pred_check
          %p1963 = pneg %p1094
        $region182: #{forward.1} parent=11 // pred_check_branch
          %1965 = sbr.rel (%p1963) target = $region184
        $region183: #{forward.1} parent=11 // pred_region
          _
        $region184: #{forward.1} parent=11 // pred_fallthru
          _
        // Predicated region
        $region185: #{forward.1} parent=11 // pred_check
          %p1966 = pneg %p1115
        $region186: #{forward.1} parent=11 // pred_check_branch
          %1968 = sbr.rel (%p1966) target = $region188
        $region187: #{forward.1} parent=11 // pred_region
          _
        $region188: #{forward.1} parent=11 // pred_fallthru
          _
        // Predicated region
        $region189: #{forward.1} parent=11 // pred_check
          %p1969 = pneg %p1136
        $region190: #{forward.1} parent=11 // pred_check_branch
          %1971 = sbr.rel (%p1969) target = $region192
        $region191: #{forward.1} parent=11 // pred_region
          _
        $region192: #{forward.1} parent=11 // pred_fallthru
          _
        // Predicated region
        $region193: #{forward.1} parent=11 // pred_check
          %p1972 = pneg %p1157
        $region194: #{forward.1} parent=11 // pred_check_branch
          %1974 = sbr.rel (%p1972) target = $region196
        $region195: #{forward.1} parent=11 // pred_region
          _
        $region196: #{forward.1} parent=11 // pred_fallthru
          _
        // Predicated region
        $region197: #{forward.1} parent=11 // pred_check
          %p1975 = pneg %p1178
        $region198: #{forward.1} parent=11 // pred_check_branch
          %1977 = sbr.rel (%p1975) target = $region200
        $region199: #{forward.1} parent=11 // pred_region
          _
        $region200: #{forward.1} parent=11 // pred_fallthru
          _
        // Predicated region
        $region201: #{forward.1} parent=11 // pred_check
          %p1978 = pneg %p1199
        $region202: #{forward.1} parent=11 // pred_check_branch
          %1980 = sbr.rel (%p1978) target = $region204
        $region203: #{forward.1} parent=11 // pred_region
          _
        $region204: #{forward.1} parent=11 // pred_fallthru
          _
        // Predicated region
        $region205: #{forward.1} parent=11 // pred_check
          %p1981 = pneg %p1220
        $region206: #{forward.1} parent=11 // pred_check_branch
          %1983 = sbr.rel (%p1981) target = $region208
        $region207: #{forward.1} parent=11 // pred_region
          _
        $region208: #{forward.1} parent=11 // pred_fallthru
          _
        // Predicated region
        $region209: #{forward.1} parent=11 // pred_check
          %p1984 = pneg %p1241
        $region210: #{forward.1} parent=11 // pred_check_branch
          %1986 = sbr.rel (%p1984) target = $region212
        $region211: #{forward.1} parent=11 // pred_region
          %1988 = vsyncadd [#allocation27], 0
          %s1990 = sshll.u32 %s101, 4
          %s1991 = int_to_ptr.hbm [resolvable:$true] %s1990
          %s1992 = sshll.u32 [#allocation26], 4
          %s1993 = int_to_ptr.vmem [resolvable:$true] %s1992
          %1995 = dma.hbm_to_vmem [thread:$0]  %s1991, 16, %s1993, [#allocation27]
        $region212: #{forward.1} parent=11 // pred_fallthru
          _
        // Predicated region
        $region213: #{forward.1} parent=11 // pred_check
          %p1996 = pneg %p1262
        $region214: #{forward.1} parent=11 // pred_check_branch
          %1998 = sbr.rel (%p1996) target = $region216
        $region215: #{forward.1} parent=11 // pred_region
          %2000 = vsyncadd [#allocation27], 0
          %s2002 = sshll.u32 %s103, 4
          %s2003 = int_to_ptr.hbm [resolvable:$true] %s2002
          %s2004 = sshll.u32 [#allocation28], 4
          %s2005 = int_to_ptr.vmem [resolvable:$true] %s2004
          %2007 = dma.hbm_to_vmem [thread:$0]  %s2003, 16, %s2005, [#allocation27]
        $region216: #{forward.1} parent=11 // pred_fallthru
          _
        // Predicated region
        $region217: #{forward.1} parent=11 // pred_check
          %p2008 = pneg %p1283
        $region218: #{forward.1} parent=11 // pred_check_branch
          %2010 = sbr.rel (%p2008) target = $region220
        $region219: #{forward.1} parent=11 // pred_region
          _
        $region220: #{forward.1} parent=11 // pred_fallthru
          _
        // Predicated region
        $region221: #{forward.1} parent=11 // pred_check
          %p2011 = pneg %p1304
        $region222: #{forward.1} parent=11 // pred_check_branch
          %2013 = sbr.rel (%p2011) target = $region224
        $region223: #{forward.1} parent=11 // pred_region
          _
        $region224: #{forward.1} parent=11 // pred_fallthru
          _
        // Predicated region
        $region225: #{forward.1} parent=11 // pred_check
          %p2014 = pneg %p1325
        $region226: #{forward.1} parent=11 // pred_check_branch
          %2016 = sbr.rel (%p2014) target = $region228
        $region227: #{forward.1} parent=11 // pred_region
          %2018 = vsyncadd [#allocation30], 0
          %s2020 = sshll.u32 %s109, 4
          %s2021 = int_to_ptr.hbm [resolvable:$true] %s2020
          %s2022 = sshll.u32 [#allocation29], 4
          %s2023 = int_to_ptr.vmem [resolvable:$true] %s2022
          %2025 = dma.hbm_to_vmem [thread:$0]  %s2021, 16, %s2023, [#allocation30]
        $region228: #{forward.1} parent=11 // pred_fallthru
          _
        // Predicated region
        $region229: #{forward.1} parent=11 // pred_check
          %p2026 = pneg %p1346
        $region230: #{forward.1} parent=11 // pred_check_branch
          %2028 = sbr.rel (%p2026) target = $region232
        $region231: #{forward.1} parent=11 // pred_region
          _
        $region232: #{forward.1} parent=11 // pred_fallthru
          _
        // Predicated region
        $region233: #{forward.1} parent=11 // pred_check
          %p2029 = pneg %p1367
        $region234: #{forward.1} parent=11 // pred_check_branch
          %2031 = sbr.rel (%p2029) target = $region236
        $region235: #{forward.1} parent=11 // pred_region
          _
        $region236: #{forward.1} parent=11 // pred_fallthru
          _
        // Predicated region
        $region237: #{forward.1} parent=11 // pred_check
          %p2032 = pneg %p1388
        $region238: #{forward.1} parent=11 // pred_check_branch
          %2034 = sbr.rel (%p2032) target = $region240
        $region239: #{forward.1} parent=11 // pred_region
          %2036 = vsyncadd [#allocation30], 0
          %s2038 = sshll.u32 %s115, 4
          %s2039 = int_to_ptr.hbm [resolvable:$true] %s2038
          %s2040 = sshll.u32 [#allocation31], 4
          %s2041 = int_to_ptr.vmem [resolvable:$true] %s2040
          %2043 = dma.hbm_to_vmem [thread:$0]  %s2039, 16, %s2041, [#allocation30]
        $region240: #{forward.1} parent=11 // pred_fallthru
          _
        // Predicated region
        $region241: #{forward.1} parent=11 // pred_check
          %p2044 = pneg %p1409
        $region242: #{forward.1} parent=11 // pred_check_branch
          %2046 = sbr.rel (%p2044) target = $region244
        $region243: #{forward.1} parent=11 // pred_region
          %2048 = vsyncadd [#allocation33], 0
          %s2050 = sshll.u32 %s117, 4
          %s2051 = int_to_ptr.hbm [resolvable:$true] %s2050
          %s2052 = sshll.u32 [#allocation32], 4
          %s2053 = int_to_ptr.vmem [resolvable:$true] %s2052
          %2055 = dma.hbm_to_vmem [thread:$0]  %s2051, 16, %s2053, [#allocation33]
        $region244: #{forward.1} parent=11 // pred_fallthru
          _
        // Predicated region
        $region245: #{forward.1} parent=11 // pred_check
          %p2056 = pneg %p1430
        $region246: #{forward.1} parent=11 // pred_check_branch
          %2058 = sbr.rel (%p2056) target = $region248
        $region247: #{forward.1} parent=11 // pred_region
          _
        $region248: #{forward.1} parent=11 // pred_fallthru
          _
        // Predicated region
        $region249: #{forward.1} parent=11 // pred_check
          %p2059 = pneg %p1451
        $region250: #{forward.1} parent=11 // pred_check_branch
          %2061 = sbr.rel (%p2059) target = $region252
        $region251: #{forward.1} parent=11 // pred_region
          _
        $region252: #{forward.1} parent=11 // pred_fallthru
          _
        // Predicated region
        $region253: #{forward.1} parent=11 // pred_check
          %p2062 = pneg %p1472
        $region254: #{forward.1} parent=11 // pred_check_branch
          %2064 = sbr.rel (%p2062) target = $region256
        $region255: #{forward.1} parent=11 // pred_region
          _
        $region256: #{forward.1} parent=11 // pred_fallthru
          _
        // Predicated region
        $region257: #{forward.1} parent=11 // pred_check
          %p2065 = pneg %p1493
        $region258: #{forward.1} parent=11 // pred_check_branch
          %2067 = sbr.rel (%p2065) target = $region260
        $region259: #{forward.1} parent=11 // pred_region
          %2069 = vsyncadd [#allocation33], 0
          %s2071 = sshll.u32 %s125, 4
          %s2072 = int_to_ptr.hbm [resolvable:$true] %s2071
          %s2073 = sshll.u32 [#allocation34], 4
          %s2074 = int_to_ptr.vmem [resolvable:$true] %s2073
          %2076 = dma.hbm_to_vmem [thread:$0]  %s2072, 16, %s2074, [#allocation33]
        $region260: #{forward.1} parent=11 // pred_fallthru
          _
        // Predicated region
        $region261: #{forward.1} parent=11 // pred_check
          %p2077 = pneg %p1514
        $region262: #{forward.1} parent=11 // pred_check_branch
          %2079 = sbr.rel (%p2077) target = $region264
        $region263: #{forward.1} parent=11 // pred_region
          %2081 = vsyncadd [#allocation36], 0
          %s2083 = sshll.u32 %s127, 4
          %s2084 = int_to_ptr.hbm [resolvable:$true] %s2083
          %s2085 = sshll.u32 [#allocation35], 4
          %s2086 = int_to_ptr.vmem [resolvable:$true] %s2085
          %2088 = dma.hbm_to_vmem [thread:$0]  %s2084, 16, %s2086, [#allocation36]
        $region264: #{forward.1} parent=11 // pred_fallthru
          _
        // Predicated region
        $region265: #{forward.1} parent=11 // pred_check
          %p2089 = pneg %p1535
        $region266: #{forward.1} parent=11 // pred_check_branch
          %2091 = sbr.rel (%p2089) target = $region268
        $region267: #{forward.1} parent=11 // pred_region
          _
        $region268: #{forward.1} parent=11 // pred_fallthru
          _
        // Predicated region
        $region269: #{forward.1} parent=11 // pred_check
          %p2092 = pneg %p1556
        $region270: #{forward.1} parent=11 // pred_check_branch
          %2094 = sbr.rel (%p2092) target = $region272
        $region271: #{forward.1} parent=11 // pred_region
          _
        $region272: #{forward.1} parent=11 // pred_fallthru
          _
        // Predicated region
        $region273: #{forward.1} parent=11 // pred_check
          %p2095 = pneg %p1577
        $region274: #{forward.1} parent=11 // pred_check_branch
          %2097 = sbr.rel (%p2095) target = $region276
        $region275: #{forward.1} parent=11 // pred_region
          %2099 = vsyncadd [#allocation36], 0
          %s2101 = sshll.u32 %s133, 4
          %s2102 = int_to_ptr.hbm [resolvable:$true] %s2101
          %s2103 = sshll.u32 [#allocation37], 4
          %s2104 = int_to_ptr.vmem [resolvable:$true] %s2103
          %2106 = dma.hbm_to_vmem [thread:$0]  %s2102, 16, %s2104, [#allocation36]
        $region276: #{forward.1} parent=11 // pred_fallthru
          _
        // Predicated region
        $region277: #{forward.1} parent=11 // pred_check
          %p2107 = pneg %p1598
        $region278: #{forward.1} parent=11 // pred_check_branch
          %2109 = sbr.rel (%p2107) target = $region280
        $region279: #{forward.1} parent=11 // pred_region
          _
        $region280: #{forward.1} parent=11 // pred_fallthru
          _
        // Predicated region
        $region281: #{forward.1} parent=11 // pred_check
          %p2110 = pneg %p1619
        $region282: #{forward.1} parent=11 // pred_check_branch
          %2112 = sbr.rel (%p2110) target = $region284
        $region283: #{forward.1} parent=11 // pred_region
          _
        $region284: #{forward.1} parent=11 // pred_fallthru
          _
        // Predicated region
        $region285: #{forward.1} parent=11 // pred_check
          %p2113 = pneg %p1640
        $region286: #{forward.1} parent=11 // pred_check_branch
          %2115 = sbr.rel (%p2113) target = $region288
        $region287: #{forward.1} parent=11 // pred_region
          %2117 = vsyncadd [#allocation39], 0
          %s2119 = sshll.u32 %s139, 4
          %s2120 = int_to_ptr.hbm [resolvable:$true] %s2119
          %s2121 = sshll.u32 [#allocation38], 4
          %s2122 = int_to_ptr.vmem [resolvable:$true] %s2121
          %2124 = dma.hbm_to_vmem [thread:$0]  %s2120, 16, %s2122, [#allocation39]
        $region288: #{forward.1} parent=11 // pred_fallthru
          _
        // Predicated region
        $region289: #{forward.1} parent=11 // pred_check
          %p2125 = pneg %p1661
        $region290: #{forward.1} parent=11 // pred_check_branch
          %2127 = sbr.rel (%p2125) target = $region292
        $region291: #{forward.1} parent=11 // pred_region
          %2129 = vsyncadd [#allocation39], 0
          %s2131 = sshll.u32 %s141, 4
          %s2132 = int_to_ptr.hbm [resolvable:$true] %s2131
          %s2133 = sshll.u32 [#allocation40], 4
          %s2134 = int_to_ptr.vmem [resolvable:$true] %s2133
          %2136 = dma.hbm_to_vmem [thread:$0]  %s2132, 16, %s2134, [#allocation39]
        $region292: #{forward.1} parent=11 // pred_fallthru
          _
      $region12: #{forward.1} parent=5 // pred_fallthru
        _
      %p2137 = scmp.lt.s32.totalorder %s165, 2
      // Predicated region
      $region293: #{forward.1} parent=5 // pred_check
        %p2138 = pneg %p2137
      $region294: #{forward.1} parent=5 // pred_check_branch
        %2140 = sbr.rel (%p2138) target = $region296
      $region295: #{forward.1} parent=5 // pred_region
        // Predicated region
        $region297: #{forward.1} parent=295 // pred_check
          %p2141 = pneg %p185
        $region298: #{forward.1} parent=295 // pred_check_branch
          %2143 = sbr.rel (%p2141) target = $region300
        $region299: #{forward.1} parent=295 // pred_region
          %p2144 = scmp.lt.s32.totalorder %s165, 1
          %s2145 = scalar_select %p2144, %s165, 1
          %s2146 = smul.addr %s2145, 32
          %s2147 = smul.addr %s2146, 8
          %s2148 = scalar_lea.vmem %s1, %s2147
        $region300: #{forward.1} parent=295 // pred_fallthru
          _
      $region296: #{forward.1} parent=5 // pred_fallthru
        _
      %p2149 = scmp.le.s32.totalorder 1, %s165
      %p2150 = scmp.lt.s32.totalorder %s165, 3
      %p2151 = pnand %p2149, %p2150
      %p2152 = pneg %p2151
      // Predicated region
      $region301: #{forward.1} parent=5 // pred_check
        _
      $region302: #{forward.1} parent=5 // pred_check_branch
        %2154 = sbr.rel (%p2151) target = $region304
      $region303: #{forward.1} parent=5 // pred_region
        %s2155 = ssub.s32 %s165, 1
        // Predicated region
        $region305: #{forward.1} parent=303 // pred_check
          %p2156 = pneg %p233
        $region306: #{forward.1} parent=303 // pred_check_branch
          %2158 = sbr.rel (%p2156) target = $region308
        $region307: #{forward.1} parent=303 // pred_region
          %2160 = dma.done [#allocation3], 16
        $region308: #{forward.1} parent=303 // pred_fallthru
          _
        // Predicated region
        $region309: #{forward.1} parent=303 // pred_check
          %p2161 = pneg %p254
        $region310: #{forward.1} parent=303 // pred_check_branch
          %2163 = sbr.rel (%p2161) target = $region312
        $region311: #{forward.1} parent=303 // pred_region
          %2165 = dma.done [#allocation6], 16
        $region312: #{forward.1} parent=303 // pred_fallthru
          _
        // Predicated region
        $region313: #{forward.1} parent=303 // pred_check
          %p2166 = pneg %p317
        $region314: #{forward.1} parent=303 // pred_check_branch
          %2168 = sbr.rel (%p2166) target = $region316
        $region315: #{forward.1} parent=303 // pred_region
          %2170 = dma.done [#allocation6], 16
        $region316: #{forward.1} parent=303 // pred_fallthru
          _
        // Predicated region
        $region317: #{forward.1} parent=303 // pred_check
          %p2171 = pneg %p338
        $region318: #{forward.1} parent=303 // pred_check_branch
          %2173 = sbr.rel (%p2171) target = $region320
        $region319: #{forward.1} parent=303 // pred_region
          %2175 = dma.done [#allocation9], 16
        $region320: #{forward.1} parent=303 // pred_fallthru
          _
        // Predicated region
        $region321: #{forward.1} parent=303 // pred_check
          %p2176 = pneg %p401
        $region322: #{forward.1} parent=303 // pred_check_branch
          %2178 = sbr.rel (%p2176) target = $region324
        $region323: #{forward.1} parent=303 // pred_region
          %2180 = dma.done [#allocation9], 16
        $region324: #{forward.1} parent=303 // pred_fallthru
          _
        // Predicated region
        $region325: #{forward.1} parent=303 // pred_check
          %p2181 = pneg %p464
        $region326: #{forward.1} parent=303 // pred_check_branch
          %2183 = sbr.rel (%p2181) target = $region328
        $region327: #{forward.1} parent=303 // pred_region
          %2185 = dma.done [#allocation12], 16
        $region328: #{forward.1} parent=303 // pred_fallthru
          _
        // Predicated region
        $region329: #{forward.1} parent=303 // pred_check
          %p2186 = pneg %p485
        $region330: #{forward.1} parent=303 // pred_check_branch
          %2188 = sbr.rel (%p2186) target = $region332
        $region331: #{forward.1} parent=303 // pred_region
          %2190 = dma.done [#allocation12], 16
        $region332: #{forward.1} parent=303 // pred_fallthru
          _
        // Predicated region
        $region333: #{forward.1} parent=303 // pred_check
          %p2191 = pneg %p569
        $region334: #{forward.1} parent=303 // pred_check_branch
          %2193 = sbr.rel (%p2191) target = $region336
        $region335: #{forward.1} parent=303 // pred_region
          %2195 = dma.done [#allocation15], 16
        $region336: #{forward.1} parent=303 // pred_fallthru
          _
        // Predicated region
        $region337: #{forward.1} parent=303 // pred_check
          %p2196 = pneg %p590
        $region338: #{forward.1} parent=303 // pred_check_branch
          %2198 = sbr.rel (%p2196) target = $region340
        $region339: #{forward.1} parent=303 // pred_region
          %2200 = dma.done [#allocation15], 16
        $region340: #{forward.1} parent=303 // pred_fallthru
          _
        // Predicated region
        $region341: #{forward.1} parent=303 // pred_check
          %p2201 = pneg %p653
        $region342: #{forward.1} parent=303 // pred_check_branch
          %2203 = sbr.rel (%p2201) target = $region344
        $region343: #{forward.1} parent=303 // pred_region
          %2205 = dma.done [#allocation18], 16
        $region344: #{forward.1} parent=303 // pred_fallthru
          _
        // Predicated region
        $region345: #{forward.1} parent=303 // pred_check
          %p2206 = pneg %p716
        $region346: #{forward.1} parent=303 // pred_check_branch
          %2208 = sbr.rel (%p2206) target = $region348
        $region347: #{forward.1} parent=303 // pred_region
          %2210 = dma.done [#allocation18], 16
        $region348: #{forward.1} parent=303 // pred_fallthru
          _
        // Predicated region
        $region349: #{forward.1} parent=303 // pred_check
          %p2211 = pneg %p737
        $region350: #{forward.1} parent=303 // pred_check_branch
          %2213 = sbr.rel (%p2211) target = $region352
        $region351: #{forward.1} parent=303 // pred_region
          %2215 = dma.done [#allocation21], 16
        $region352: #{forward.1} parent=303 // pred_fallthru
          _
        // Predicated region
        $region353: #{forward.1} parent=303 // pred_check
          %p2216 = pneg %p779
        $region354: #{forward.1} parent=303 // pred_check_branch
          %2218 = sbr.rel (%p2216) target = $region356
        $region355: #{forward.1} parent=303 // pred_region
          %2220 = dma.done [#allocation21], 16
        $region356: #{forward.1} parent=303 // pred_fallthru
          _
        // Predicated region
        $region357: #{forward.1} parent=303 // pred_check
          %p2221 = pneg %p800
        $region358: #{forward.1} parent=303 // pred_check_branch
          %2223 = sbr.rel (%p2221) target = $region360
        $region359: #{forward.1} parent=303 // pred_region
          %2225 = dma.done [#allocation24], 16
        $region360: #{forward.1} parent=303 // pred_fallthru
          _
        // Predicated region
        $region361: #{forward.1} parent=303 // pred_check
          %p2226 = pneg %p863
        $region362: #{forward.1} parent=303 // pred_check_branch
          %2228 = sbr.rel (%p2226) target = $region364
        $region363: #{forward.1} parent=303 // pred_region
          %2230 = dma.done [#allocation24], 16
        $region364: #{forward.1} parent=303 // pred_fallthru
          _
        // Predicated region
        $region365: #{forward.1} parent=303 // pred_check
          %p2231 = pneg %p1241
        $region366: #{forward.1} parent=303 // pred_check_branch
          %2233 = sbr.rel (%p2231) target = $region368
        $region367: #{forward.1} parent=303 // pred_region
          %2235 = dma.done [#allocation27], 16
        $region368: #{forward.1} parent=303 // pred_fallthru
          _
        // Predicated region
        $region369: #{forward.1} parent=303 // pred_check
          %p2236 = pneg %p1262
        $region370: #{forward.1} parent=303 // pred_check_branch
          %2238 = sbr.rel (%p2236) target = $region372
        $region371: #{forward.1} parent=303 // pred_region
          %2240 = dma.done [#allocation27], 16
        $region372: #{forward.1} parent=303 // pred_fallthru
          _
        // Predicated region
        $region373: #{forward.1} parent=303 // pred_check
          %p2241 = pneg %p1325
        $region374: #{forward.1} parent=303 // pred_check_branch
          %2243 = sbr.rel (%p2241) target = $region376
        $region375: #{forward.1} parent=303 // pred_region
          %2245 = dma.done [#allocation30], 16
        $region376: #{forward.1} parent=303 // pred_fallthru
          _
        // Predicated region
        $region377: #{forward.1} parent=303 // pred_check
          %p2246 = pneg %p1388
        $region378: #{forward.1} parent=303 // pred_check_branch
          %2248 = sbr.rel (%p2246) target = $region380
        $region379: #{forward.1} parent=303 // pred_region
          %2250 = dma.done [#allocation30], 16
        $region380: #{forward.1} parent=303 // pred_fallthru
          _
        // Predicated region
        $region381: #{forward.1} parent=303 // pred_check
          %p2251 = pneg %p1409
        $region382: #{forward.1} parent=303 // pred_check_branch
          %2253 = sbr.rel (%p2251) target = $region384
        $region383: #{forward.1} parent=303 // pred_region
          %2255 = dma.done [#allocation33], 16
        $region384: #{forward.1} parent=303 // pred_fallthru
          _
        // Predicated region
        $region385: #{forward.1} parent=303 // pred_check
          %p2256 = pneg %p1493
        $region386: #{forward.1} parent=303 // pred_check_branch
          %2258 = sbr.rel (%p2256) target = $region388
        $region387: #{forward.1} parent=303 // pred_region
          %2260 = dma.done [#allocation33], 16
        $region388: #{forward.1} parent=303 // pred_fallthru
          _
        // Predicated region
        $region389: #{forward.1} parent=303 // pred_check
          %p2261 = pneg %p1514
        $region390: #{forward.1} parent=303 // pred_check_branch
          %2263 = sbr.rel (%p2261) target = $region392
        $region391: #{forward.1} parent=303 // pred_region
          %2265 = dma.done [#allocation36], 16
        $region392: #{forward.1} parent=303 // pred_fallthru
          _
        // Predicated region
        $region393: #{forward.1} parent=303 // pred_check
          %p2266 = pneg %p1577
        $region394: #{forward.1} parent=303 // pred_check_branch
          %2268 = sbr.rel (%p2266) target = $region396
        $region395: #{forward.1} parent=303 // pred_region
          %2270 = dma.done [#allocation36], 16
        $region396: #{forward.1} parent=303 // pred_fallthru
          _
        // Predicated region
        $region397: #{forward.1} parent=303 // pred_check
          %p2271 = pneg %p1640
        $region398: #{forward.1} parent=303 // pred_check_branch
          %2273 = sbr.rel (%p2271) target = $region400
        $region399: #{forward.1} parent=303 // pred_region
          %2275 = dma.done [#allocation39], 16
        $region400: #{forward.1} parent=303 // pred_fallthru
          _
        // Predicated region
        $region401: #{forward.1} parent=303 // pred_check
          %p2276 = pneg %p1661
        $region402: #{forward.1} parent=303 // pred_check_branch
          %2278 = sbr.rel (%p2276) target = $region404
        $region403: #{forward.1} parent=303 // pred_region
          %2280 = dma.done [#allocation39], 16
        $region404: #{forward.1} parent=303 // pred_fallthru
          _
        %p2281 = scmp.lt.s32.totalorder %s170, 1
        %s2282 = scalar_select %p2281, %s170, 1
        %s2283 = smul.addr %s2282, 32
        %s2284 = smul.addr %s2283, 8
        %s2285 = scalar_lea.vmem %s1, %s2284
        %p2286 = pneg %p191
        %p2287 = pneg %p188
        %p2288 = pneg %p212
        %p2289 = pneg %p209
        %p2290 = pneg %p233
        %p2291 = pneg %p230
        %p2292 = pneg %p254
        %p2293 = pneg %p251
        %p2294 = pneg %p275
        %p2295 = pneg %p272
        %p2296 = pneg %p296
        %p2297 = pneg %p293
        %p2298 = pneg %p317
        %p2299 = pneg %p314
        %p2300 = pneg %p338
        %p2301 = pneg %p335
        %p2302 = pneg %p359
        %p2303 = pneg %p356
        %p2304 = pneg %p380
        %p2305 = pneg %p377
        %p2306 = pneg %p401
        %p2307 = pneg %p398
        %p2308 = pneg %p422
        %p2309 = pneg %p419
        %p2310 = pneg %p443
        %p2311 = pneg %p440
        %p2312 = pneg %p464
        %p2313 = pneg %p461
        %p2314 = pneg %p485
        %p2315 = pneg %p482
        %p2316 = pneg %p506
        %p2317 = pneg %p503
        %p2318 = pneg %p527
        %p2319 = pneg %p524
        %p2320 = pneg %p548
        %p2321 = pneg %p545
        %p2322 = pneg %p569
        %p2323 = pneg %p566
        %p2324 = pneg %p590
        %p2325 = pneg %p587
        %p2326 = pneg %p611
        %p2327 = pneg %p608
        %p2328 = pneg %p632
        %p2329 = pneg %p629
        %p2330 = pneg %p653
        %p2331 = pneg %p650
        %p2332 = pneg %p674
        %p2333 = pneg %p671
        %p2334 = pneg %p695
        %p2335 = pneg %p692
        %p2336 = pneg %p716
        %p2337 = pneg %p713
        %p2338 = pneg %p737
        %p2339 = pneg %p734
        %p2340 = pneg %p758
        %p2341 = pneg %p755
        %p2342 = pneg %p779
        %p2343 = pneg %p776
        %p2344 = pneg %p800
        %p2345 = pneg %p797
        %p2346 = pneg %p821
        %p2347 = pneg %p818
        %p2348 = pneg %p842
        %p2349 = pneg %p839
        %p2350 = pneg %p863
        %p2351 = pneg %p860
        %p2352 = pneg %p884
        %p2353 = pneg %p881
        %p2354 = pneg %p905
        %p2355 = pneg %p902
        %p2356 = pneg %p926
        %p2357 = pneg %p923
        %p2358 = pneg %p947
        %p2359 = pneg %p944
        %p2360 = pneg %p968
        %p2361 = pneg %p965
        %p2362 = pneg %p989
        %p2363 = pneg %p986
        %p2364 = pneg %p1010
        %p2365 = pneg %p1007
        %p2366 = pneg %p1031
        %p2367 = pneg %p1028
        %p2368 = pneg %p1052
        %p2369 = pneg %p1049
        %p2370 = pneg %p1073
        %p2371 = pneg %p1070
        %p2372 = pneg %p1094
        %p2373 = pneg %p1091
        %p2374 = pneg %p1115
        %p2375 = pneg %p1112
        %p2376 = pneg %p1136
        %p2377 = pneg %p1133
        %p2378 = pneg %p1157
        %p2379 = pneg %p1154
        %p2380 = pneg %p1178
        %p2381 = pneg %p1175
        %p2382 = pneg %p1199
        %p2383 = pneg %p1196
        %p2384 = pneg %p1220
        %p2385 = pneg %p1217
        %p2386 = pneg %p1241
        %p2387 = pneg %p1238
        %p2388 = pneg %p1262
        %p2389 = pneg %p1259
        %p2390 = pneg %p1283
        %p2391 = pneg %p1280
        %p2392 = pneg %p1304
        %p2393 = pneg %p1301
        %p2394 = pneg %p1325
        %p2395 = pneg %p1322
        %p2396 = pneg %p1346
        %p2397 = pneg %p1343
        %p2398 = pneg %p1367
        %p2399 = pneg %p1364
        %p2400 = pneg %p1388
        %p2401 = pneg %p1385
        %p2402 = pneg %p1409
        %p2403 = pneg %p1406
        %p2404 = pneg %p1430
        %p2405 = pneg %p1427
        %p2406 = pneg %p1451
        %p2407 = pneg %p1448
        %p2408 = pneg %p1472
        %p2409 = pneg %p1469
        %p2410 = pneg %p1493
        %p2411 = pneg %p1490
        %p2412 = pneg %p1514
        %p2413 = pneg %p1511
        %p2414 = pneg %p1535
        %p2415 = pneg %p1532
        %p2416 = pneg %p1556
        %p2417 = pneg %p1553
        %p2418 = pneg %p1577
        %p2419 = pneg %p1574
        %p2420 = pneg %p1598
        %p2421 = pneg %p1595
        %p2422 = pneg %p1619
        %p2423 = pneg %p1616
        %p2424 = pneg %p1640
        %p2425 = pneg %p1637
        %p2426 = pneg %p1661
        %p2427 = pneg %p1658
        %p2428 = pneg %p1687
        %p2429 = pneg %p1684
        %s2430 = sand.u32 %s1674, 1
        %s2431 = scalar_lea.sflag [#allocation4], %s2430
        %s2432 = sand.u32 %s1674, 1
        %s2433 = scalar_lea.vmem [#allocation41], %s2432
        %p2434 = scmp.lt.s32.totalorder %s170, 1
        %s2435 = scalar_select %p2434, %s170, 1
        %s2436 = smul.addr %s2435, 32
        %s2437 = smul.addr %s2436, 8
        %s2438 = scalar_lea.vmem %s1, %s2437
        %v2440 = vld [vmem:[%s3] sm:$0xf]
        %v2441 = vld [vmem:[%s3 + $0x4] sm:$0xf]
        %v2442 = vld [vmem:[%s3 + $0x8] sm:$0xf]
        %v2443 = vld [vmem:[%s3 + $0xc] sm:$0x3]
        %v2444 = vld [vmem:[#allocation2] sm:$0x1]
        %v2445 = vld [vmem:[#allocation5] sm:$0x1]
        %v2446 = vld [vmem:[%s9] sm:$0xff]
        %v2447 = vld [vmem:[%s9 + $0x8] sm:$0xff]
        %v2448 = vld [vmem:[%s9 + $0x10] sm:$0xff]
        %v2449 = vld [vmem:[%s9 + $0x18] sm:$0xff]
        %v2450 = vld [vmem:[%s9 + $0x20] sm:$0xff]
        %v2451 = vld [vmem:[%s9 + $0x28] sm:$0xff]
        %v2452 = vld [vmem:[%s9 + $0x30] sm:$0xff]
        %v2453 = vld [vmem:[%s9 + $0x38] sm:$0xff]
        %v2454 = vld [vmem:[%s9 + $0x40] sm:$0xff]
        %v2455 = vld [vmem:[%s9 + $0x48] sm:$0xff]
        %v2456 = vld [vmem:[%s9 + $0x50] sm:$0xff]
        %v2457 = vld [vmem:[%s9 + $0x58] sm:$0xff]
        %v2458 = vld [vmem:[%s9 + $0x60] sm:$0xff]
        %v2459 = vld [vmem:[%s9 + $0x68] sm:$0xff]
        %v2460 = vld [vmem:[%s9 + $0x70] sm:$0xff]
        %v2461 = vld [vmem:[%s9 + $0x78] sm:$0xff]
        %v2462 = vld [vmem:[%s9 + $0x80] sm:$0xff]
        %v2463 = vld [vmem:[%s9 + $0x88] sm:$0xff]
        %v2464 = vld [vmem:[%s9 + $0x90] sm:$0xff]
        %v2465 = vld [vmem:[%s9 + $0x98] sm:$0xff]
        %v2466 = vld [vmem:[%s9 + $0xa0] sm:$0xff]
        %v2467 = vld [vmem:[%s9 + $0xa8] sm:$0xff]
        %v2468 = vld [vmem:[%s9 + $0xb0] sm:$0xff]
        %v2469 = vld [vmem:[%s9 + $0xb8] sm:$0xff]
        %v2470 = vld [vmem:[%s9 + $0xc0] sm:$0xff]
        %v2471 = vld [vmem:[%s9 + $0xc8] sm:$0xff]
        %v2472 = vld [vmem:[%s9 + $0xd0] sm:$0xff]
        %v2473 = vld [vmem:[%s9 + $0xd8] sm:$0xff]
        %v2474 = vld [vmem:[%s9 + $0xe0] sm:$0xff]
        %v2475 = vld [vmem:[%s9 + $0xe8] sm:$0xff]
        %v2476 = vld [vmem:[%s9 + $0xf0] sm:$0xff]
        %v2477 = vld [vmem:[%s9 + $0xf8] sm:$0xff]
        %v2478 = vld [vmem:[%s9 + $0x100] sm:$0xff]
        %v2479 = vld [vmem:[%s9 + $0x108] sm:$0xff]
        %v2480 = vld [vmem:[%s9 + $0x110] sm:$0xff]
        %v2481 = vld [vmem:[%s9 + $0x118] sm:$0xff]
        %v2482 = vld [vmem:[%s9 + $0x120] sm:$0xff]
        %v2483 = vld [vmem:[%s9 + $0x128] sm:$0xff]
        %v2484 = vld [vmem:[%s9 + $0x130] sm:$0xff]
        %v2485 = vld [vmem:[%s9 + $0x138] sm:$0xff]
        %v2486 = vld [vmem:[%s9 + $0x140] sm:$0xff]
        %v2487 = vld [vmem:[%s9 + $0x148] sm:$0xff]
        %v2488 = vld [vmem:[%s9 + $0x150] sm:$0xff]
        %v2489 = vld [vmem:[%s9 + $0x158] sm:$0xff]
        %v2490 = vld [vmem:[%s9 + $0x160] sm:$0xff]
        %v2491 = vld [vmem:[%s9 + $0x168] sm:$0xff]
        %v2492 = vld [vmem:[%s9 + $0x170] sm:$0xff]
        %v2493 = vld [vmem:[%s9 + $0x178] sm:$0xff]
        %v2494 = vld [vmem:[%s9 + $0x180] sm:$0xff]
        %v2495 = vld [vmem:[%s9 + $0x188] sm:$0xff]
        %v2496 = vld [vmem:[%s9 + $0x190] sm:$0xff]
        %v2497 = vld [vmem:[%s9 + $0x198] sm:$0xff]
        %v2498 = vld [vmem:[%s9 + $0x1a0] sm:$0xff]
        %v2499 = vld [vmem:[%s9 + $0x1a8] sm:$0xff]
        %v2500 = vld [vmem:[%s9 + $0x1b0] sm:$0xff]
        %v2501 = vld [vmem:[%s9 + $0x1b8] sm:$0xff]
        %v2502 = vld [vmem:[%s9 + $0x1c0] sm:$0xff]
        %v2503 = vld [vmem:[%s9 + $0x1c8] sm:$0xff]
        %v2504 = vld [vmem:[%s9 + $0x1d0] sm:$0xff]
        %v2505 = vld [vmem:[%s9 + $0x1d8] sm:$0xff]
        %v2506 = vld [vmem:[%s9 + $0x1e0] sm:$0xff]
        %v2507 = vld [vmem:[%s9 + $0x1e8] sm:$0xff]
        %v2508 = vld [vmem:[%s9 + $0x1f0] sm:$0xff]
        %v2509 = vld [vmem:[%s9 + $0x1f8] sm:$0xff]
        %v2510 = vld [vmem:[%s9 + $0x200] sm:$0xff]
        %v2511 = vld [vmem:[%s9 + $0x208] sm:$0xff]
        %v2512 = vld [vmem:[%s9 + $0x210] sm:$0xff]
        %v2513 = vld [vmem:[%s9 + $0x218] sm:$0xff]
        %v2514 = vld [vmem:[%s9 + $0x220] sm:$0xff]
        %v2515 = vld [vmem:[%s9 + $0x228] sm:$0xff]
        %v2516 = vld [vmem:[%s9 + $0x230] sm:$0xff]
        %v2517 = vld [vmem:[%s9 + $0x238] sm:$0xff]
        %v2518 = vld [vmem:[%s2438] sm:$0xff]
        %v2519 = vld [vmem:[%s2438 + $0x8] sm:$0xff]
        %v2520 = vld [vmem:[%s2438 + $0x10] sm:$0xff]
        %v2521 = vld [vmem:[%s2438 + $0x18] sm:$0xff]
        %v2522 = vld [vmem:[%s2438 + $0x20] sm:$0xff]
        %v2523 = vld [vmem:[%s2438 + $0x28] sm:$0xff]
        %v2524 = vld [vmem:[%s2438 + $0x30] sm:$0xff]
        %v2525 = vld [vmem:[%s2438 + $0x38] sm:$0xff]
        %v2526 = vld [vmem:[%s2438 + $0x40] sm:$0xff]
        %v2527 = vld [vmem:[%s2438 + $0x48] sm:$0xff]
        %v2528 = vld [vmem:[%s2438 + $0x50] sm:$0xff]
        %v2529 = vld [vmem:[%s2438 + $0x58] sm:$0xff]
        %v2530 = vld [vmem:[%s2438 + $0x60] sm:$0xff]
        %v2531 = vld [vmem:[%s2438 + $0x68] sm:$0xff]
        %v2532 = vld [vmem:[%s2438 + $0x70] sm:$0xff]
        %v2533 = vld [vmem:[%s2438 + $0x78] sm:$0xff]
        %v2534 = vld [vmem:[%s2438 + $0x80] sm:$0xff]
        %v2535 = vld [vmem:[%s2438 + $0x88] sm:$0xff]
        %v2536 = vld [vmem:[%s2438 + $0x90] sm:$0xff]
        %v2537 = vld [vmem:[%s2438 + $0x98] sm:$0xff]
        %v2538 = vld [vmem:[%s2438 + $0xa0] sm:$0xff]
        %v2539 = vld [vmem:[%s2438 + $0xa8] sm:$0xff]
        %v2540 = vld [vmem:[%s2438 + $0xb0] sm:$0xff]
        %v2541 = vld [vmem:[%s2438 + $0xb8] sm:$0xff]
        %v2542 = vld [vmem:[%s2438 + $0xc0] sm:$0xff]
        %v2543 = vld [vmem:[%s2438 + $0xc8] sm:$0xff]
        %v2544 = vld [vmem:[%s2438 + $0xd0] sm:$0xff]
        %v2545 = vld [vmem:[%s2438 + $0xd8] sm:$0xff]
        %v2546 = vld [vmem:[%s2438 + $0xe0] sm:$0xff]
        %v2547 = vld [vmem:[%s2438 + $0xe8] sm:$0xff]
        %v2548 = vld [vmem:[%s2438 + $0xf0] sm:$0xff]
        %v2549 = vld [vmem:[%s2438 + $0xf8] sm:$0xff]
        %v2550 = vpack.c.bf16 %v2519, %v2518
        %v2551 = vpack.c.bf16 %v2521, %v2520
        %v2552 = vpack.c.bf16 %v2523, %v2522
        %v2553 = vpack.c.bf16 %v2525, %v2524
        %v2554 = vpack.c.bf16 %v2527, %v2526
        %v2555 = vpack.c.bf16 %v2529, %v2528
        %v2556 = vpack.c.bf16 %v2531, %v2530
        %v2557 = vpack.c.bf16 %v2533, %v2532
        %v2558 = vpack.c.bf16 %v2535, %v2534
        %v2559 = vpack.c.bf16 %v2537, %v2536
        %v2560 = vpack.c.bf16 %v2539, %v2538
        %v2561 = vpack.c.bf16 %v2541, %v2540
        %v2562 = vpack.c.bf16 %v2543, %v2542
        %v2563 = vpack.c.bf16 %v2545, %v2544
        %v2564 = vpack.c.bf16 %v2547, %v2546
        %v2565 = vpack.c.bf16 %v2549, %v2548
        %v2570 = vunpack.c.l.b16 %v2440
        %v2571 = vunpack.c.l.b16 %v2441
        %v2572 = vunpack.c.l.b16 %v2442
        %v2573 = vunpack.c.l.b16 %v2443
        %v2574 = vpack.c.b16 %v2571, %v2570
        %v2575 = vpack.c.b16 %v2573, %v2572
        %vm2577 = vcmask 220160
        %v2579 = vsel %vm2577, %v2550, 0
        %v2582 = vsel %vm2577, %v2551, 0
        %v2585 = vsel %vm2577, %v2552, 0
        %v2588 = vsel %vm2577, %v2553, 0
        %v2591 = vsel %vm2577, %v2554, 0
        %v2594 = vsel %vm2577, %v2555, 0
        %v2597 = vsel %vm2577, %v2556, 0
        %v2600 = vsel %vm2577, %v2557, 0
        %v2603 = vsel %vm2577, %v2558, 0
        %v2606 = vsel %vm2577, %v2559, 0
        %v2609 = vsel %vm2577, %v2560, 0
        %v2612 = vsel %vm2577, %v2561, 0
        %v2615 = vsel %vm2577, %v2562, 0
        %v2618 = vsel %vm2577, %v2563, 0
        %v2621 = vsel %vm2577, %v2564, 0
        %v2624 = vsel %vm2577, %v2565, 0
        %vm2626 = vcmask 1044480
        %vm2627 = vcmask 1045504
        %v2628 = vsel %vm2626, 4294967295, 65535
        %v2629 = vsel %vm2627, %v2628, 0
        %v2631 = vand.u32 %v2575, %v2629
        %2633 = vmatpush.bf16.msra.mxu0 0
        %2634 = vmatpush.bf16.msra.mxu0 0
        %2635 = vmatpush.bf16.msra.mxu0 0
        %2636 = vmatpush.bf16.msra.mxu0 0
        %2637 = vmatpush.bf16.msra.mxu0 0
        %2638 = vmatpush.bf16.msra.mxu0 0
        %2639 = vmatpush.bf16.msra.mxu0 %v2631
        %2640 = vmatpush.bf16.msra.mxu0 %v2574
        %2641 = vmatmul.bf16.gmra.mxu0 %v2579
        %v2642 = vpop.f32.mrf.mxu0
        %v2643 = vadd.f32 0.0, %v2642
        %v2644 = vpop.f32.mrf.mxu0
        %v2645 = vadd.f32 0.0, %v2644
        %2646 = vmatmul.bf16.gmra.mxu0 %v2582
        %v2647 = vpop.f32.mrf.mxu0
        %v2648 = vadd.f32 0.0, %v2647
        %v2649 = vpop.f32.mrf.mxu0
        %v2650 = vadd.f32 0.0, %v2649
        %2651 = vmatmul.bf16.gmra.mxu0 %v2585
        %v2652 = vpop.f32.mrf.mxu0
        %v2653 = vadd.f32 0.0, %v2652
        %v2654 = vpop.f32.mrf.mxu0
        %v2655 = vadd.f32 0.0, %v2654
        %2656 = vmatmul.bf16.gmra.mxu0 %v2588
        %v2657 = vpop.f32.mrf.mxu0
        %v2658 = vadd.f32 0.0, %v2657
        %v2659 = vpop.f32.mrf.mxu0
        %v2660 = vadd.f32 0.0, %v2659
        %2661 = vmatmul.bf16.gmra.mxu0 %v2591
        %v2662 = vpop.f32.mrf.mxu0
        %v2663 = vadd.f32 0.0, %v2662
        %v2664 = vpop.f32.mrf.mxu0
        %v2665 = vadd.f32 0.0, %v2664
        %2666 = vmatmul.bf16.gmra.mxu0 %v2594
        %v2667 = vpop.f32.mrf.mxu0
        %v2668 = vadd.f32 0.0, %v2667
        %v2669 = vpop.f32.mrf.mxu0
        %v2670 = vadd.f32 0.0, %v2669
        %2671 = vmatmul.bf16.gmra.mxu0 %v2597
        %v2672 = vpop.f32.mrf.mxu0
        %v2673 = vadd.f32 0.0, %v2672
        %v2674 = vpop.f32.mrf.mxu0
        %v2675 = vadd.f32 0.0, %v2674
        %2676 = vmatmul.bf16.gmra.mxu0 %v2600
        %v2677 = vpop.f32.mrf.mxu0
        %v2678 = vadd.f32 0.0, %v2677
        %v2679 = vpop.f32.mrf.mxu0
        %v2680 = vadd.f32 0.0, %v2679
        %2681 = vmatmul.bf16.gmra.mxu0 %v2603
        %v2682 = vpop.f32.mrf.mxu0
        %v2683 = vadd.f32 0.0, %v2682
        %v2684 = vpop.f32.mrf.mxu0
        %v2685 = vadd.f32 0.0, %v2684
        %2686 = vmatmul.bf16.gmra.mxu0 %v2606
        %v2687 = vpop.f32.mrf.mxu0
        %v2688 = vadd.f32 0.0, %v2687
        %v2689 = vpop.f32.mrf.mxu0
        %v2690 = vadd.f32 0.0, %v2689
        %2691 = vmatmul.bf16.gmra.mxu0 %v2609
        %v2692 = vpop.f32.mrf.mxu0
        %v2693 = vadd.f32 0.0, %v2692
        %v2694 = vpop.f32.mrf.mxu0
        %v2695 = vadd.f32 0.0, %v2694
        %2696 = vmatmul.bf16.gmra.mxu0 %v2612
        %v2697 = vpop.f32.mrf.mxu0
        %v2698 = vadd.f32 0.0, %v2697
        %v2699 = vpop.f32.mrf.mxu0
        %v2700 = vadd.f32 0.0, %v2699
        %2701 = vmatmul.bf16.gmra.mxu0 %v2615
        %v2702 = vpop.f32.mrf.mxu0
        %v2703 = vadd.f32 0.0, %v2702
        %v2704 = vpop.f32.mrf.mxu0
        %v2705 = vadd.f32 0.0, %v2704
        %2706 = vmatmul.bf16.gmra.mxu0 %v2618
        %v2707 = vpop.f32.mrf.mxu0
        %v2708 = vadd.f32 0.0, %v2707
        %v2709 = vpop.f32.mrf.mxu0
        %v2710 = vadd.f32 0.0, %v2709
        %2711 = vmatmul.bf16.gmra.mxu0 %v2621
        %v2712 = vpop.f32.mrf.mxu0
        %v2713 = vadd.f32 0.0, %v2712
        %v2714 = vpop.f32.mrf.mxu0
        %v2715 = vadd.f32 0.0, %v2714
        %2716 = vmatmul.bf16.gmra.mxu0 %v2624
        %v2717 = vpop.f32.mrf.mxu0
        %v2718 = vadd.f32 0.0, %v2717
        %v2719 = vpop.f32.mrf.mxu0
        %v2720 = vadd.f32 0.0, %v2719
        %2721 = vdwg.mxu0
        %v2723 = vperm.slane %v2444, 0
        %v2725 = vmul.f32 %v2643, %v2723
        %v2726 = vmul.f32 %v2645, %v2723
        %v2727 = vmul.f32 %v2648, %v2723
        %v2728 = vmul.f32 %v2650, %v2723
        %v2729 = vmul.f32 %v2653, %v2723
        %v2730 = vmul.f32 %v2655, %v2723
        %v2731 = vmul.f32 %v2658, %v2723
        %v2732 = vmul.f32 %v2660, %v2723
        %v2733 = vmul.f32 %v2663, %v2723
        %v2734 = vmul.f32 %v2665, %v2723
        %v2735 = vmul.f32 %v2668, %v2723
        %v2736 = vmul.f32 %v2670, %v2723
        %v2737 = vmul.f32 %v2673, %v2723
        %v2738 = vmul.f32 %v2675, %v2723
        %v2739 = vmul.f32 %v2678, %v2723
        %v2740 = vmul.f32 %v2680, %v2723
        %v2741 = vmul.f32 %v2683, %v2723
        %v2742 = vmul.f32 %v2685, %v2723
        %v2743 = vmul.f32 %v2688, %v2723
        %v2744 = vmul.f32 %v2690, %v2723
        %v2745 = vmul.f32 %v2693, %v2723
        %v2746 = vmul.f32 %v2695, %v2723
        %v2747 = vmul.f32 %v2698, %v2723
        %v2748 = vmul.f32 %v2700, %v2723
        %v2749 = vmul.f32 %v2703, %v2723
        %v2750 = vmul.f32 %v2705, %v2723
        %v2751 = vmul.f32 %v2708, %v2723
        %v2752 = vmul.f32 %v2710, %v2723
        %v2753 = vmul.f32 %v2713, %v2723
        %v2754 = vmul.f32 %v2715, %v2723
        %v2755 = vmul.f32 %v2718, %v2723
        %v2756 = vmul.f32 %v2720, %v2723
        %v2758 = vperm.slane %v2445, 0
        %v2760 = vadd.f32 %v2725, %v2758
        %v2761 = vadd.f32 %v2726, %v2758
        %v2762 = vadd.f32 %v2727, %v2758
        %v2763 = vadd.f32 %v2728, %v2758
        %v2764 = vadd.f32 %v2729, %v2758
        %v2765 = vadd.f32 %v2730, %v2758
        %v2766 = vadd.f32 %v2731, %v2758
        %v2767 = vadd.f32 %v2732, %v2758
        %v2768 = vadd.f32 %v2733, %v2758
        %v2769 = vadd.f32 %v2734, %v2758
        %v2770 = vadd.f32 %v2735, %v2758
        %v2771 = vadd.f32 %v2736, %v2758
        %v2772 = vadd.f32 %v2737, %v2758
        %v2773 = vadd.f32 %v2738, %v2758
        %v2774 = vadd.f32 %v2739, %v2758
        %v2775 = vadd.f32 %v2740, %v2758
        %v2776 = vadd.f32 %v2741, %v2758
        %v2777 = vadd.f32 %v2742, %v2758
        %v2778 = vadd.f32 %v2743, %v2758
        %v2779 = vadd.f32 %v2744, %v2758
        %v2780 = vadd.f32 %v2745, %v2758
        %v2781 = vadd.f32 %v2746, %v2758
        %v2782 = vadd.f32 %v2747, %v2758
        %v2783 = vadd.f32 %v2748, %v2758
        %v2784 = vadd.f32 %v2749, %v2758
        %v2785 = vadd.f32 %v2750, %v2758
        %v2786 = vadd.f32 %v2751, %v2758
        %v2787 = vadd.f32 %v2752, %v2758
        %v2788 = vadd.f32 %v2753, %v2758
        %v2789 = vadd.f32 %v2754, %v2758
        %v2790 = vadd.f32 %v2755, %v2758
        %v2791 = vadd.f32 %v2756, %v2758
        %v2792 = vmax.f32 %v2760, 0.0
        %v2793 = vmax.f32 %v2761, 0.0
        %v2794 = vmax.f32 %v2762, 0.0
        %v2795 = vmax.f32 %v2763, 0.0
        %v2796 = vmax.f32 %v2764, 0.0
        %v2797 = vmax.f32 %v2765, 0.0
        %v2798 = vmax.f32 %v2766, 0.0
        %v2799 = vmax.f32 %v2767, 0.0
        %v2800 = vmax.f32 %v2768, 0.0
        %v2801 = vmax.f32 %v2769, 0.0
        %v2802 = vmax.f32 %v2770, 0.0
        %v2803 = vmax.f32 %v2771, 0.0
        %v2804 = vmax.f32 %v2772, 0.0
        %v2805 = vmax.f32 %v2773, 0.0
        %v2806 = vmax.f32 %v2774, 0.0
        %v2807 = vmax.f32 %v2775, 0.0
        %v2808 = vmax.f32 %v2776, 0.0
        %v2809 = vmax.f32 %v2777, 0.0
        %v2810 = vmax.f32 %v2778, 0.0
        %v2811 = vmax.f32 %v2779, 0.0
        %v2812 = vmax.f32 %v2780, 0.0
        %v2813 = vmax.f32 %v2781, 0.0
        %v2814 = vmax.f32 %v2782, 0.0
        %v2815 = vmax.f32 %v2783, 0.0
        %v2816 = vmax.f32 %v2784, 0.0
        %v2817 = vmax.f32 %v2785, 0.0
        %v2818 = vmax.f32 %v2786, 0.0
        %v2819 = vmax.f32 %v2787, 0.0
        %v2820 = vmax.f32 %v2788, 0.0
        %v2821 = vmax.f32 %v2789, 0.0
        %v2822 = vmax.f32 %v2790, 0.0
        %v2823 = vmax.f32 %v2791, 0.0
        %v2824 = vpack.c.bf16 %v2793, %v2792
        %v2825 = vpack.c.bf16 %v2795, %v2794
        %v2826 = vpack.c.bf16 %v2797, %v2796
        %v2827 = vpack.c.bf16 %v2799, %v2798
        %v2828 = vpack.c.bf16 %v2801, %v2800
        %v2829 = vpack.c.bf16 %v2803, %v2802
        %v2830 = vpack.c.bf16 %v2805, %v2804
        %v2831 = vpack.c.bf16 %v2807, %v2806
        %v2832 = vpack.c.bf16 %v2809, %v2808
        %v2833 = vpack.c.bf16 %v2811, %v2810
        %v2834 = vpack.c.bf16 %v2813, %v2812
        %v2835 = vpack.c.bf16 %v2815, %v2814
        %v2836 = vpack.c.bf16 %v2817, %v2816
        %v2837 = vpack.c.bf16 %v2819, %v2818
        %v2838 = vpack.c.bf16 %v2821, %v2820
        %v2839 = vpack.c.bf16 %v2823, %v2822
        %v2912 = vunpack.c.l.b16 %v2446
        %v2913 = vunpack.c.h.b16 %v2446
        %v2914 = vunpack.c.l.b16 %v2447
        %v2915 = vunpack.c.h.b16 %v2447
        %v2916 = vunpack.c.l.b16 %v2448
        %v2917 = vunpack.c.h.b16 %v2448
        %v2918 = vunpack.c.l.b16 %v2449
        %v2919 = vunpack.c.h.b16 %v2449
        %v2920 = vunpack.c.l.b16 %v2450
        %v2921 = vunpack.c.h.b16 %v2450
        %v2922 = vunpack.c.l.b16 %v2451
        %v2923 = vunpack.c.h.b16 %v2451
        %v2924 = vunpack.c.l.b16 %v2452
        %v2925 = vunpack.c.h.b16 %v2452
        %v2926 = vunpack.c.l.b16 %v2453
        %v2927 = vunpack.c.h.b16 %v2453
        %v2928 = vunpack.c.l.b16 %v2454
        %v2929 = vunpack.c.h.b16 %v2454
        %v2930 = vunpack.c.l.b16 %v2455
        %v2931 = vunpack.c.h.b16 %v2455
        %v2932 = vunpack.c.l.b16 %v2456
        %v2933 = vunpack.c.h.b16 %v2456
        %v2934 = vunpack.c.l.b16 %v2457
        %v2935 = vunpack.c.h.b16 %v2457
        %v2936 = vunpack.c.l.b16 %v2458
        %v2937 = vunpack.c.h.b16 %v2458
        %v2938 = vunpack.c.l.b16 %v2459
        %v2939 = vunpack.c.h.b16 %v2459
        %v2940 = vunpack.c.l.b16 %v2460
        %v2941 = vunpack.c.h.b16 %v2460
        %v2942 = vunpack.c.l.b16 %v2461
        %v2943 = vunpack.c.h.b16 %v2461
        %v2944 = vunpack.c.l.b16 %v2462
        %v2945 = vunpack.c.h.b16 %v2462
        %v2946 = vunpack.c.l.b16 %v2463
        %v2947 = vunpack.c.h.b16 %v2463
        %v2948 = vunpack.c.l.b16 %v2464
        %v2949 = vunpack.c.h.b16 %v2464
        %v2950 = vunpack.c.l.b16 %v2465
        %v2951 = vunpack.c.h.b16 %v2465
        %v2952 = vunpack.c.l.b16 %v2466
        %v2953 = vunpack.c.h.b16 %v2466
        %v2954 = vunpack.c.l.b16 %v2467
        %v2955 = vunpack.c.h.b16 %v2467
        %v2956 = vunpack.c.l.b16 %v2468
        %v2957 = vunpack.c.h.b16 %v2468
        %v2958 = vunpack.c.l.b16 %v2469
        %v2959 = vunpack.c.h.b16 %v2469
        %v2960 = vunpack.c.l.b16 %v2470
        %v2961 = vunpack.c.h.b16 %v2470
        %v2962 = vunpack.c.l.b16 %v2471
        %v2963 = vunpack.c.h.b16 %v2471
        %v2964 = vunpack.c.l.b16 %v2472
        %v2965 = vunpack.c.h.b16 %v2472
        %v2966 = vunpack.c.l.b16 %v2473
        %v2967 = vunpack.c.h.b16 %v2473
        %v2968 = vunpack.c.l.b16 %v2474
        %v2969 = vunpack.c.h.b16 %v2474
        %v2970 = vunpack.c.l.b16 %v2475
        %v2971 = vunpack.c.h.b16 %v2475
        %v2972 = vunpack.c.l.b16 %v2476
        %v2973 = vunpack.c.h.b16 %v2476
        %v2974 = vunpack.c.l.b16 %v2477
        %v2975 = vunpack.c.h.b16 %v2477
        %v2976 = vunpack.c.l.b16 %v2478
        %v2977 = vunpack.c.h.b16 %v2478
        %v2978 = vunpack.c.l.b16 %v2479
        %v2979 = vunpack.c.h.b16 %v2479
        %v2980 = vunpack.c.l.b16 %v2480
        %v2981 = vunpack.c.h.b16 %v2480
        %v2982 = vunpack.c.l.b16 %v2481
        %v2983 = vunpack.c.h.b16 %v2481
        %v2984 = vunpack.c.l.b16 %v2482
        %v2985 = vunpack.c.h.b16 %v2482
        %v2986 = vunpack.c.l.b16 %v2483
        %v2987 = vunpack.c.h.b16 %v2483
        %v2988 = vunpack.c.l.b16 %v2484
        %v2989 = vunpack.c.h.b16 %v2484
        %v2990 = vunpack.c.l.b16 %v2485
        %v2991 = vunpack.c.h.b16 %v2485
        %v2992 = vunpack.c.l.b16 %v2486
        %v2993 = vunpack.c.h.b16 %v2486
        %v2994 = vunpack.c.l.b16 %v2487
        %v2995 = vunpack.c.h.b16 %v2487
        %v2996 = vunpack.c.l.b16 %v2488
        %v2997 = vunpack.c.h.b16 %v2488
        %v2998 = vunpack.c.l.b16 %v2489
        %v2999 = vunpack.c.h.b16 %v2489
        %v3000 = vunpack.c.l.b16 %v2490
        %v3001 = vunpack.c.h.b16 %v2490
        %v3002 = vunpack.c.l.b16 %v2491
        %v3003 = vunpack.c.h.b16 %v2491
        %v3004 = vunpack.c.l.b16 %v2492
        %v3005 = vunpack.c.h.b16 %v2492
        %v3006 = vunpack.c.l.b16 %v2493
        %v3007 = vunpack.c.h.b16 %v2493
        %v3008 = vunpack.c.l.b16 %v2494
        %v3009 = vunpack.c.h.b16 %v2494
        %v3010 = vunpack.c.l.b16 %v2495
        %v3011 = vunpack.c.h.b16 %v2495
        %v3012 = vunpack.c.l.b16 %v2496
        %v3013 = vunpack.c.h.b16 %v2496
        %v3014 = vunpack.c.l.b16 %v2497
        %v3015 = vunpack.c.h.b16 %v2497
        %v3016 = vunpack.c.l.b16 %v2498
        %v3017 = vunpack.c.h.b16 %v2498
        %v3018 = vunpack.c.l.b16 %v2499
        %v3019 = vunpack.c.h.b16 %v2499
        %v3020 = vunpack.c.l.b16 %v2500
        %v3021 = vunpack.c.h.b16 %v2500
        %v3022 = vunpack.c.l.b16 %v2501
        %v3023 = vunpack.c.h.b16 %v2501
        %v3024 = vunpack.c.l.b16 %v2502
        %v3025 = vunpack.c.h.b16 %v2502
        %v3026 = vunpack.c.l.b16 %v2503
        %v3027 = vunpack.c.h.b16 %v2503
        %v3028 = vunpack.c.l.b16 %v2504
        %v3029 = vunpack.c.h.b16 %v2504
        %v3030 = vunpack.c.l.b16 %v2505
        %v3031 = vunpack.c.h.b16 %v2505
        %v3032 = vunpack.c.l.b16 %v2506
        %v3033 = vunpack.c.h.b16 %v2506
        %v3034 = vunpack.c.l.b16 %v2507
        %v3035 = vunpack.c.h.b16 %v2507
        %v3036 = vunpack.c.l.b16 %v2508
        %v3037 = vunpack.c.h.b16 %v2508
        %v3038 = vunpack.c.l.b16 %v2509
        %v3039 = vunpack.c.h.b16 %v2509
        %v3040 = vunpack.c.l.b16 %v2510
        %v3041 = vunpack.c.h.b16 %v2510
        %v3042 = vunpack.c.l.b16 %v2511
        %v3043 = vunpack.c.h.b16 %v2511
        %v3044 = vunpack.c.l.b16 %v2512
        %v3045 = vunpack.c.h.b16 %v2512
        %v3046 = vunpack.c.l.b16 %v2513
        %v3047 = vunpack.c.h.b16 %v2513
        %v3048 = vunpack.c.l.b16 %v2514
        %v3049 = vunpack.c.h.b16 %v2514
        %v3050 = vunpack.c.l.b16 %v2515
        %v3051 = vunpack.c.h.b16 %v2515
        %v3052 = vunpack.c.l.b16 %v2516
        %v3053 = vunpack.c.h.b16 %v2516
        %v3054 = vunpack.c.l.b16 %v2517
        %v3055 = vunpack.c.h.b16 %v2517
        %v3056 = vpack.c.b16 %v2914, %v2912
        %v3057 = vpack.c.b16 %v2915, %v2913
        %v3058 = vpack.c.b16 %v2918, %v2916
        %v3059 = vpack.c.b16 %v2919, %v2917
        %v3060 = vpack.c.b16 %v2922, %v2920
        %v3061 = vpack.c.b16 %v2923, %v2921
        %v3062 = vpack.c.b16 %v2926, %v2924
        %v3063 = vpack.c.b16 %v2927, %v2925
        %v3064 = vpack.c.b16 %v2930, %v2928
        %v3065 = vpack.c.b16 %v2931, %v2929
        %v3066 = vpack.c.b16 %v2934, %v2932
        %v3067 = vpack.c.b16 %v2935, %v2933
        %v3068 = vpack.c.b16 %v2938, %v2936
        %v3069 = vpack.c.b16 %v2939, %v2937
        %v3070 = vpack.c.b16 %v2942, %v2940
        %v3071 = vpack.c.b16 %v2943, %v2941
        %v3072 = vpack.c.b16 %v2946, %v2944
        %v3073 = vpack.c.b16 %v2947, %v2945
        %v3074 = vpack.c.b16 %v2950, %v2948
        %v3075 = vpack.c.b16 %v2951, %v2949
        %v3076 = vpack.c.b16 %v2954, %v2952
        %v3077 = vpack.c.b16 %v2955, %v2953
        %v3078 = vpack.c.b16 %v2958, %v2956
        %v3079 = vpack.c.b16 %v2959, %v2957
        %v3080 = vpack.c.b16 %v2962, %v2960
        %v3081 = vpack.c.b16 %v2963, %v2961
        %v3082 = vpack.c.b16 %v2966, %v2964
        %v3083 = vpack.c.b16 %v2967, %v2965
        %v3084 = vpack.c.b16 %v2970, %v2968
        %v3085 = vpack.c.b16 %v2971, %v2969
        %v3086 = vpack.c.b16 %v2974, %v2972
        %v3087 = vpack.c.b16 %v2975, %v2973
        %v3088 = vpack.c.b16 %v2978, %v2976
        %v3089 = vpack.c.b16 %v2979, %v2977
        %v3090 = vpack.c.b16 %v2982, %v2980
        %v3091 = vpack.c.b16 %v2983, %v2981
        %v3092 = vpack.c.b16 %v2986, %v2984
        %v3093 = vpack.c.b16 %v2987, %v2985
        %v3094 = vpack.c.b16 %v2990, %v2988
        %v3095 = vpack.c.b16 %v2991, %v2989
        %v3096 = vpack.c.b16 %v2994, %v2992
        %v3097 = vpack.c.b16 %v2995, %v2993
        %v3098 = vpack.c.b16 %v2998, %v2996
        %v3099 = vpack.c.b16 %v2999, %v2997
        %v3100 = vpack.c.b16 %v3002, %v3000
        %v3101 = vpack.c.b16 %v3003, %v3001
        %v3102 = vpack.c.b16 %v3006, %v3004
        %v3103 = vpack.c.b16 %v3007, %v3005
        %v3104 = vpack.c.b16 %v3010, %v3008
        %v3105 = vpack.c.b16 %v3011, %v3009
        %v3106 = vpack.c.b16 %v3014, %v3012
        %v3107 = vpack.c.b16 %v3015, %v3013
        %v3108 = vpack.c.b16 %v3018, %v3016
        %v3109 = vpack.c.b16 %v3019, %v3017
        %v3110 = vpack.c.b16 %v3022, %v3020
        %v3111 = vpack.c.b16 %v3023, %v3021
        %v3112 = vpack.c.b16 %v3026, %v3024
        %v3113 = vpack.c.b16 %v3027, %v3025
        %v3114 = vpack.c.b16 %v3030, %v3028
        %v3115 = vpack.c.b16 %v3031, %v3029
        %v3116 = vpack.c.b16 %v3034, %v3032
        %v3117 = vpack.c.b16 %v3035, %v3033
        %v3118 = vpack.c.b16 %v3038, %v3036
        %v3119 = vpack.c.b16 %v3039, %v3037
        %v3120 = vpack.c.b16 %v3042, %v3040
        %v3121 = vpack.c.b16 %v3043, %v3041
        %v3122 = vpack.c.b16 %v3046, %v3044
        %v3123 = vpack.c.b16 %v3047, %v3045
        %v3124 = vpack.c.b16 %v3050, %v3048
        %v3125 = vpack.c.b16 %v3051, %v3049
        %v3126 = vpack.c.b16 %v3054, %v3052
        %v3127 = vpack.c.b16 %v3055, %v3053
        %3200 = vmatpush.bf16.msra.mxu0 %v2831
        %3201 = vmatpush.bf16.msra.mxu0 %v2830
        %3202 = vmatpush.bf16.msra.mxu0 %v2829
        %3203 = vmatpush.bf16.msra.mxu0 %v2828
        %3204 = vmatpush.bf16.msra.mxu0 %v2827
        %3205 = vmatpush.bf16.msra.mxu0 %v2826
        %3206 = vmatpush.bf16.msra.mxu0 %v2825
        %3207 = vmatpush.bf16.msra.mxu0 %v2824
        %3208 = vmatmul.bf16.gmra.mxu0 %v3056
        %v3209 = vpop.f32.mrf.mxu0
        %v3210 = vadd.f32 0.0, %v3209
        %v3211 = vpop.f32.mrf.mxu0
        %v3212 = vadd.f32 0.0, %v3211
        %3213 = vmatmul.bf16.gmra.mxu0 %v3058
        %v3214 = vpop.f32.mrf.mxu0
        %v3215 = vadd.f32 0.0, %v3214
        %v3216 = vpop.f32.mrf.mxu0
        %v3217 = vadd.f32 0.0, %v3216
        %3218 = vmatmul.bf16.gmra.mxu0 %v3060
        %v3219 = vpop.f32.mrf.mxu0
        %v3220 = vadd.f32 0.0, %v3219
        %v3221 = vpop.f32.mrf.mxu0
        %v3222 = vadd.f32 0.0, %v3221
        %3223 = vmatmul.bf16.gmra.mxu0 %v3062
        %v3224 = vpop.f32.mrf.mxu0
        %v3225 = vadd.f32 0.0, %v3224
        %v3226 = vpop.f32.mrf.mxu0
        %v3227 = vadd.f32 0.0, %v3226
        %3228 = vmatmul.bf16.gmra.mxu0 %v3064
        %v3229 = vpop.f32.mrf.mxu0
        %v3230 = vadd.f32 0.0, %v3229
        %v3231 = vpop.f32.mrf.mxu0
        %v3232 = vadd.f32 0.0, %v3231
        %3233 = vmatmul.bf16.gmra.mxu0 %v3066
        %v3234 = vpop.f32.mrf.mxu0
        %v3235 = vadd.f32 0.0, %v3234
        %v3236 = vpop.f32.mrf.mxu0
        %v3237 = vadd.f32 0.0, %v3236
        %3238 = vmatmul.bf16.gmra.mxu0 %v3068
        %v3239 = vpop.f32.mrf.mxu0
        %v3240 = vadd.f32 0.0, %v3239
        %v3241 = vpop.f32.mrf.mxu0
        %v3242 = vadd.f32 0.0, %v3241
        %3243 = vmatmul.bf16.gmra.mxu0 %v3070
        %v3244 = vpop.f32.mrf.mxu0
        %v3245 = vadd.f32 0.0, %v3244
        %v3246 = vpop.f32.mrf.mxu0
        %v3247 = vadd.f32 0.0, %v3246
        %3248 = vmatmul.bf16.gmra.mxu0 %v3072
        %v3249 = vpop.f32.mrf.mxu0
        %v3250 = vadd.f32 0.0, %v3249
        %v3251 = vpop.f32.mrf.mxu0
        %v3252 = vadd.f32 0.0, %v3251
        %3253 = vmatmul.bf16.gmra.mxu0 %v3074
        %v3254 = vpop.f32.mrf.mxu0
        %v3255 = vadd.f32 0.0, %v3254
        %v3256 = vpop.f32.mrf.mxu0
        %v3257 = vadd.f32 0.0, %v3256
        %3258 = vmatmul.bf16.gmra.mxu0 %v3076
        %v3259 = vpop.f32.mrf.mxu0
        %v3260 = vadd.f32 0.0, %v3259
        %v3261 = vpop.f32.mrf.mxu0
        %v3262 = vadd.f32 0.0, %v3261
        %3263 = vmatmul.bf16.gmra.mxu0 %v3078
        %v3264 = vpop.f32.mrf.mxu0
        %v3265 = vadd.f32 0.0, %v3264
        %v3266 = vpop.f32.mrf.mxu0
        %v3267 = vadd.f32 0.0, %v3266
        %3268 = vmatmul.bf16.gmra.mxu0 %v3080
        %v3269 = vpop.f32.mrf.mxu0
        %v3270 = vadd.f32 0.0, %v3269
        %v3271 = vpop.f32.mrf.mxu0
        %v3272 = vadd.f32 0.0, %v3271
        %3273 = vmatmul.bf16.gmra.mxu0 %v3082
        %v3274 = vpop.f32.mrf.mxu0
        %v3275 = vadd.f32 0.0, %v3274
        %v3276 = vpop.f32.mrf.mxu0
        %v3277 = vadd.f32 0.0, %v3276
        %3278 = vmatmul.bf16.gmra.mxu0 %v3084
        %v3279 = vpop.f32.mrf.mxu0
        %v3280 = vadd.f32 0.0, %v3279
        %v3281 = vpop.f32.mrf.mxu0
        %v3282 = vadd.f32 0.0, %v3281
        %3283 = vmatmul.bf16.gmra.mxu0 %v3086
        %v3284 = vpop.f32.mrf.mxu0
        %v3285 = vadd.f32 0.0, %v3284
        %v3286 = vpop.f32.mrf.mxu0
        %v3287 = vadd.f32 0.0, %v3286
        %3288 = vmatmul.bf16.gmra.mxu0 %v3088
        %v3289 = vpop.f32.mrf.mxu0
        %v3290 = vadd.f32 0.0, %v3289
        %v3291 = vpop.f32.mrf.mxu0
        %v3292 = vadd.f32 0.0, %v3291
        %3293 = vmatmul.bf16.gmra.mxu0 %v3090
        %v3294 = vpop.f32.mrf.mxu0
        %v3295 = vadd.f32 0.0, %v3294
        %v3296 = vpop.f32.mrf.mxu0
        %v3297 = vadd.f32 0.0, %v3296
        %3298 = vmatmul.bf16.gmra.mxu0 %v3092
        %v3299 = vpop.f32.mrf.mxu0
        %v3300 = vadd.f32 0.0, %v3299
        %v3301 = vpop.f32.mrf.mxu0
        %v3302 = vadd.f32 0.0, %v3301
        %3303 = vmatmul.bf16.gmra.mxu0 %v3094
        %v3304 = vpop.f32.mrf.mxu0
        %v3305 = vadd.f32 0.0, %v3304
        %v3306 = vpop.f32.mrf.mxu0
        %v3307 = vadd.f32 0.0, %v3306
        %3308 = vmatmul.bf16.gmra.mxu0 %v3096
        %v3309 = vpop.f32.mrf.mxu0
        %v3310 = vadd.f32 0.0, %v3309
        %v3311 = vpop.f32.mrf.mxu0
        %v3312 = vadd.f32 0.0, %v3311
        %3313 = vmatmul.bf16.gmra.mxu0 %v3098
        %v3314 = vpop.f32.mrf.mxu0
        %v3315 = vadd.f32 0.0, %v3314
        %v3316 = vpop.f32.mrf.mxu0
        %v3317 = vadd.f32 0.0, %v3316
        %3318 = vmatmul.bf16.gmra.mxu0 %v3100
        %v3319 = vpop.f32.mrf.mxu0
        %v3320 = vadd.f32 0.0, %v3319
        %v3321 = vpop.f32.mrf.mxu0
        %v3322 = vadd.f32 0.0, %v3321
        %3323 = vmatmul.bf16.gmra.mxu0 %v3102
        %v3324 = vpop.f32.mrf.mxu0
        %v3325 = vadd.f32 0.0, %v3324
        %v3326 = vpop.f32.mrf.mxu0
        %v3327 = vadd.f32 0.0, %v3326
        %3328 = vmatmul.bf16.gmra.mxu0 %v3104
        %v3329 = vpop.f32.mrf.mxu0
        %v3330 = vadd.f32 0.0, %v3329
        %v3331 = vpop.f32.mrf.mxu0
        %v3332 = vadd.f32 0.0, %v3331
        %3333 = vmatmul.bf16.gmra.mxu0 %v3106
        %v3334 = vpop.f32.mrf.mxu0
        %v3335 = vadd.f32 0.0, %v3334
        %v3336 = vpop.f32.mrf.mxu0
        %v3337 = vadd.f32 0.0, %v3336
        %3338 = vmatmul.bf16.gmra.mxu0 %v3108
        %v3339 = vpop.f32.mrf.mxu0
        %v3340 = vadd.f32 0.0, %v3339
        %v3341 = vpop.f32.mrf.mxu0
        %v3342 = vadd.f32 0.0, %v3341
        %3343 = vmatmul.bf16.gmra.mxu0 %v3110
        %v3344 = vpop.f32.mrf.mxu0
        %v3345 = vadd.f32 0.0, %v3344
        %v3346 = vpop.f32.mrf.mxu0
        %v3347 = vadd.f32 0.0, %v3346
        %3348 = vmatmul.bf16.gmra.mxu0 %v3112
        %v3349 = vpop.f32.mrf.mxu0
        %v3350 = vadd.f32 0.0, %v3349
        %v3351 = vpop.f32.mrf.mxu0
        %v3352 = vadd.f32 0.0, %v3351
        %3353 = vmatmul.bf16.gmra.mxu0 %v3114
        %v3354 = vpop.f32.mrf.mxu0
        %v3355 = vadd.f32 0.0, %v3354
        %v3356 = vpop.f32.mrf.mxu0
        %v3357 = vadd.f32 0.0, %v3356
        %3358 = vmatmul.bf16.gmra.mxu0 %v3116
        %v3359 = vpop.f32.mrf.mxu0
        %v3360 = vadd.f32 0.0, %v3359
        %v3361 = vpop.f32.mrf.mxu0
        %v3362 = vadd.f32 0.0, %v3361
        %3363 = vmatmul.bf16.gmra.mxu0 %v3118
        %v3364 = vpop.f32.mrf.mxu0
        %v3365 = vadd.f32 0.0, %v3364
        %v3366 = vpop.f32.mrf.mxu0
        %v3367 = vadd.f32 0.0, %v3366
        %3368 = vmatmul.bf16.gmra.mxu0 %v3120
        %v3369 = vpop.f32.mrf.mxu0
        %v3370 = vadd.f32 0.0, %v3369
        %v3371 = vpop.f32.mrf.mxu0
        %v3372 = vadd.f32 0.0, %v3371
        %3373 = vmatmul.bf16.gmra.mxu0 %v3122
        %v3374 = vpop.f32.mrf.mxu0
        %v3375 = vadd.f32 0.0, %v3374
        %v3376 = vpop.f32.mrf.mxu0
        %v3377 = vadd.f32 0.0, %v3376
        %3378 = vmatmul.bf16.gmra.mxu0 %v3124
        %v3379 = vpop.f32.mrf.mxu0
        %v3380 = vadd.f32 0.0, %v3379
        %v3381 = vpop.f32.mrf.mxu0
        %v3382 = vadd.f32 0.0, %v3381
        %3383 = vmatmul.bf16.gmra.mxu0 %v3126
        %v3384 = vpop.f32.mrf.mxu0
        %v3385 = vadd.f32 0.0, %v3384
        %v3386 = vpop.f32.mrf.mxu0
        %v3387 = vadd.f32 0.0, %v3386
        %3388 = vdwg.mxu0
        %3389 = vmatpush.bf16.msra.mxu0 %v2839
        %3390 = vmatpush.bf16.msra.mxu0 %v2838
        %3391 = vmatpush.bf16.msra.mxu0 %v2837
        %3392 = vmatpush.bf16.msra.mxu0 %v2836
        %3393 = vmatpush.bf16.msra.mxu0 %v2835
        %3394 = vmatpush.bf16.msra.mxu0 %v2834
        %3395 = vmatpush.bf16.msra.mxu0 %v2833
        %3396 = vmatpush.bf16.msra.mxu0 %v2832
        %3397 = vmatmul.bf16.gmra.mxu0 %v3057
        %v3398 = vpop.f32.mrf.mxu0
        %v3399 = vadd.f32 %v3210, %v3398
        %v3400 = vpop.f32.mrf.mxu0
        %v3401 = vadd.f32 %v3212, %v3400
        %3402 = vmatmul.bf16.gmra.mxu0 %v3059
        %v3403 = vpop.f32.mrf.mxu0
        %v3404 = vadd.f32 %v3215, %v3403
        %v3405 = vpop.f32.mrf.mxu0
        %v3406 = vadd.f32 %v3217, %v3405
        %3407 = vmatmul.bf16.gmra.mxu0 %v3061
        %v3408 = vpop.f32.mrf.mxu0
        %v3409 = vadd.f32 %v3220, %v3408
        %v3410 = vpop.f32.mrf.mxu0
        %v3411 = vadd.f32 %v3222, %v3410
        %3412 = vmatmul.bf16.gmra.mxu0 %v3063
        %v3413 = vpop.f32.mrf.mxu0
        %v3414 = vadd.f32 %v3225, %v3413
        %v3415 = vpop.f32.mrf.mxu0
        %v3416 = vadd.f32 %v3227, %v3415
        %3417 = vmatmul.bf16.gmra.mxu0 %v3065
        %v3418 = vpop.f32.mrf.mxu0
        %v3419 = vadd.f32 %v3230, %v3418
        %v3420 = vpop.f32.mrf.mxu0
        %v3421 = vadd.f32 %v3232, %v3420
        %3422 = vmatmul.bf16.gmra.mxu0 %v3067
        %v3423 = vpop.f32.mrf.mxu0
        %v3424 = vadd.f32 %v3235, %v3423
        %v3425 = vpop.f32.mrf.mxu0
        %v3426 = vadd.f32 %v3237, %v3425
        %3427 = vmatmul.bf16.gmra.mxu0 %v3069
        %v3428 = vpop.f32.mrf.mxu0
        %v3429 = vadd.f32 %v3240, %v3428
        %v3430 = vpop.f32.mrf.mxu0
        %v3431 = vadd.f32 %v3242, %v3430
        %3432 = vmatmul.bf16.gmra.mxu0 %v3071
        %v3433 = vpop.f32.mrf.mxu0
        %v3434 = vadd.f32 %v3245, %v3433
        %v3435 = vpop.f32.mrf.mxu0
        %v3436 = vadd.f32 %v3247, %v3435
        %3437 = vmatmul.bf16.gmra.mxu0 %v3073
        %v3438 = vpop.f32.mrf.mxu0
        %v3439 = vadd.f32 %v3250, %v3438
        %v3440 = vpop.f32.mrf.mxu0
        %v3441 = vadd.f32 %v3252, %v3440
        %3442 = vmatmul.bf16.gmra.mxu0 %v3075
        %v3443 = vpop.f32.mrf.mxu0
        %v3444 = vadd.f32 %v3255, %v3443
        %v3445 = vpop.f32.mrf.mxu0
        %v3446 = vadd.f32 %v3257, %v3445
        %3447 = vmatmul.bf16.gmra.mxu0 %v3077
        %v3448 = vpop.f32.mrf.mxu0
        %v3449 = vadd.f32 %v3260, %v3448
        %v3450 = vpop.f32.mrf.mxu0
        %v3451 = vadd.f32 %v3262, %v3450
        %3452 = vmatmul.bf16.gmra.mxu0 %v3079
        %v3453 = vpop.f32.mrf.mxu0
        %v3454 = vadd.f32 %v3265, %v3453
        %v3455 = vpop.f32.mrf.mxu0
        %v3456 = vadd.f32 %v3267, %v3455
        %3457 = vmatmul.bf16.gmra.mxu0 %v3081
        %v3458 = vpop.f32.mrf.mxu0
        %v3459 = vadd.f32 %v3270, %v3458
        %v3460 = vpop.f32.mrf.mxu0
        %v3461 = vadd.f32 %v3272, %v3460
        %3462 = vmatmul.bf16.gmra.mxu0 %v3083
        %v3463 = vpop.f32.mrf.mxu0
        %v3464 = vadd.f32 %v3275, %v3463
        %v3465 = vpop.f32.mrf.mxu0
        %v3466 = vadd.f32 %v3277, %v3465
        %3467 = vmatmul.bf16.gmra.mxu0 %v3085
        %v3468 = vpop.f32.mrf.mxu0
        %v3469 = vadd.f32 %v3280, %v3468
        %v3470 = vpop.f32.mrf.mxu0
        %v3471 = vadd.f32 %v3282, %v3470
        %3472 = vmatmul.bf16.gmra.mxu0 %v3087
        %v3473 = vpop.f32.mrf.mxu0
        %v3474 = vadd.f32 %v3285, %v3473
        %v3475 = vpop.f32.mrf.mxu0
        %v3476 = vadd.f32 %v3287, %v3475
        %3477 = vmatmul.bf16.gmra.mxu0 %v3089
        %v3478 = vpop.f32.mrf.mxu0
        %v3479 = vadd.f32 %v3290, %v3478
        %v3480 = vpop.f32.mrf.mxu0
        %v3481 = vadd.f32 %v3292, %v3480
        %3482 = vmatmul.bf16.gmra.mxu0 %v3091
        %v3483 = vpop.f32.mrf.mxu0
        %v3484 = vadd.f32 %v3295, %v3483
        %v3485 = vpop.f32.mrf.mxu0
        %v3486 = vadd.f32 %v3297, %v3485
        %3487 = vmatmul.bf16.gmra.mxu0 %v3093
        %v3488 = vpop.f32.mrf.mxu0
        %v3489 = vadd.f32 %v3300, %v3488
        %v3490 = vpop.f32.mrf.mxu0
        %v3491 = vadd.f32 %v3302, %v3490
        %3492 = vmatmul.bf16.gmra.mxu0 %v3095
        %v3493 = vpop.f32.mrf.mxu0
        %v3494 = vadd.f32 %v3305, %v3493
        %v3495 = vpop.f32.mrf.mxu0
        %v3496 = vadd.f32 %v3307, %v3495
        %3497 = vmatmul.bf16.gmra.mxu0 %v3097
        %v3498 = vpop.f32.mrf.mxu0
        %v3499 = vadd.f32 %v3310, %v3498
        %v3500 = vpop.f32.mrf.mxu0
        %v3501 = vadd.f32 %v3312, %v3500
        %3502 = vmatmul.bf16.gmra.mxu0 %v3099
        %v3503 = vpop.f32.mrf.mxu0
        %v3504 = vadd.f32 %v3315, %v3503
        %v3505 = vpop.f32.mrf.mxu0
        %v3506 = vadd.f32 %v3317, %v3505
        %3507 = vmatmul.bf16.gmra.mxu0 %v3101
        %v3508 = vpop.f32.mrf.mxu0
        %v3509 = vadd.f32 %v3320, %v3508
        %v3510 = vpop.f32.mrf.mxu0
        %v3511 = vadd.f32 %v3322, %v3510
        %3512 = vmatmul.bf16.gmra.mxu0 %v3103
        %v3513 = vpop.f32.mrf.mxu0
        %v3514 = vadd.f32 %v3325, %v3513
        %v3515 = vpop.f32.mrf.mxu0
        %v3516 = vadd.f32 %v3327, %v3515
        %3517 = vmatmul.bf16.gmra.mxu0 %v3105
        %v3518 = vpop.f32.mrf.mxu0
        %v3519 = vadd.f32 %v3330, %v3518
        %v3520 = vpop.f32.mrf.mxu0
        %v3521 = vadd.f32 %v3332, %v3520
        %3522 = vmatmul.bf16.gmra.mxu0 %v3107
        %v3523 = vpop.f32.mrf.mxu0
        %v3524 = vadd.f32 %v3335, %v3523
        %v3525 = vpop.f32.mrf.mxu0
        %v3526 = vadd.f32 %v3337, %v3525
        %3527 = vmatmul.bf16.gmra.mxu0 %v3109
        %v3528 = vpop.f32.mrf.mxu0
        %v3529 = vadd.f32 %v3340, %v3528
        %v3530 = vpop.f32.mrf.mxu0
        %v3531 = vadd.f32 %v3342, %v3530
        %3532 = vmatmul.bf16.gmra.mxu0 %v3111
        %v3533 = vpop.f32.mrf.mxu0
        %v3534 = vadd.f32 %v3345, %v3533
        %v3535 = vpop.f32.mrf.mxu0
        %v3536 = vadd.f32 %v3347, %v3535
        %3537 = vmatmul.bf16.gmra.mxu0 %v3113
        %v3538 = vpop.f32.mrf.mxu0
        %v3539 = vadd.f32 %v3350, %v3538
        %v3540 = vpop.f32.mrf.mxu0
        %v3541 = vadd.f32 %v3352, %v3540
        %3542 = vmatmul.bf16.gmra.mxu0 %v3115
        %v3543 = vpop.f32.mrf.mxu0
        %v3544 = vadd.f32 %v3355, %v3543
        %v3545 = vpop.f32.mrf.mxu0
        %v3546 = vadd.f32 %v3357, %v3545
        %3547 = vmatmul.bf16.gmra.mxu0 %v3117
        %v3548 = vpop.f32.mrf.mxu0
        %v3549 = vadd.f32 %v3360, %v3548
        %v3550 = vpop.f32.mrf.mxu0
        %v3551 = vadd.f32 %v3362, %v3550
        %3552 = vmatmul.bf16.gmra.mxu0 %v3119
        %v3553 = vpop.f32.mrf.mxu0
        %v3554 = vadd.f32 %v3365, %v3553
        %v3555 = vpop.f32.mrf.mxu0
        %v3556 = vadd.f32 %v3367, %v3555
        %3557 = vmatmul.bf16.gmra.mxu0 %v3121
        %v3558 = vpop.f32.mrf.mxu0
        %v3559 = vadd.f32 %v3370, %v3558
        %v3560 = vpop.f32.mrf.mxu0
        %v3561 = vadd.f32 %v3372, %v3560
        %3562 = vmatmul.bf16.gmra.mxu0 %v3123
        %v3563 = vpop.f32.mrf.mxu0
        %v3564 = vadd.f32 %v3375, %v3563
        %v3565 = vpop.f32.mrf.mxu0
        %v3566 = vadd.f32 %v3377, %v3565
        %3567 = vmatmul.bf16.gmra.mxu0 %v3125
        %v3568 = vpop.f32.mrf.mxu0
        %v3569 = vadd.f32 %v3380, %v3568
        %v3570 = vpop.f32.mrf.mxu0
        %v3571 = vadd.f32 %v3382, %v3570
        %3572 = vmatmul.bf16.gmra.mxu0 %v3127
        %v3573 = vpop.f32.mrf.mxu0
        %v3574 = vadd.f32 %v3385, %v3573
        %v3575 = vpop.f32.mrf.mxu0
        %v3576 = vadd.f32 %v3387, %v3575
        %3577 = vdwg.mxu0
        %v3578 = vmax.f32 %v3399, %v3419
        %v3579 = vmax.f32 %v3401, %v3421
        %v3580 = vmax.f32 %v3404, %v3424
        %v3581 = vmax.f32 %v3406, %v3426
        %v3582 = vmax.f32 %v3409, %v3429
        %v3583 = vmax.f32 %v3411, %v3431
        %v3584 = vmax.f32 %v3414, %v3434
        %v3585 = vmax.f32 %v3416, %v3436
        %v3586 = vmax.f32 %v3439, %v3459
        %v3587 = vmax.f32 %v3441, %v3461
        %v3588 = vmax.f32 %v3444, %v3464
        %v3589 = vmax.f32 %v3446, %v3466
        %v3590 = vmax.f32 %v3449, %v3469
        %v3591 = vmax.f32 %v3451, %v3471
        %v3592 = vmax.f32 %v3454, %v3474
        %v3593 = vmax.f32 %v3456, %v3476
        %v3594 = vmax.f32 %v3479, %v3499
        %v3595 = vmax.f32 %v3481, %v3501
        %v3596 = vmax.f32 %v3484, %v3504
        %v3597 = vmax.f32 %v3486, %v3506
        %v3598 = vmax.f32 %v3489, %v3509
        %v3599 = vmax.f32 %v3491, %v3511
        %v3600 = vmax.f32 %v3494, %v3514
        %v3601 = vmax.f32 %v3496, %v3516
        %v3602 = vmax.f32 %v3519, %v3539
        %v3603 = vmax.f32 %v3521, %v3541
        %v3604 = vmax.f32 %v3524, %v3544
        %v3605 = vmax.f32 %v3526, %v3546
        %v3606 = vmax.f32 %v3529, %v3549
        %v3607 = vmax.f32 %v3531, %v3551
        %v3608 = vmax.f32 %v3534, %v3554
        %v3609 = vmax.f32 %v3536, %v3556
        %v3610 = vmax.f32 %v3578, %v3586
        %v3611 = vmax.f32 %v3579, %v3587
        %v3612 = vmax.f32 %v3580, %v3588
        %v3613 = vmax.f32 %v3581, %v3589
        %v3614 = vmax.f32 %v3582, %v3590
        %v3615 = vmax.f32 %v3583, %v3591
        %v3616 = vmax.f32 %v3584, %v3592
        %v3617 = vmax.f32 %v3585, %v3593
        %v3618 = vmax.f32 %v3594, %v3602
        %v3619 = vmax.f32 %v3595, %v3603
        %v3620 = vmax.f32 %v3596, %v3604
        %v3621 = vmax.f32 %v3597, %v3605
        %v3622 = vmax.f32 %v3598, %v3606
        %v3623 = vmax.f32 %v3599, %v3607
        %v3624 = vmax.f32 %v3600, %v3608
        %v3625 = vmax.f32 %v3601, %v3609
        %v3626 = vmax.f32 %v3610, %v3618
        %v3627 = vmax.f32 %v3611, %v3619
        %v3628 = vmax.f32 %v3612, %v3620
        %v3629 = vmax.f32 %v3613, %v3621
        %v3630 = vmax.f32 %v3614, %v3622
        %v3631 = vmax.f32 %v3615, %v3623
        %v3632 = vmax.f32 %v3616, %v3624
        %v3633 = vmax.f32 %v3617, %v3625
        %v3634 = vmax.f32 %v3626, %v3559
        %v3635 = vmax.f32 %v3627, %v3561
        %v3636 = vmax.f32 %v3628, %v3564
        %v3637 = vmax.f32 %v3629, %v3566
        %v3638 = vmax.f32 %v3630, %v3569
        %v3639 = vmax.f32 %v3631, %v3571
        %v3640 = vmax.f32 %v3632, %v3574
        %v3641 = vmax.f32 %v3633, %v3576
        %v3642 = vld [vmem:[%s11] sm:$0xf]
        %v3643 = vld [vmem:[%s11 + $0x4] sm:$0xf]
        %v3644 = vld [vmem:[#allocation7] sm:$0x1]
        %v3645 = vld [vmem:[#allocation8] sm:$0x1]
        %v3646 = vld [vmem:[%s17] sm:$0xf]
        %v3647 = vld [vmem:[%s17 + $0x4] sm:$0xf]
        %v3648 = vld [vmem:[%s17 + $0x8] sm:$0xf]
        %v3649 = vld [vmem:[%s17 + $0xc] sm:$0xf]
        %v3650 = vld [vmem:[%s17 + $0x10] sm:$0xf]
        %v3651 = vld [vmem:[%s17 + $0x14] sm:$0xf]
        %v3652 = vld [vmem:[%s17 + $0x18] sm:$0xf]
        %v3653 = vld [vmem:[%s17 + $0x1c] sm:$0xf]
        %v3654 = vld [vmem:[%s17 + $0x20] sm:$0xf]
        %v3655 = vld [vmem:[%s17 + $0x24] sm:$0xf]
        %v3656 = vld [vmem:[%s17 + $0x28] sm:$0xf]
        %v3657 = vld [vmem:[%s17 + $0x2c] sm:$0xf]
        %v3658 = vld [vmem:[%s17 + $0x30] sm:$0xf]
        %v3659 = vld [vmem:[%s17 + $0x34] sm:$0xf]
        %v3660 = vld [vmem:[%s17 + $0x38] sm:$0xf]
        %v3661 = vld [vmem:[%s17 + $0x3c] sm:$0xf]
        %v3662 = vld [vmem:[%s17 + $0x40] sm:$0xf]
        %v3663 = vld [vmem:[%s17 + $0x44] sm:$0xf]
        %v3664 = vld [vmem:[%s19] sm:$0xff]
        %v3665 = vld [vmem:[%s19 + $0x8] sm:$0xff]
        %v3666 = vld [vmem:[%s19 + $0x10] sm:$0xff]
        %v3667 = vld [vmem:[%s19 + $0x18] sm:$0xff]
        %v3668 = vld [vmem:[%s19 + $0x20] sm:$0xff]
        %v3669 = vld [vmem:[%s19 + $0x28] sm:$0xff]
        %v3670 = vld [vmem:[%s19 + $0x30] sm:$0xff]
        %v3671 = vld [vmem:[%s19 + $0x38] sm:$0xff]
        %v3672 = vld [vmem:[%s19 + $0x40] sm:$0xff]
        %v3673 = vld [vmem:[%s19 + $0x48] sm:$0xff]
        %v3674 = vld [vmem:[%s19 + $0x50] sm:$0xff]
        %v3675 = vld [vmem:[%s19 + $0x58] sm:$0xff]
        %v3676 = vld [vmem:[%s19 + $0x60] sm:$0xff]
        %v3677 = vld [vmem:[%s19 + $0x68] sm:$0xff]
        %v3678 = vld [vmem:[%s19 + $0x70] sm:$0xff]
        %v3679 = vld [vmem:[%s19 + $0x78] sm:$0xff]
        %v3680 = vld [vmem:[%s19 + $0x80] sm:$0xff]
        %v3681 = vld [vmem:[%s19 + $0x88] sm:$0xff]
        %v3682 = vld [vmem:[#allocation10] sm:$0x1]
        %v3683 = vld [vmem:[%s23] sm:$0xff]
        %v3684 = vld [vmem:[%s23 + $0x8] sm:$0xff]
        %v3685 = vld [vmem:[%s25] sm:$0x3]
        %v3686 = vld [vmem:[#allocation11] sm:$0x1]
        %v3687 = vld [vmem:[#allocation13] sm:$0x1]
        %v3688 = vld [vmem:[%s31] sm:$0xf]
        %v3689 = vld [vmem:[%s31 + $0x4] sm:$0xf]
        %v3690 = vld [vmem:[%s33] sm:$0xf]
        %v3691 = vld [vmem:[%s33 + $0x4] sm:$0xf]
        %v3692 = vpack.c.bf16 %v3635, %v3634
        %v3693 = vpack.c.bf16 %v3637, %v3636
        %v3694 = vpack.c.bf16 %v3639, %v3638
        %v3695 = vpack.c.bf16 %v3641, %v3640
        %v3698 = vunpack.c.l.b16 %v3642
        %v3699 = vunpack.c.l.b16 %v3643
        %v3700 = vpack.c.b16 %v3699, %v3698
        %vm3702 = vcmask 130048
        %v3704 = vsel %vm3702, %v3692, 0
        %v3707 = vsel %vm3702, %v3693, 0
        %v3710 = vsel %vm3702, %v3694, 0
        %v3713 = vsel %vm3702, %v3695, 0
        %3715 = vmatpush.bf16.msra.mxu0 0
        %3716 = vmatpush.bf16.msra.mxu0 0
        %3717 = vmatpush.bf16.msra.mxu0 0
        %3718 = vmatpush.bf16.msra.mxu0 0
        %3719 = vmatpush.bf16.msra.mxu0 0
        %3720 = vmatpush.bf16.msra.mxu0 0
        %3721 = vmatpush.bf16.msra.mxu0 0
        %3722 = vmatpush.bf16.msra.mxu0 %v3700
        %3723 = vmatmul.bf16.gmra.mxu0 %v3704
        %v3724 = vpop.f32.mrf.mxu0
        %v3725 = vadd.f32 0.0, %v3724
        %v3726 = vpop.f32.mrf.mxu0
        %v3727 = vadd.f32 0.0, %v3726
        %3728 = vmatmul.bf16.gmra.mxu0 %v3707
        %v3729 = vpop.f32.mrf.mxu0
        %v3730 = vadd.f32 0.0, %v3729
        %v3731 = vpop.f32.mrf.mxu0
        %v3732 = vadd.f32 0.0, %v3731
        %3733 = vmatmul.bf16.gmra.mxu0 %v3710
        %v3734 = vpop.f32.mrf.mxu0
        %v3735 = vadd.f32 0.0, %v3734
        %v3736 = vpop.f32.mrf.mxu0
        %v3737 = vadd.f32 0.0, %v3736
        %3738 = vmatmul.bf16.gmra.mxu0 %v3713
        %v3739 = vpop.f32.mrf.mxu0
        %v3740 = vadd.f32 0.0, %v3739
        %v3741 = vpop.f32.mrf.mxu0
        %v3742 = vadd.f32 0.0, %v3741
        %3743 = vdwg.mxu0
        %v3745 = vperm.slane %v3644, 0
        %v3747 = vmul.f32 %v3725, %v3745
        %v3748 = vmul.f32 %v3727, %v3745
        %v3749 = vmul.f32 %v3730, %v3745
        %v3750 = vmul.f32 %v3732, %v3745
        %v3751 = vmul.f32 %v3735, %v3745
        %v3752 = vmul.f32 %v3737, %v3745
        %v3753 = vmul.f32 %v3740, %v3745
        %v3754 = vmul.f32 %v3742, %v3745
        %v3756 = vperm.slane %v3645, 0
        %v3758 = vadd.f32 %v3747, %v3756
        %v3759 = vadd.f32 %v3748, %v3756
        %v3760 = vadd.f32 %v3749, %v3756
        %v3761 = vadd.f32 %v3750, %v3756
        %v3762 = vadd.f32 %v3751, %v3756
        %v3763 = vadd.f32 %v3752, %v3756
        %v3764 = vadd.f32 %v3753, %v3756
        %v3765 = vadd.f32 %v3754, %v3756
        %v3766 = vmax.f32 %v3758, 0.0
        %v3767 = vmax.f32 %v3759, 0.0
        %v3768 = vmax.f32 %v3760, 0.0
        %v3769 = vmax.f32 %v3761, 0.0
        %v3770 = vmax.f32 %v3762, 0.0
        %v3771 = vmax.f32 %v3763, 0.0
        %v3772 = vmax.f32 %v3764, 0.0
        %v3773 = vmax.f32 %v3765, 0.0
        %v3774 = vpack.c.bf16 %v3767, %v3766
        %v3775 = vpack.c.bf16 %v3769, %v3768
        %v3776 = vpack.c.bf16 %v3771, %v3770
        %v3777 = vpack.c.bf16 %v3773, %v3772
        %v3796 = vunpack.c.l.b16 %v3646
        %v3797 = vunpack.c.l.b16 %v3647
        %v3798 = vunpack.c.l.b16 %v3648
        %v3799 = vunpack.c.l.b16 %v3649
        %v3800 = vunpack.c.l.b16 %v3650
        %v3801 = vunpack.c.l.b16 %v3651
        %v3802 = vunpack.c.l.b16 %v3652
        %v3803 = vunpack.c.l.b16 %v3653
        %v3804 = vunpack.c.l.b16 %v3654
        %v3805 = vunpack.c.l.b16 %v3655
        %v3806 = vunpack.c.l.b16 %v3656
        %v3807 = vunpack.c.l.b16 %v3657
        %v3808 = vunpack.c.l.b16 %v3658
        %v3809 = vunpack.c.l.b16 %v3659
        %v3810 = vunpack.c.l.b16 %v3660
        %v3811 = vunpack.c.l.b16 %v3661
        %v3812 = vunpack.c.l.b16 %v3662
        %v3813 = vunpack.c.l.b16 %v3663
        %v3814 = vpack.c.b16 %v3797, %v3796
        %v3815 = vpack.c.b16 %v3799, %v3798
        %v3816 = vpack.c.b16 %v3801, %v3800
        %v3817 = vpack.c.b16 %v3803, %v3802
        %v3818 = vpack.c.b16 %v3805, %v3804
        %v3819 = vpack.c.b16 %v3807, %v3806
        %v3820 = vpack.c.b16 %v3809, %v3808
        %v3821 = vpack.c.b16 %v3811, %v3810
        %v3822 = vpack.c.b16 %v3813, %v3812
        %vm3823 = vcmask 523264
        %v3825 = vsel %vm3823, %v3814, 0
        %v3828 = vsel %vm3823, %v3815, 0
        %v3831 = vsel %vm3823, %v3816, 0
        %v3834 = vsel %vm3823, %v3817, 0
        %v3837 = vsel %vm3823, %v3818, 0
        %v3840 = vsel %vm3823, %v3819, 0
        %v3843 = vsel %vm3823, %v3820, 0
        %v3846 = vsel %vm3823, %v3821, 0
        %v3849 = vsel %vm3823, %v3822, 0
        %3851 = vmatpush.bf16.msra.mxu0 0
        %3852 = vmatpush.bf16.msra.mxu0 0
        %3853 = vmatpush.bf16.msra.mxu0 0
        %3854 = vmatpush.bf16.msra.mxu0 0
        %3855 = vmatpush.bf16.msra.mxu0 %v3777
        %3856 = vmatpush.bf16.msra.mxu0 %v3776
        %3857 = vmatpush.bf16.msra.mxu0 %v3775
        %3858 = vmatpush.bf16.msra.mxu0 %v3774
        %3859 = vmatmul.bf16.gmra.mxu0 %v3825
        %v3860 = vpop.f32.mrf.mxu0
        %v3861 = vadd.f32 0.0, %v3860
        %v3862 = vpop.f32.mrf.mxu0
        %v3863 = vadd.f32 0.0, %v3862
        %3864 = vmatmul.bf16.gmra.mxu0 %v3828
        %v3865 = vpop.f32.mrf.mxu0
        %v3866 = vadd.f32 0.0, %v3865
        %v3867 = vpop.f32.mrf.mxu0
        %v3868 = vadd.f32 0.0, %v3867
        %3869 = vmatmul.bf16.gmra.mxu0 %v3831
        %v3870 = vpop.f32.mrf.mxu0
        %v3871 = vadd.f32 0.0, %v3870
        %v3872 = vpop.f32.mrf.mxu0
        %v3873 = vadd.f32 0.0, %v3872
        %3874 = vmatmul.bf16.gmra.mxu0 %v3834
        %v3875 = vpop.f32.mrf.mxu0
        %v3876 = vadd.f32 0.0, %v3875
        %v3877 = vpop.f32.mrf.mxu0
        %v3878 = vadd.f32 0.0, %v3877
        %3879 = vmatmul.bf16.gmra.mxu0 %v3837
        %v3880 = vpop.f32.mrf.mxu0
        %v3881 = vadd.f32 0.0, %v3880
        %v3882 = vpop.f32.mrf.mxu0
        %v3883 = vadd.f32 0.0, %v3882
        %3884 = vmatmul.bf16.gmra.mxu0 %v3840
        %v3885 = vpop.f32.mrf.mxu0
        %v3886 = vadd.f32 0.0, %v3885
        %v3887 = vpop.f32.mrf.mxu0
        %v3888 = vadd.f32 0.0, %v3887
        %3889 = vmatmul.bf16.gmra.mxu0 %v3843
        %v3890 = vpop.f32.mrf.mxu0
        %v3891 = vadd.f32 0.0, %v3890
        %v3892 = vpop.f32.mrf.mxu0
        %v3893 = vadd.f32 0.0, %v3892
        %3894 = vmatmul.bf16.gmra.mxu0 %v3846
        %v3895 = vpop.f32.mrf.mxu0
        %v3896 = vadd.f32 0.0, %v3895
        %v3897 = vpop.f32.mrf.mxu0
        %v3898 = vadd.f32 0.0, %v3897
        %3899 = vmatmul.bf16.gmra.mxu0 %v3849
        %v3900 = vpop.f32.mrf.mxu0
        %v3901 = vadd.f32 0.0, %v3900
        %v3902 = vpop.f32.mrf.mxu0
        %v3903 = vadd.f32 0.0, %v3902
        %3904 = vdwg.mxu0
        %v3905 = vmul.f32 %v3861, %v3664
        %v3906 = vmul.f32 %v3863, %v3665
        %v3907 = vmul.f32 %v3866, %v3666
        %v3908 = vmul.f32 %v3868, %v3667
        %v3909 = vmul.f32 %v3871, %v3668
        %v3910 = vmul.f32 %v3873, %v3669
        %v3911 = vmul.f32 %v3876, %v3670
        %v3912 = vmul.f32 %v3878, %v3671
        %v3913 = vmul.f32 %v3881, %v3672
        %v3914 = vmul.f32 %v3883, %v3673
        %v3915 = vmul.f32 %v3886, %v3674
        %v3916 = vmul.f32 %v3888, %v3675
        %v3917 = vmul.f32 %v3891, %v3676
        %v3918 = vmul.f32 %v3893, %v3677
        %v3919 = vmul.f32 %v3896, %v3678
        %v3920 = vmul.f32 %v3898, %v3679
        %v3921 = vmul.f32 %v3901, %v3680
        %v3922 = vmul.f32 %v3903, %v3681
        %v3923 = vpack.c.bf16 %v3906, %v3905
        %v3924 = vpack.c.bf16 %v3908, %v3907
        %v3925 = vpack.c.bf16 %v3910, %v3909
        %v3926 = vpack.c.bf16 %v3912, %v3911
        %v3927 = vpack.c.bf16 %v3914, %v3913
        %v3928 = vpack.c.bf16 %v3916, %v3915
        %v3929 = vpack.c.bf16 %v3918, %v3917
        %v3930 = vpack.c.bf16 %v3920, %v3919
        %v3931 = vpack.c.bf16 %v3922, %v3921
        %v3933 = vperm.slane %v3682, 0
        %v3937 = vunpack.c.l.b16 %v3683
        %v3938 = vunpack.c.h.b16 %v3683
        %v3939 = vunpack.c.l.b16 %v3684
        %v3940 = vunpack.c.h.b16 %v3684
        %v3941 = vpack.c.b16 %v3939, %v3937
        %v3942 = vpack.c.b16 %v3940, %v3938
        %v3945 = vsel %vm3702, %v3942, 0
        %3947 = vmatpush.bf16.msra.mxu0 %v3930
        %3948 = vmatpush.bf16.msra.mxu0 %v3929
        %3949 = vmatpush.bf16.msra.mxu0 %v3928
        %3950 = vmatpush.bf16.msra.mxu0 %v3927
        %3951 = vmatpush.bf16.msra.mxu0 %v3926
        %3952 = vmatpush.bf16.msra.mxu0 %v3925
        %3953 = vmatpush.bf16.msra.mxu0 %v3924
        %3954 = vmatpush.bf16.msra.mxu0 %v3923
        %3955 = vmatmul.bf16.gmra.mxu0 %v3941
        %v3956 = vpop.f32.mrf.mxu0
        %v3957 = vadd.f32 %v3933, %v3956
        %v3958 = vpop.f32.mrf.mxu0
        %v3959 = vadd.f32 %v3933, %v3958
        %3960 = vdwg.mxu0
        %3961 = vmatpush.bf16.msra.mxu0 0
        %3962 = vmatpush.bf16.msra.mxu0 0
        %3963 = vmatpush.bf16.msra.mxu0 0
        %3964 = vmatpush.bf16.msra.mxu0 0
        %3965 = vmatpush.bf16.msra.mxu0 0
        %3966 = vmatpush.bf16.msra.mxu0 0
        %3967 = vmatpush.bf16.msra.mxu0 0
        %3968 = vmatpush.bf16.msra.mxu0 %v3931
        %3969 = vmatmul.bf16.gmra.mxu0 %v3945
        %v3970 = vpop.f32.mrf.mxu0
        %v3971 = vadd.f32 %v3957, %v3970
        %v3972 = vpop.f32.mrf.mxu0
        %v3973 = vadd.f32 %v3959, %v3972
        %3974 = vdwg.mxu0
        %v3975 = vpack.c.bf16 %v3973, %v3971
        %vm3976 = vcmask 31744
        %v3978 = vsel %vm3976, %v3975, 0
        %vm3980 = vcmask 1041408
        %v3982 = vsel %vm3980, %v3685, 0
        %3984 = vmatpush.bf16.msra.mxu0 0
        %3985 = vmatpush.bf16.msra.mxu0 0
        %3986 = vmatpush.bf16.msra.mxu0 0
        %3987 = vmatpush.bf16.msra.mxu0 0
        %3988 = vmatpush.bf16.msra.mxu0 0
        %3989 = vmatpush.bf16.msra.mxu0 0
        %3990 = vmatpush.bf16.msra.mxu0 0
        %3991 = vmatpush.bf16.msra.mxu0 %v3982
        %3992 = vmatmul.bf16.gmra.mxu0 %v3978
        %v3993 = vpop.f32.mrf.mxu0
        %v3994 = vadd.f32 0.0, %v3993
        %v3995 = vpop.f32.mrf.mxu0
        %v3996 = vadd.f32 0.0, %v3995
        %3997 = vdwg.mxu0
        %v3999 = vperm.slane %v3686, 0
        %v4001 = vmul.f32 %v3994, %v3999
        %v4002 = vmul.f32 %v3996, %v3999
        %v4004 = vperm.slane %v3687, 0
        %v4006 = vadd.f32 %v4001, %v4004
        %v4007 = vadd.f32 %v4002, %v4004
        %v4010 = vunpack.c.l.b16 %v3688
        %v4011 = vunpack.c.l.b16 %v3689
        %v4012 = vpack.c.b16 %v4011, %v4010
        %v4014 = vsel %vm3823, %v4012, 0
        %4016 = vmatpush.bf16.msra.mxu0 0
        %4017 = vmatpush.bf16.msra.mxu0 0
        %4018 = vmatpush.bf16.msra.mxu0 0
        %4019 = vmatpush.bf16.msra.mxu0 0
        %4020 = vmatpush.bf16.msra.mxu0 %v3695
        %4021 = vmatpush.bf16.msra.mxu0 %v3694
        %4022 = vmatpush.bf16.msra.mxu0 %v3693
        %4023 = vmatpush.bf16.msra.mxu0 %v3692
        %4024 = vmatmul.bf16.gmra.mxu0 %v4014
        %v4025 = vpop.f32.mrf.mxu0
        %v4026 = vadd.f32 0.0, %v4025
        %v4027 = vpop.f32.mrf.mxu0
        %v4028 = vadd.f32 0.0, %v4027
        %4029 = vdwg.mxu0
        %v4030 = vmul.f32 %v4026, 0.11111111
        %v4031 = vmul.f32 %v4028, 0.11111111
        %v4032 = vpack.c.bf16 %v4031, %v4030
        %v4035 = vunpack.c.l.b16 %v3690
        %v4036 = vunpack.c.l.b16 %v3691
        %v4037 = vpack.c.b16 %v4036, %v4035
        %v4040 = vsel %vm3702, %v4032, 0
        %4042 = vmatpush.bf16.msra.mxu0 0
        %4043 = vmatpush.bf16.msra.mxu0 0
        %4044 = vmatpush.bf16.msra.mxu0 0
        %4045 = vmatpush.bf16.msra.mxu0 0
        %4046 = vmatpush.bf16.msra.mxu0 0
        %4047 = vmatpush.bf16.msra.mxu0 0
        %4048 = vmatpush.bf16.msra.mxu0 0
        %4049 = vmatpush.bf16.msra.mxu0 %v4037
        %4050 = vmatmul.bf16.gmra.mxu0 %v4040
        %v4051 = vpop.f32.mrf.mxu0
        %v4052 = vadd.f32 0.0, %v4051
        %v4053 = vpop.f32.mrf.mxu0
        %v4054 = vadd.f32 0.0, %v4053
        %4055 = vdwg.mxu0
        %v4056 = vadd.f32 %v4006, %v4052
        %v4057 = vadd.f32 %v4007, %v4054
        %v4058 = vmax.f32 %v4056, 0.0
        %v4059 = vmax.f32 %v4057, 0.0
        %v4060 = vld [vmem:[%s35] sm:$0xf]
        %v4061 = vld [vmem:[%s35 + $0x4] sm:$0xf]
        %v4062 = vld [vmem:[%s35 + $0x8] sm:$0xf]
        %v4063 = vld [vmem:[%s35 + $0xc] sm:$0xf]
        %v4064 = vld [vmem:[#allocation14] sm:$0x1]
        %v4065 = vld [vmem:[#allocation16] sm:$0x1]
        %v4066 = vld [vmem:[%s41] sm:$0xf]
        %v4067 = vld [vmem:[%s41 + $0x4] sm:$0xf]
        %v4068 = vld [vmem:[%s41 + $0x8] sm:$0xf]
        %v4069 = vld [vmem:[%s41 + $0xc] sm:$0xf]
        %v4070 = vld [vmem:[%s41 + $0x10] sm:$0xf]
        %v4071 = vld [vmem:[%s41 + $0x14] sm:$0xf]
        %v4072 = vld [vmem:[%s41 + $0x18] sm:$0xf]
        %v4073 = vld [vmem:[%s41 + $0x1c] sm:$0xf]
        %v4074 = vld [vmem:[%s41 + $0x20] sm:$0xf]
        %v4075 = vld [vmem:[%s41 + $0x24] sm:$0xf]
        %v4076 = vld [vmem:[%s41 + $0x28] sm:$0xf]
        %v4077 = vld [vmem:[%s41 + $0x2c] sm:$0xf]
        %v4078 = vld [vmem:[%s41 + $0x30] sm:$0xf]
        %v4079 = vld [vmem:[%s41 + $0x34] sm:$0xf]
        %v4080 = vld [vmem:[%s41 + $0x38] sm:$0xf]
        %v4081 = vld [vmem:[%s41 + $0x3c] sm:$0xf]
        %v4082 = vld [vmem:[%s41 + $0x40] sm:$0xf]
        %v4083 = vld [vmem:[%s41 + $0x44] sm:$0xf]
        %v4084 = vld [vmem:[%s43] sm:$0xff]
        %v4085 = vld [vmem:[%s43 + $0x8] sm:$0xff]
        %v4086 = vld [vmem:[%s43 + $0x10] sm:$0xff]
        %v4087 = vld [vmem:[%s43 + $0x18] sm:$0xff]
        %v4088 = vld [vmem:[%s43 + $0x20] sm:$0xff]
        %v4089 = vld [vmem:[%s43 + $0x28] sm:$0xff]
        %v4090 = vld [vmem:[%s43 + $0x30] sm:$0xff]
        %v4091 = vld [vmem:[%s43 + $0x38] sm:$0xff]
        %v4092 = vld [vmem:[%s43 + $0x40] sm:$0xff]
        %v4093 = vld [vmem:[%s43 + $0x48] sm:$0xff]
        %v4094 = vld [vmem:[%s43 + $0x50] sm:$0xff]
        %v4095 = vld [vmem:[%s43 + $0x58] sm:$0xff]
        %v4096 = vld [vmem:[%s43 + $0x60] sm:$0xff]
        %v4097 = vld [vmem:[%s43 + $0x68] sm:$0xff]
        %v4098 = vld [vmem:[%s43 + $0x70] sm:$0xff]
        %v4099 = vld [vmem:[%s43 + $0x78] sm:$0xff]
        %v4100 = vld [vmem:[%s43 + $0x80] sm:$0xff]
        %v4101 = vld [vmem:[%s43 + $0x88] sm:$0xff]
        %v4102 = vld [vmem:[#allocation17] sm:$0x1]
        %v4103 = vld [vmem:[%s47] sm:$0xff]
        %v4104 = vld [vmem:[%s47 + $0x8] sm:$0xff]
        %v4105 = vld [vmem:[%s49] sm:$0xf]
        %v4106 = vld [vmem:[#allocation19] sm:$0x1]
        %v4107 = vld [vmem:[#allocation20] sm:$0x1]
        %v4108 = vpack.c.bf16 %v4059, %v4058
        %v4113 = vunpack.c.l.b16 %v4060
        %v4114 = vunpack.c.l.b16 %v4061
        %v4115 = vunpack.c.l.b16 %v4062
        %v4116 = vunpack.c.l.b16 %v4063
        %v4117 = vpack.c.b16 %v4114, %v4113
        %v4118 = vpack.c.b16 %v4116, %v4115
        %vm4121 = vcmask 261120
        %v4123 = vsel %vm4121, %v4108, 0
        %4125 = vmatpush.bf16.msra.mxu0 0
        %4126 = vmatpush.bf16.msra.mxu0 0
        %4127 = vmatpush.bf16.msra.mxu0 0
        %4128 = vmatpush.bf16.msra.mxu0 0
        %4129 = vmatpush.bf16.msra.mxu0 0
        %4130 = vmatpush.bf16.msra.mxu0 0
        %4131 = vmatpush.bf16.msra.mxu0 %v4118
        %4132 = vmatpush.bf16.msra.mxu0 %v4117
        %4133 = vmatmul.bf16.gmra.mxu0 %v4123
        %v4134 = vpop.f32.mrf.mxu0
        %v4135 = vadd.f32 0.0, %v4134
        %v4136 = vpop.f32.mrf.mxu0
        %v4137 = vadd.f32 0.0, %v4136
        %4138 = vdwg.mxu0
        %v4140 = vperm.slane %v4064, 0
        %v4142 = vmul.f32 %v4135, %v4140
        %v4143 = vmul.f32 %v4137, %v4140
        %v4145 = vperm.slane %v4065, 0
        %v4147 = vadd.f32 %v4142, %v4145
        %v4148 = vadd.f32 %v4143, %v4145
        %v4149 = vmax.f32 %v4147, 0.0
        %v4150 = vmax.f32 %v4148, 0.0
        %v4151 = vpack.c.bf16 %v4150, %v4149
        %v4170 = vunpack.c.l.b16 %v4066
        %v4171 = vunpack.c.l.b16 %v4067
        %v4172 = vunpack.c.l.b16 %v4068
        %v4173 = vunpack.c.l.b16 %v4069
        %v4174 = vunpack.c.l.b16 %v4070
        %v4175 = vunpack.c.l.b16 %v4071
        %v4176 = vunpack.c.l.b16 %v4072
        %v4177 = vunpack.c.l.b16 %v4073
        %v4178 = vunpack.c.l.b16 %v4074
        %v4179 = vunpack.c.l.b16 %v4075
        %v4180 = vunpack.c.l.b16 %v4076
        %v4181 = vunpack.c.l.b16 %v4077
        %v4182 = vunpack.c.l.b16 %v4078
        %v4183 = vunpack.c.l.b16 %v4079
        %v4184 = vunpack.c.l.b16 %v4080
        %v4185 = vunpack.c.l.b16 %v4081
        %v4186 = vunpack.c.l.b16 %v4082
        %v4187 = vunpack.c.l.b16 %v4083
        %v4188 = vpack.c.b16 %v4171, %v4170
        %v4189 = vpack.c.b16 %v4173, %v4172
        %v4190 = vpack.c.b16 %v4175, %v4174
        %v4191 = vpack.c.b16 %v4177, %v4176
        %v4192 = vpack.c.b16 %v4179, %v4178
        %v4193 = vpack.c.b16 %v4181, %v4180
        %v4194 = vpack.c.b16 %v4183, %v4182
        %v4195 = vpack.c.b16 %v4185, %v4184
        %v4196 = vpack.c.b16 %v4187, %v4186
        %v4198 = vsel %vm3702, %v4188, 0
        %v4201 = vsel %vm3702, %v4189, 0
        %v4204 = vsel %vm3702, %v4190, 0
        %v4207 = vsel %vm3702, %v4191, 0
        %v4210 = vsel %vm3702, %v4192, 0
        %v4213 = vsel %vm3702, %v4193, 0
        %v4216 = vsel %vm3702, %v4194, 0
        %v4219 = vsel %vm3702, %v4195, 0
        %v4222 = vsel %vm3702, %v4196, 0
        %4224 = vmatpush.bf16.msra.mxu0 0
        %4225 = vmatpush.bf16.msra.mxu0 0
        %4226 = vmatpush.bf16.msra.mxu0 0
        %4227 = vmatpush.bf16.msra.mxu0 0
        %4228 = vmatpush.bf16.msra.mxu0 0
        %4229 = vmatpush.bf16.msra.mxu0 0
        %4230 = vmatpush.bf16.msra.mxu0 0
        %4231 = vmatpush.bf16.msra.mxu0 %v4151
        %4232 = vmatmul.bf16.gmra.mxu0 %v4198
        %v4233 = vpop.f32.mrf.mxu0
        %v4234 = vadd.f32 0.0, %v4233
        %v4235 = vpop.f32.mrf.mxu0
        %v4236 = vadd.f32 0.0, %v4235
        %4237 = vmatmul.bf16.gmra.mxu0 %v4201
        %v4238 = vpop.f32.mrf.mxu0
        %v4239 = vadd.f32 0.0, %v4238
        %v4240 = vpop.f32.mrf.mxu0
        %v4241 = vadd.f32 0.0, %v4240
        %4242 = vmatmul.bf16.gmra.mxu0 %v4204
        %v4243 = vpop.f32.mrf.mxu0
        %v4244 = vadd.f32 0.0, %v4243
        %v4245 = vpop.f32.mrf.mxu0
        %v4246 = vadd.f32 0.0, %v4245
        %4247 = vmatmul.bf16.gmra.mxu0 %v4207
        %v4248 = vpop.f32.mrf.mxu0
        %v4249 = vadd.f32 0.0, %v4248
        %v4250 = vpop.f32.mrf.mxu0
        %v4251 = vadd.f32 0.0, %v4250
        %4252 = vmatmul.bf16.gmra.mxu0 %v4210
        %v4253 = vpop.f32.mrf.mxu0
        %v4254 = vadd.f32 0.0, %v4253
        %v4255 = vpop.f32.mrf.mxu0
        %v4256 = vadd.f32 0.0, %v4255
        %4257 = vmatmul.bf16.gmra.mxu0 %v4213
        %v4258 = vpop.f32.mrf.mxu0
        %v4259 = vadd.f32 0.0, %v4258
        %v4260 = vpop.f32.mrf.mxu0
        %v4261 = vadd.f32 0.0, %v4260
        %4262 = vmatmul.bf16.gmra.mxu0 %v4216
        %v4263 = vpop.f32.mrf.mxu0
        %v4264 = vadd.f32 0.0, %v4263
        %v4265 = vpop.f32.mrf.mxu0
        %v4266 = vadd.f32 0.0, %v4265
        %4267 = vmatmul.bf16.gmra.mxu0 %v4219
        %v4268 = vpop.f32.mrf.mxu0
        %v4269 = vadd.f32 0.0, %v4268
        %v4270 = vpop.f32.mrf.mxu0
        %v4271 = vadd.f32 0.0, %v4270
        %4272 = vmatmul.bf16.gmra.mxu0 %v4222
        %v4273 = vpop.f32.mrf.mxu0
        %v4274 = vadd.f32 0.0, %v4273
        %v4275 = vpop.f32.mrf.mxu0
        %v4276 = vadd.f32 0.0, %v4275
        %4277 = vdwg.mxu0
        %v4278 = vmul.f32 %v4234, %v4084
        %v4279 = vmul.f32 %v4236, %v4085
        %v4280 = vmul.f32 %v4239, %v4086
        %v4281 = vmul.f32 %v4241, %v4087
        %v4282 = vmul.f32 %v4244, %v4088
        %v4283 = vmul.f32 %v4246, %v4089
        %v4284 = vmul.f32 %v4249, %v4090
        %v4285 = vmul.f32 %v4251, %v4091
        %v4286 = vmul.f32 %v4254, %v4092
        %v4287 = vmul.f32 %v4256, %v4093
        %v4288 = vmul.f32 %v4259, %v4094
        %v4289 = vmul.f32 %v4261, %v4095
        %v4290 = vmul.f32 %v4264, %v4096
        %v4291 = vmul.f32 %v4266, %v4097
        %v4292 = vmul.f32 %v4269, %v4098
        %v4293 = vmul.f32 %v4271, %v4099
        %v4294 = vmul.f32 %v4274, %v4100
        %v4295 = vmul.f32 %v4276, %v4101
        %v4296 = vpack.c.bf16 %v4279, %v4278
        %v4297 = vpack.c.bf16 %v4281, %v4280
        %v4298 = vpack.c.bf16 %v4283, %v4282
        %v4299 = vpack.c.bf16 %v4285, %v4284
        %v4300 = vpack.c.bf16 %v4287, %v4286
        %v4301 = vpack.c.bf16 %v4289, %v4288
        %v4302 = vpack.c.bf16 %v4291, %v4290
        %v4303 = vpack.c.bf16 %v4293, %v4292
        %v4304 = vpack.c.bf16 %v4295, %v4294
        %v4306 = vperm.slane %v4102, 0
        %v4310 = vunpack.c.l.b16 %v4103
        %v4311 = vunpack.c.h.b16 %v4103
        %v4312 = vunpack.c.l.b16 %v4104
        %v4313 = vunpack.c.h.b16 %v4104
        %v4314 = vpack.c.b16 %v4312, %v4310
        %v4315 = vpack.c.b16 %v4313, %v4311
        %v4318 = vsel %vm3702, %v4315, 0
        %4320 = vmatpush.bf16.msra.mxu0 %v4303
        %4321 = vmatpush.bf16.msra.mxu0 %v4302
        %4322 = vmatpush.bf16.msra.mxu0 %v4301
        %4323 = vmatpush.bf16.msra.mxu0 %v4300
        %4324 = vmatpush.bf16.msra.mxu0 %v4299
        %4325 = vmatpush.bf16.msra.mxu0 %v4298
        %4326 = vmatpush.bf16.msra.mxu0 %v4297
        %4327 = vmatpush.bf16.msra.mxu0 %v4296
        %4328 = vmatmul.bf16.gmra.mxu0 %v4314
        %v4329 = vpop.f32.mrf.mxu0
        %v4330 = vadd.f32 %v4306, %v4329
        %v4331 = vpop.f32.mrf.mxu0
        %v4332 = vadd.f32 %v4306, %v4331
        %4333 = vdwg.mxu0
        %4334 = vmatpush.bf16.msra.mxu0 0
        %4335 = vmatpush.bf16.msra.mxu0 0
        %4336 = vmatpush.bf16.msra.mxu0 0
        %4337 = vmatpush.bf16.msra.mxu0 0
        %4338 = vmatpush.bf16.msra.mxu0 0
        %4339 = vmatpush.bf16.msra.mxu0 0
        %4340 = vmatpush.bf16.msra.mxu0 0
        %4341 = vmatpush.bf16.msra.mxu0 %v4304
        %4342 = vmatmul.bf16.gmra.mxu0 %v4318
        %v4343 = vpop.f32.mrf.mxu0
        %v4344 = vadd.f32 %v4330, %v4343
        %v4345 = vpop.f32.mrf.mxu0
        %v4346 = vadd.f32 %v4332, %v4345
        %4347 = vdwg.mxu0
        %v4348 = vpack.c.bf16 %v4346, %v4344
        %vm4349 = vcmask 64512
        %v4351 = vsel %vm4349, %v4348, 0
        %vm4353 = vcmask 1043456
        %v4355 = vsel %vm4353, %v4105, 0
        %4357 = vmatpush.bf16.msra.mxu0 0
        %4358 = vmatpush.bf16.msra.mxu0 0
        %4359 = vmatpush.bf16.msra.mxu0 0
        %4360 = vmatpush.bf16.msra.mxu0 0
        %4361 = vmatpush.bf16.msra.mxu0 0
        %4362 = vmatpush.bf16.msra.mxu0 0
        %4363 = vmatpush.bf16.msra.mxu0 0
        %4364 = vmatpush.bf16.msra.mxu0 %v4355
        %4365 = vmatmul.bf16.gmra.mxu0 %v4351
        %v4366 = vpop.f32.mrf.mxu0
        %v4367 = vadd.f32 0.0, %v4366
        %v4368 = vpop.f32.mrf.mxu0
        %v4369 = vadd.f32 0.0, %v4368
        %4370 = vdwg.mxu0
        %v4372 = vperm.slane %v4106, 0
        %v4374 = vmul.f32 %v4367, %v4372
        %v4375 = vmul.f32 %v4369, %v4372
        %v4377 = vperm.slane %v4107, 0
        %v4379 = vadd.f32 %v4374, %v4377
        %v4380 = vadd.f32 %v4375, %v4377
        %v4381 = vadd.f32 %v4379, %v4058
        %v4382 = vadd.f32 %v4380, %v4059
        %v4383 = vmax.f32 %v4381, 0.0
        %v4384 = vmax.f32 %v4382, 0.0
        %v4385 = vld [vmem:[%s55] sm:$0xf]
        %v4386 = vld [vmem:[%s55 + $0x4] sm:$0xf]
        %v4387 = vld [vmem:[%s55 + $0x8] sm:$0xf]
        %v4388 = vld [vmem:[%s55 + $0xc] sm:$0xf]
        %v4389 = vld [vmem:[#allocation22] sm:$0x1]
        %v4390 = vld [vmem:[#allocation23] sm:$0x1]
        %v4391 = vld [vmem:[%s61] sm:$0xf]
        %v4392 = vld [vmem:[%s61 + $0x4] sm:$0xf]
        %v4393 = vld [vmem:[%s61 + $0x8] sm:$0xf]
        %v4394 = vld [vmem:[%s61 + $0xc] sm:$0xf]
        %v4395 = vld [vmem:[%s61 + $0x10] sm:$0x3]
        %v4396 = vld [vmem:[%s63] sm:$0xff]
        %v4397 = vld [vmem:[%s63 + $0x8] sm:$0xff]
        %v4398 = vld [vmem:[%s63 + $0x10] sm:$0xff]
        %v4399 = vld [vmem:[%s63 + $0x18] sm:$0xff]
        %v4400 = vld [vmem:[%s63 + $0x20] sm:$0xf]
        %v4401 = vld [vmem:[#allocation25] sm:$0x1]
        %v4402 = vld [vmem:[%s67] sm:$0x3]
        %v4403 = vld [vmem:[%s69] sm:$0xf]
        %v4404 = vld [vmem:[%s71] sm:$0x1]
        %v4405 = vld [vmem:[%s73] sm:$0x1]
        %v4406 = vld [vmem:[%s75] sm:$0x3]
        %v4407 = vld [vmem:[%s77] sm:$0xf]
        %v4408 = vld [vmem:[%s77 + $0x4] sm:$0xf]
        %v4409 = vld [vmem:[%s77 + $0x8] sm:$0xf]
        %v4410 = vld [vmem:[%s77 + $0xc] sm:$0xf]
        %v4411 = vpack.c.bf16 %v4384, %v4383
        %v4416 = vunpack.c.l.b16 %v4385
        %v4417 = vunpack.c.l.b16 %v4386
        %v4418 = vunpack.c.l.b16 %v4387
        %v4419 = vunpack.c.l.b16 %v4388
        %v4420 = vpack.c.b16 %v4417, %v4416
        %v4421 = vpack.c.b16 %v4419, %v4418
        %v4425 = vsel %vm4121, %v4411, 0
        %4427 = vmatpush.bf16.msra.mxu0 0
        %4428 = vmatpush.bf16.msra.mxu0 0
        %4429 = vmatpush.bf16.msra.mxu0 0
        %4430 = vmatpush.bf16.msra.mxu0 0
        %4431 = vmatpush.bf16.msra.mxu0 0
        %4432 = vmatpush.bf16.msra.mxu0 0
        %4433 = vmatpush.bf16.msra.mxu0 %v4421
        %4434 = vmatpush.bf16.msra.mxu0 %v4420
        %4435 = vmatmul.bf16.gmra.mxu0 %v4425
        %v4436 = vpop.f32.mrf.mxu0
        %v4437 = vadd.f32 0.0, %v4436
        %v4438 = vpop.f32.mrf.mxu0
        %v4439 = vadd.f32 0.0, %v4438
        %4440 = vdwg.mxu0
        %v4442 = vperm.slane %v4389, 0
        %v4444 = vmul.f32 %v4437, %v4442
        %v4445 = vmul.f32 %v4439, %v4442
        %v4447 = vperm.slane %v4390, 0
        %v4449 = vadd.f32 %v4444, %v4447
        %v4450 = vadd.f32 %v4445, %v4447
        %v4451 = vmax.f32 %v4449, 0.0
        %v4452 = vmax.f32 %v4450, 0.0
        %v4453 = vpack.c.bf16 %v4452, %v4451
        %v4459 = vunpack.c.l.b16 %v4391
        %v4460 = vunpack.c.l.b16 %v4392
        %v4461 = vunpack.c.l.b16 %v4393
        %v4462 = vunpack.c.l.b16 %v4394
        %v4463 = vunpack.c.l.b16 %v4395
        %v4464 = vpack.c.b16 %v4460, %v4459
        %v4465 = vpack.c.b16 %v4462, %v4461
        %v4466 = vpack.c.b16 %v4463, %v4463
        %v4468 = vsel %vm3702, %v4464, 0
        %v4471 = vsel %vm3702, %v4465, 0
        %v4474 = vsel %vm3702, %v4466, 0
        %4476 = vmatpush.bf16.msra.mxu0 0
        %4477 = vmatpush.bf16.msra.mxu0 0
        %4478 = vmatpush.bf16.msra.mxu0 0
        %4479 = vmatpush.bf16.msra.mxu0 0
        %4480 = vmatpush.bf16.msra.mxu0 0
        %4481 = vmatpush.bf16.msra.mxu0 0
        %4482 = vmatpush.bf16.msra.mxu0 0
        %4483 = vmatpush.bf16.msra.mxu0 %v4453
        %4484 = vmatmul.bf16.gmra.mxu0 %v4468
        %v4485 = vpop.f32.mrf.mxu0
        %v4486 = vadd.f32 0.0, %v4485
        %v4487 = vpop.f32.mrf.mxu0
        %v4488 = vadd.f32 0.0, %v4487
        %4489 = vmatmul.bf16.gmra.mxu0 %v4471
        %v4490 = vpop.f32.mrf.mxu0
        %v4491 = vadd.f32 0.0, %v4490
        %v4492 = vpop.f32.mrf.mxu0
        %v4493 = vadd.f32 0.0, %v4492
        %4494 = vmatmul.bf16.gmra.mxu0 %v4474
        %v4495 = vpop.f32.mrf.mxu0
        %v4496 = vadd.f32 0.0, %v4495
        %v4497 = vpop.f32.mrf.mxu0
        %4498 = vdwg.mxu0
        %v4499 = vmul.f32 %v4486, %v4396
        %v4500 = vmul.f32 %v4488, %v4397
        %v4501 = vmul.f32 %v4491, %v4398
        %v4502 = vmul.f32 %v4493, %v4399
        %v4503 = vmul.f32 %v4496, %v4400
        %v4504 = vpack.c.bf16 %v4500, %v4499
        %v4505 = vpack.c.bf16 %v4502, %v4501
        %v4506 = vpack.c.bf16 %v4503, %v4503
        %v4508 = vperm.slane %v4401, 0
        %vm4510 = vcmask 293888
        %v4512 = vsel %vm4510, %v4402, 0
        %v4515 = vsel %vm3980, %v4506, 0
        %4517 = vmatpush.bf16.msra.mxu0 0
        %4518 = vmatpush.bf16.msra.mxu0 0
        %4519 = vmatpush.bf16.msra.mxu0 0
        %4520 = vmatpush.bf16.msra.mxu0 0
        %4521 = vmatpush.bf16.msra.mxu0 0
        %4522 = vmatpush.bf16.msra.mxu0 %v4515
        %4523 = vmatpush.bf16.msra.mxu0 %v4505
        %4524 = vmatpush.bf16.msra.mxu0 %v4504
        %4525 = vmatmul.bf16.gmra.mxu0 %v4512
        %v4526 = vpop.f32.mrf.mxu0
        %v4527 = vadd.f32 %v4508, %v4526
        %v4528 = vpop.f32.mrf.mxu0
        %4529 = vdwg.mxu0
        %v4530 = vpack.c.bf16 %v4527, %v4527
        %v4532 = vsel %vm4349, %v4530, 0
        %v4535 = vsel %vm4353, %v4403, 0
        %4537 = vmatpush.bf16.msra.mxu0 0
        %4538 = vmatpush.bf16.msra.mxu0 0
        %4539 = vmatpush.bf16.msra.mxu0 0
        %4540 = vmatpush.bf16.msra.mxu0 0
        %4541 = vmatpush.bf16.msra.mxu0 0
        %4542 = vmatpush.bf16.msra.mxu0 0
        %4543 = vmatpush.bf16.msra.mxu0 0
        %4544 = vmatpush.bf16.msra.mxu0 %v4535
        %4545 = vmatmul.bf16.gmra.mxu0 %v4532
        %v4546 = vpop.f32.mrf.mxu0
        %v4547 = vadd.f32 0.0, %v4546
        %v4548 = vpop.f32.mrf.mxu0
        %4549 = vdwg.mxu0
        %v4551 = vperm.slane %v4404, 0
        %v4553 = vmul.f32 %v4547, %v4551
        %v4555 = vperm.slane %v4405, 0
        %v4557 = vadd.f32 %v4553, %v4555
        %v4559 = vsel %vm3702, %v4406, 0
        %4561 = vmatpush.bf16.msra.mxu0 0
        %4562 = vmatpush.bf16.msra.mxu0 0
        %4563 = vmatpush.bf16.msra.mxu0 0
        %4564 = vmatpush.bf16.msra.mxu0 0
        %4565 = vmatpush.bf16.msra.mxu0 0
        %4566 = vmatpush.bf16.msra.mxu0 0
        %4567 = vmatpush.bf16.msra.mxu0 0
        %4568 = vmatpush.bf16.msra.mxu0 %v4411
        %4569 = vmatmul.bf16.gmra.mxu0 %v4559
        %v4570 = vpop.f32.mrf.mxu0
        %v4571 = vadd.f32 0.0, %v4570
        %v4572 = vpop.f32.mrf.mxu0
        %4573 = vdwg.mxu0
        %v4574 = vmul.f32 %v4571, 0.11111111
        %v4575 = vpack.c.bf16 %v4574, %v4574
        %v4580 = vunpack.c.l.b16 %v4407
        %v4581 = vunpack.c.l.b16 %v4408
        %v4582 = vunpack.c.l.b16 %v4409
        %v4583 = vunpack.c.l.b16 %v4410
        %v4584 = vpack.c.b16 %v4581, %v4580
        %v4585 = vpack.c.b16 %v4583, %v4582
        %v4589 = vsel %vm4121, %v4575, 0
        %4591 = vmatpush.bf16.msra.mxu0 0
        %4592 = vmatpush.bf16.msra.mxu0 0
        %4593 = vmatpush.bf16.msra.mxu0 0
        %4594 = vmatpush.bf16.msra.mxu0 0
        %4595 = vmatpush.bf16.msra.mxu0 0
        %4596 = vmatpush.bf16.msra.mxu0 0
        %4597 = vmatpush.bf16.msra.mxu0 %v4585
        %4598 = vmatpush.bf16.msra.mxu0 %v4584
        %4599 = vmatmul.bf16.gmra.mxu0 %v4589
        %v4600 = vpop.f32.mrf.mxu0
        %v4601 = vadd.f32 0.0, %v4600
        %v4602 = vpop.f32.mrf.mxu0
        %4603 = vdwg.mxu0
        %v4604 = vadd.f32 %v4557, %v4601
        %v4605 = vmax.f32 %v4604, 0.0
        %v4606 = vld [vmem:[%s79] sm:$0xf]
        %v4607 = vld [vmem:[%s79 + $0x4] sm:$0xf]
        %v4608 = vld [vmem:[%s79 + $0x8] sm:$0xf]
        %v4609 = vld [vmem:[%s79 + $0xc] sm:$0xf]
        %v4610 = vld [vmem:[%s79 + $0x10] sm:$0xf]
        %v4611 = vld [vmem:[%s79 + $0x14] sm:$0xf]
        %v4612 = vld [vmem:[%s79 + $0x18] sm:$0xf]
        %v4613 = vld [vmem:[%s79 + $0x1c] sm:$0xf]
        %v4614 = vld [vmem:[%s81] sm:$0x1]
        %v4615 = vld [vmem:[%s83] sm:$0x1]
        %v4616 = vld [vmem:[%s85] sm:$0xf]
        %v4617 = vld [vmem:[%s85 + $0x4] sm:$0xf]
        %v4618 = vld [vmem:[%s85 + $0x8] sm:$0xf]
        %v4619 = vld [vmem:[%s85 + $0xc] sm:$0xf]
        %v4620 = vld [vmem:[%s85 + $0x10] sm:$0x3]
        %v4621 = vld [vmem:[%s87] sm:$0xff]
        %v4622 = vld [vmem:[%s87 + $0x8] sm:$0xff]
        %v4623 = vld [vmem:[%s87 + $0x10] sm:$0xff]
        %v4624 = vld [vmem:[%s87 + $0x18] sm:$0xff]
        %v4625 = vld [vmem:[%s87 + $0x20] sm:$0xf]
        %v4626 = vld [vmem:[%s89] sm:$0x1]
        %v4627 = vld [vmem:[%s91] sm:$0x3]
        %v4628 = vld [vmem:[%s93] sm:$0xf]
        %v4629 = vld [vmem:[%s93 + $0x4] sm:$0xf]
        %v4630 = vld [vmem:[%s95] sm:$0x1]
        %v4631 = vld [vmem:[%s97] sm:$0x1]
        %v4632 = vpack.c.bf16 %v4605, %v4605
        %v4641 = vunpack.c.l.b16 %v4606
        %v4642 = vunpack.c.l.b16 %v4607
        %v4643 = vunpack.c.l.b16 %v4608
        %v4644 = vunpack.c.l.b16 %v4609
        %v4645 = vunpack.c.l.b16 %v4610
        %v4646 = vunpack.c.l.b16 %v4611
        %v4647 = vunpack.c.l.b16 %v4612
        %v4648 = vunpack.c.l.b16 %v4613
        %v4649 = vpack.c.b16 %v4642, %v4641
        %v4650 = vpack.c.b16 %v4644, %v4643
        %v4651 = vpack.c.b16 %v4646, %v4645
        %v4652 = vpack.c.b16 %v4648, %v4647
        %v4658 = vsel %vm3823, %v4632, 0
        %4660 = vmatpush.bf16.msra.mxu0 0
        %4661 = vmatpush.bf16.msra.mxu0 0
        %4662 = vmatpush.bf16.msra.mxu0 0
        %4663 = vmatpush.bf16.msra.mxu0 0
        %4664 = vmatpush.bf16.msra.mxu0 %v4652
        %4665 = vmatpush.bf16.msra.mxu0 %v4651
        %4666 = vmatpush.bf16.msra.mxu0 %v4650
        %4667 = vmatpush.bf16.msra.mxu0 %v4649
        %4668 = vmatmul.bf16.gmra.mxu0 %v4658
        %v4669 = vpop.f32.mrf.mxu0
        %v4670 = vadd.f32 0.0, %v4669
        %v4671 = vpop.f32.mrf.mxu0
        %4672 = vdwg.mxu0
        %v4674 = vperm.slane %v4614, 0
        %v4676 = vmul.f32 %v4670, %v4674
        %v4678 = vperm.slane %v4615, 0
        %v4680 = vadd.f32 %v4676, %v4678
        %v4681 = vmax.f32 %v4680, 0.0
        %v4682 = vpack.c.bf16 %v4681, %v4681
        %v4688 = vunpack.c.l.b16 %v4616
        %v4689 = vunpack.c.l.b16 %v4617
        %v4690 = vunpack.c.l.b16 %v4618
        %v4691 = vunpack.c.l.b16 %v4619
        %v4692 = vunpack.c.l.b16 %v4620
        %v4693 = vpack.c.b16 %v4689, %v4688
        %v4694 = vpack.c.b16 %v4691, %v4690
        %v4695 = vpack.c.b16 %v4692, %v4692
        %v4697 = vsel %vm3976, %v4693, 0
        %v4700 = vsel %vm3976, %v4694, 0
        %v4703 = vsel %vm3976, %v4695, 0
        %v4706 = vsel %vm3980, %v4682, 0
        %4708 = vmatpush.bf16.msra.mxu0 0
        %4709 = vmatpush.bf16.msra.mxu0 0
        %4710 = vmatpush.bf16.msra.mxu0 0
        %4711 = vmatpush.bf16.msra.mxu0 0
        %4712 = vmatpush.bf16.msra.mxu0 0
        %4713 = vmatpush.bf16.msra.mxu0 0
        %4714 = vmatpush.bf16.msra.mxu0 0
        %4715 = vmatpush.bf16.msra.mxu0 %v4706
        %4716 = vmatmul.bf16.gmra.mxu0 %v4697
        %v4717 = vpop.f32.mrf.mxu0
        %v4718 = vadd.f32 0.0, %v4717
        %v4719 = vpop.f32.mrf.mxu0
        %v4720 = vadd.f32 0.0, %v4719
        %4721 = vmatmul.bf16.gmra.mxu0 %v4700
        %v4722 = vpop.f32.mrf.mxu0
        %v4723 = vadd.f32 0.0, %v4722
        %v4724 = vpop.f32.mrf.mxu0
        %v4725 = vadd.f32 0.0, %v4724
        %4726 = vmatmul.bf16.gmra.mxu0 %v4703
        %v4727 = vpop.f32.mrf.mxu0
        %v4728 = vadd.f32 0.0, %v4727
        %v4729 = vpop.f32.mrf.mxu0
        %4730 = vdwg.mxu0
        %v4731 = vmul.f32 %v4718, %v4621
        %v4732 = vmul.f32 %v4720, %v4622
        %v4733 = vmul.f32 %v4723, %v4623
        %v4734 = vmul.f32 %v4725, %v4624
        %v4735 = vmul.f32 %v4728, %v4625
        %v4736 = vpack.c.bf16 %v4732, %v4731
        %v4737 = vpack.c.bf16 %v4734, %v4733
        %v4738 = vpack.c.bf16 %v4735, %v4735
        %v4740 = vperm.slane %v4626, 0
        %v4743 = vsel %vm4510, %v4627, 0
        %v4746 = vsel %vm3980, %v4738, 0
        %4748 = vmatpush.bf16.msra.mxu0 0
        %4749 = vmatpush.bf16.msra.mxu0 0
        %4750 = vmatpush.bf16.msra.mxu0 0
        %4751 = vmatpush.bf16.msra.mxu0 0
        %4752 = vmatpush.bf16.msra.mxu0 0
        %4753 = vmatpush.bf16.msra.mxu0 %v4746
        %4754 = vmatpush.bf16.msra.mxu0 %v4737
        %4755 = vmatpush.bf16.msra.mxu0 %v4736
        %4756 = vmatmul.bf16.gmra.mxu0 %v4743
        %v4757 = vpop.f32.mrf.mxu0
        %v4758 = vadd.f32 %v4740, %v4757
        %v4759 = vpop.f32.mrf.mxu0
        %4760 = vdwg.mxu0
        %v4761 = vpack.c.bf16 %v4758, %v4758
        %v4764 = vunpack.c.l.b16 %v4628
        %v4765 = vunpack.c.l.b16 %v4629
        %v4766 = vpack.c.b16 %v4765, %v4764
        %v4769 = vsel %vm3702, %v4761, 0
        %4771 = vmatpush.bf16.msra.mxu0 0
        %4772 = vmatpush.bf16.msra.mxu0 0
        %4773 = vmatpush.bf16.msra.mxu0 0
        %4774 = vmatpush.bf16.msra.mxu0 0
        %4775 = vmatpush.bf16.msra.mxu0 0
        %4776 = vmatpush.bf16.msra.mxu0 0
        %4777 = vmatpush.bf16.msra.mxu0 0
        %4778 = vmatpush.bf16.msra.mxu0 %v4766
        %4779 = vmatmul.bf16.gmra.mxu0 %v4769
        %v4780 = vpop.f32.mrf.mxu0
        %v4781 = vadd.f32 0.0, %v4780
        %v4782 = vpop.f32.mrf.mxu0
        %4783 = vdwg.mxu0
        %v4785 = vperm.slane %v4630, 0
        %v4787 = vmul.f32 %v4781, %v4785
        %v4789 = vperm.slane %v4631, 0
        %v4791 = vadd.f32 %v4787, %v4789
        %v4792 = vadd.f32 %v4791, %v4605
        %v4793 = vmax.f32 %v4792, 0.0
        %v4794 = vld [vmem:[%s99] sm:$0xf]
        %v4795 = vld [vmem:[%s99 + $0x4] sm:$0xf]
        %v4796 = vld [vmem:[%s99 + $0x8] sm:$0xf]
        %v4797 = vld [vmem:[%s99 + $0xc] sm:$0xf]
        %v4798 = vld [vmem:[%s99 + $0x10] sm:$0xf]
        %v4799 = vld [vmem:[%s99 + $0x14] sm:$0xf]
        %v4800 = vld [vmem:[%s99 + $0x18] sm:$0xf]
        %v4801 = vld [vmem:[%s99 + $0x1c] sm:$0xf]
        %v4802 = vld [vmem:[#allocation26] sm:$0x1]
        %v4803 = vld [vmem:[#allocation28] sm:$0x1]
        %v4804 = vld [vmem:[%s105] sm:$0xf]
        %v4805 = vld [vmem:[%s105 + $0x4] sm:$0x1]
        %v4806 = vld [vmem:[%s107] sm:$0xff]
        %v4807 = vld [vmem:[%s107 + $0x8] sm:$0x1]
        %v4808 = vld [vmem:[#allocation29] sm:$0x1]
        %v4809 = vld [vmem:[%s111] sm:$0x1]
        %v4810 = vld [vmem:[%s113] sm:$0xf]
        %v4811 = vld [vmem:[%s113 + $0x4] sm:$0xf]
        %v4812 = vld [vmem:[#allocation31] sm:$0x1]
        %v4813 = vld [vmem:[#allocation32] sm:$0x1]
        %v4814 = vld [vmem:[%s119] sm:$0x1]
        %v4815 = vld [vmem:[%s121] sm:$0xf]
        %v4816 = vld [vmem:[%s121 + $0x4] sm:$0xf]
        %v4817 = vld [vmem:[%s121 + $0x8] sm:$0xf]
        %v4818 = vld [vmem:[%s121 + $0xc] sm:$0xf]
        %v4819 = vld [vmem:[%s121 + $0x10] sm:$0xf]
        %v4820 = vld [vmem:[%s121 + $0x14] sm:$0xf]
        %v4821 = vld [vmem:[%s121 + $0x18] sm:$0xf]
        %v4822 = vld [vmem:[%s121 + $0x1c] sm:$0xf]
        %v4823 = vpack.c.bf16 %v4793, %v4793
        %v4832 = vunpack.c.l.b16 %v4794
        %v4833 = vunpack.c.l.b16 %v4795
        %v4834 = vunpack.c.l.b16 %v4796
        %v4835 = vunpack.c.l.b16 %v4797
        %v4836 = vunpack.c.l.b16 %v4798
        %v4837 = vunpack.c.l.b16 %v4799
        %v4838 = vunpack.c.l.b16 %v4800
        %v4839 = vunpack.c.l.b16 %v4801
        %v4840 = vpack.c.b16 %v4833, %v4832
        %v4841 = vpack.c.b16 %v4835, %v4834
        %v4842 = vpack.c.b16 %v4837, %v4836
        %v4843 = vpack.c.b16 %v4839, %v4838
        %v4849 = vsel %vm3823, %v4823, 0
        %4851 = vmatpush.bf16.msra.mxu0 0
        %4852 = vmatpush.bf16.msra.mxu0 0
        %4853 = vmatpush.bf16.msra.mxu0 0
        %4854 = vmatpush.bf16.msra.mxu0 0
        %4855 = vmatpush.bf16.msra.mxu0 %v4843
        %4856 = vmatpush.bf16.msra.mxu0 %v4842
        %4857 = vmatpush.bf16.msra.mxu0 %v4841
        %4858 = vmatpush.bf16.msra.mxu0 %v4840
        %4859 = vmatmul.bf16.gmra.mxu0 %v4849
        %v4860 = vpop.f32.mrf.mxu0
        %v4861 = vadd.f32 0.0, %v4860
        %v4862 = vpop.f32.mrf.mxu0
        %4863 = vdwg.mxu0
        %v4865 = vperm.slane %v4802, 0
        %v4867 = vmul.f32 %v4861, %v4865
        %v4869 = vperm.slane %v4803, 0
        %v4871 = vadd.f32 %v4867, %v4869
        %v4872 = vmax.f32 %v4871, 0.0
        %v4873 = vpack.c.bf16 %v4872, %v4872
        %v4876 = vunpack.c.l.b16 %v4804
        %v4877 = vunpack.c.l.b16 %v4805
        %v4878 = vpack.c.b16 %v4877, %v4876
        %v4880 = vsel %vm3976, %v4878, 0
        %v4883 = vsel %vm3980, %v4873, 0
        %4885 = vmatpush.bf16.msra.mxu0 0
        %4886 = vmatpush.bf16.msra.mxu0 0
        %4887 = vmatpush.bf16.msra.mxu0 0
        %4888 = vmatpush.bf16.msra.mxu0 0
        %4889 = vmatpush.bf16.msra.mxu0 0
        %4890 = vmatpush.bf16.msra.mxu0 0
        %4891 = vmatpush.bf16.msra.mxu0 0
        %4892 = vmatpush.bf16.msra.mxu0 %v4883
        %4893 = vmatmul.bf16.gmra.mxu0 %v4880
        %v4894 = vpop.f32.mrf.mxu0
        %v4895 = vadd.f32 0.0, %v4894
        %v4896 = vpop.f32.mrf.mxu0
        %v4897 = vadd.f32 0.0, %v4896
        %4898 = vdwg.mxu0
        %v4899 = vmul.f32 %v4895, %v4806
        %v4900 = vmul.f32 %v4897, %v4807
        %v4901 = vpack.c.bf16 %v4900, %v4899
        %vm4902 = vcmask 72704
        %v4904 = vsel %vm4902, %v4809, 0
        %v4906 = vsel %vm4353, 4294967295, 65535
        %v4907 = vsel %vm2626, %v4906, 0
        %v4909 = vand.u32 %v4901, %v4907
        %4911 = vmatpush.bf16.msra.mxu0 0
        %4912 = vmatpush.bf16.msra.mxu0 0
        %4913 = vmatpush.bf16.msra.mxu0 0
        %4914 = vmatpush.bf16.msra.mxu0 0
        %4915 = vmatpush.bf16.msra.mxu0 0
        %4916 = vmatpush.bf16.msra.mxu0 0
        %4917 = vmatpush.bf16.msra.mxu0 0
        %4918 = vmatpush.bf16.msra.mxu0 %v4909
        %4919 = vmatmul.bf16.gmra.mxu0 %v4904
        %v4920 = vpop.f32.mrf.mxu0
        %v4921 = vadd.f32 %v4808, %v4920
        %v4922 = vpop.f32.mrf.mxu0
        %4923 = vdwg.mxu0
        %v4924 = vpack.c.bf16 %v4921, %v4921
        %v4927 = vunpack.c.l.b16 %v4810
        %v4928 = vunpack.c.l.b16 %v4811
        %v4929 = vpack.c.b16 %v4928, %v4927
        %v4932 = vsel %vm3702, %v4924, 0
        %4934 = vmatpush.bf16.msra.mxu0 0
        %4935 = vmatpush.bf16.msra.mxu0 0
        %4936 = vmatpush.bf16.msra.mxu0 0
        %4937 = vmatpush.bf16.msra.mxu0 0
        %4938 = vmatpush.bf16.msra.mxu0 0
        %4939 = vmatpush.bf16.msra.mxu0 0
        %4940 = vmatpush.bf16.msra.mxu0 0
        %4941 = vmatpush.bf16.msra.mxu0 %v4929
        %4942 = vmatmul.bf16.gmra.mxu0 %v4932
        %v4943 = vpop.f32.mrf.mxu0
        %v4944 = vadd.f32 0.0, %v4943
        %v4945 = vpop.f32.mrf.mxu0
        %4946 = vdwg.mxu0
        %v4947 = vmul.f32 %v4944, %v4812
        %v4948 = vadd.f32 %v4947, %v4813
        %v4950 = vsel %vm3976, %v4814, 0
        %v4952 = vsel %vm3980, %v4823, 0
        %4954 = vmatpush.bf16.msra.mxu0 0
        %4955 = vmatpush.bf16.msra.mxu0 0
        %4956 = vmatpush.bf16.msra.mxu0 0
        %4957 = vmatpush.bf16.msra.mxu0 0
        %4958 = vmatpush.bf16.msra.mxu0 0
        %4959 = vmatpush.bf16.msra.mxu0 0
        %4960 = vmatpush.bf16.msra.mxu0 0
        %4961 = vmatpush.bf16.msra.mxu0 %v4952
        %4962 = vmatmul.bf16.gmra.mxu0 %v4950
        %v4963 = vpop.f32.mrf.mxu0
        %v4964 = vadd.f32 0.0, %v4963
        %v4965 = vpop.f32.mrf.mxu0
        %4966 = vdwg.mxu0
        %v4967 = vmul.f32 %v4964, 0.11111111
        %v4968 = vpack.c.bf16 %v4967, %v4967
        %v4977 = vunpack.c.l.b16 %v4815
        %v4978 = vunpack.c.l.b16 %v4816
        %v4979 = vunpack.c.l.b16 %v4817
        %v4980 = vunpack.c.l.b16 %v4818
        %v4981 = vunpack.c.l.b16 %v4819
        %v4982 = vunpack.c.l.b16 %v4820
        %v4983 = vunpack.c.l.b16 %v4821
        %v4984 = vunpack.c.l.b16 %v4822
        %v4985 = vpack.c.b16 %v4978, %v4977
        %v4986 = vpack.c.b16 %v4980, %v4979
        %v4987 = vpack.c.b16 %v4982, %v4981
        %v4988 = vpack.c.b16 %v4984, %v4983
        %v4994 = vsel %vm3823, %v4968, 0
        %4996 = vmatpush.bf16.msra.mxu0 0
        %4997 = vmatpush.bf16.msra.mxu0 0
        %4998 = vmatpush.bf16.msra.mxu0 0
        %4999 = vmatpush.bf16.msra.mxu0 0
        %5000 = vmatpush.bf16.msra.mxu0 %v4988
        %5001 = vmatpush.bf16.msra.mxu0 %v4987
        %5002 = vmatpush.bf16.msra.mxu0 %v4986
        %5003 = vmatpush.bf16.msra.mxu0 %v4985
        %5004 = vmatmul.bf16.gmra.mxu0 %v4994
        %v5005 = vpop.f32.mrf.mxu0
        %v5006 = vadd.f32 0.0, %v5005
        %v5007 = vpop.f32.mrf.mxu0
        %5008 = vdwg.mxu0
        %v5009 = vadd.f32 %v4948, %v5006
        %v5010 = vmax.f32 %v5009, 0.0
        %v5011 = vld [vmem:[%s123] sm:$0xf]
        %v5012 = vld [vmem:[%s123 + $0x4] sm:$0xf]
        %v5013 = vld [vmem:[%s123 + $0x8] sm:$0xf]
        %v5014 = vld [vmem:[%s123 + $0xc] sm:$0xf]
        %v5015 = vld [vmem:[%s123 + $0x10] sm:$0xf]
        %v5016 = vld [vmem:[%s123 + $0x14] sm:$0xf]
        %v5017 = vld [vmem:[%s123 + $0x18] sm:$0xf]
        %v5018 = vld [vmem:[%s123 + $0x1c] sm:$0xf]
        %v5019 = vld [vmem:[%s123 + $0x20] sm:$0xf]
        %v5020 = vld [vmem:[%s123 + $0x24] sm:$0xf]
        %v5021 = vld [vmem:[%s123 + $0x28] sm:$0xf]
        %v5022 = vld [vmem:[%s123 + $0x2c] sm:$0xf]
        %v5023 = vld [vmem:[%s123 + $0x30] sm:$0xf]
        %v5024 = vld [vmem:[%s123 + $0x34] sm:$0xf]
        %v5025 = vld [vmem:[%s123 + $0x38] sm:$0xf]
        %v5026 = vld [vmem:[%s123 + $0x3c] sm:$0xf]
        %v5027 = vld [vmem:[#allocation34] sm:$0x1]
        %v5028 = vld [vmem:[#allocation35] sm:$0x1]
        %v5029 = vld [vmem:[%s129] sm:$0xf]
        %v5030 = vld [vmem:[%s129 + $0x4] sm:$0x1]
        %v5031 = vld [vmem:[%s131] sm:$0xff]
        %v5032 = vld [vmem:[%s131 + $0x8] sm:$0x1]
        %v5033 = vld [vmem:[#allocation37] sm:$0x1]
        %v5034 = vld [vmem:[%s135] sm:$0x1]
        %v5035 = vld [vmem:[%s137] sm:$0xf]
        %v5036 = vld [vmem:[%s137 + $0x4] sm:$0xf]
        %v5037 = vld [vmem:[%s137 + $0x8] sm:$0xf]
        %v5038 = vld [vmem:[%s137 + $0xc] sm:$0xf]
        %v5039 = vld [vmem:[#allocation38] sm:$0x1]
        %v5040 = vld [vmem:[#allocation40] sm:$0x1]
        %v5041 = vpack.c.bf16 %v5010, %v5010
        %v5058 = vunpack.c.l.b16 %v5011
        %v5059 = vunpack.c.l.b16 %v5012
        %v5060 = vunpack.c.l.b16 %v5013
        %v5061 = vunpack.c.l.b16 %v5014
        %v5062 = vunpack.c.l.b16 %v5015
        %v5063 = vunpack.c.l.b16 %v5016
        %v5064 = vunpack.c.l.b16 %v5017
        %v5065 = vunpack.c.l.b16 %v5018
        %v5066 = vunpack.c.l.b16 %v5019
        %v5067 = vunpack.c.l.b16 %v5020
        %v5068 = vunpack.c.l.b16 %v5021
        %v5069 = vunpack.c.l.b16 %v5022
        %v5070 = vunpack.c.l.b16 %v5023
        %v5071 = vunpack.c.l.b16 %v5024
        %v5072 = vunpack.c.l.b16 %v5025
        %v5073 = vunpack.c.l.b16 %v5026
        %v5074 = vpack.c.b16 %v5059, %v5058
        %v5075 = vpack.c.b16 %v5061, %v5060
        %v5076 = vpack.c.b16 %v5063, %v5062
        %v5077 = vpack.c.b16 %v5065, %v5064
        %v5078 = vpack.c.b16 %v5067, %v5066
        %v5079 = vpack.c.b16 %v5069, %v5068
        %v5080 = vpack.c.b16 %v5071, %v5070
        %v5081 = vpack.c.b16 %v5073, %v5072
        %5090 = vmatpush.bf16.msra.mxu0 %v5081
        %5091 = vmatpush.bf16.msra.mxu0 %v5080
        %5092 = vmatpush.bf16.msra.mxu0 %v5079
        %5093 = vmatpush.bf16.msra.mxu0 %v5078
        %5094 = vmatpush.bf16.msra.mxu0 %v5077
        %5095 = vmatpush.bf16.msra.mxu0 %v5076
        %5096 = vmatpush.bf16.msra.mxu0 %v5075
        %5097 = vmatpush.bf16.msra.mxu0 %v5074
        %5098 = vmatmul.bf16.gmra.mxu0 %v5041
        %v5099 = vpop.f32.mrf.mxu0
        %v5100 = vadd.f32 0.0, %v5099
        %v5101 = vpop.f32.mrf.mxu0
        %5102 = vdwg.mxu0
        %v5103 = vmul.f32 %v5100, %v5027
        %v5104 = vadd.f32 %v5103, %v5028
        %v5105 = vmax.f32 %v5104, 0.0
        %v5106 = vpack.c.bf16 %v5105, %v5105
        %v5109 = vunpack.c.l.b16 %v5029
        %v5110 = vunpack.c.l.b16 %v5030
        %v5111 = vpack.c.b16 %v5110, %v5109
        %vm5112 = vcmask 7168
        %v5114 = vsel %vm5112, %v5111, 0
        %vm5116 = vcmask 1040384
        %v5117 = vsel 0, 4294967295, 65535
        %v5118 = vsel %vm5116, %v5117, 0
        %v5120 = vand.u32 %v5106, %v5118
        %5122 = vmatpush.bf16.msra.mxu0 0
        %5123 = vmatpush.bf16.msra.mxu0 0
        %5124 = vmatpush.bf16.msra.mxu0 0
        %5125 = vmatpush.bf16.msra.mxu0 0
        %5126 = vmatpush.bf16.msra.mxu0 0
        %5127 = vmatpush.bf16.msra.mxu0 0
        %5128 = vmatpush.bf16.msra.mxu0 0
        %5129 = vmatpush.bf16.msra.mxu0 %v5120
        %5130 = vmatmul.bf16.gmra.mxu0 %v5114
        %v5131 = vpop.f32.mrf.mxu0
        %v5132 = vadd.f32 0.0, %v5131
        %v5133 = vpop.f32.mrf.mxu0
        %v5134 = vadd.f32 0.0, %v5133
        %5135 = vdwg.mxu0
        %v5136 = vmul.f32 %v5132, %v5031
        %v5137 = vmul.f32 %v5134, %v5032
        %v5138 = vpack.c.bf16 %v5137, %v5136
        %v5140 = vsel %vm4902, %v5034, 0
        %v5143 = vand.u32 %v5138, %v4907
        %5145 = vmatpush.bf16.msra.mxu0 0
        %5146 = vmatpush.bf16.msra.mxu0 0
        %5147 = vmatpush.bf16.msra.mxu0 0
        %5148 = vmatpush.bf16.msra.mxu0 0
        %5149 = vmatpush.bf16.msra.mxu0 0
        %5150 = vmatpush.bf16.msra.mxu0 0
        %5151 = vmatpush.bf16.msra.mxu0 0
        %5152 = vmatpush.bf16.msra.mxu0 %v5143
        %5153 = vmatmul.bf16.gmra.mxu0 %v5140
        %v5154 = vpop.f32.mrf.mxu0
        %v5155 = vadd.f32 %v5033, %v5154
        %v5156 = vpop.f32.mrf.mxu0
        %5157 = vdwg.mxu0
        %v5158 = vpack.c.bf16 %v5155, %v5155
        %v5163 = vunpack.c.l.b16 %v5035
        %v5164 = vunpack.c.l.b16 %v5036
        %v5165 = vunpack.c.l.b16 %v5037
        %v5166 = vunpack.c.l.b16 %v5038
        %v5167 = vpack.c.b16 %v5164, %v5163
        %v5168 = vpack.c.b16 %v5166, %v5165
        %v5172 = vsel %vm4121, %v5158, 0
        %5174 = vmatpush.bf16.msra.mxu0 0
        %5175 = vmatpush.bf16.msra.mxu0 0
        %5176 = vmatpush.bf16.msra.mxu0 0
        %5177 = vmatpush.bf16.msra.mxu0 0
        %5178 = vmatpush.bf16.msra.mxu0 0
        %5179 = vmatpush.bf16.msra.mxu0 0
        %5180 = vmatpush.bf16.msra.mxu0 %v5168
        %5181 = vmatpush.bf16.msra.mxu0 %v5167
        %5182 = vmatmul.bf16.gmra.mxu0 %v5172
        %v5183 = vpop.f32.mrf.mxu0
        %v5184 = vadd.f32 0.0, %v5183
        %v5185 = vpop.f32.mrf.mxu0
        %5186 = vdwg.mxu0
        %v5187 = vmul.f32 %v5184, %v5039
        %v5188 = vadd.f32 %v5187, %v5040
        %v5189 = vadd.f32 %v5188, %v5010
        %v5190 = vmax.f32 %v5189, 0.0
        %5191 = vst [vmem:[%s2433] sm:$0x1] %v5190
        %s5192 = sand.u32 %s1674, 1
        %s5193 = scalar_lea.sflag [#allocation4], %s5192
        %s5194 = sand.u32 %s1674, 1
        %s5195 = scalar_lea.vmem [#allocation41], %s5194
        // Predicated region
        $region405: #{forward.1} parent=303 // pred_check
          %p5196 = pneg %p1684
        $region406: #{forward.1} parent=303 // pred_check_branch
          %5198 = sbr.rel (%p5196) target = $region408
        $region407: #{forward.1} parent=303 // pred_region
          %5200 = vsyncadd %s5193, 0
          %s5201 = scalar_lea.hbm %s143, %s170
          %s5203 = sshll.u32 %s5195, 4
          %s5204 = int_to_ptr.vmem [resolvable:$true] %s5203
          %s5205 = sshll.u32 %s5201, 4
          %s5206 = int_to_ptr.hbm [resolvable:$true] %s5205
          %5208 = dma.vmem_to_hbm [thread:$0]  %s5204, 16, %s5206, %s5193
        $region408: #{forward.1} parent=303 // pred_fallthru
          _
      $region304: #{forward.1} parent=5 // pred_fallthru
        _
      %p5209 = scmp.le.s32.totalorder 2, %s165
      // Predicated region
      $region409: #{forward.1} parent=5 // pred_check
        %p5210 = pneg %p5209
      $region410: #{forward.1} parent=5 // pred_check_branch
        %5212 = sbr.rel (%p5210) target = $region412
      $region411: #{forward.1} parent=5 // pred_region
        %s5213 = ssub.s32 %s165, 2
        // Predicated region
        $region413: #{forward.1} parent=411 // pred_check
          %p5214 = pneg %p1690
        $region414: #{forward.1} parent=411 // pred_check_branch
          %5216 = sbr.rel (%p5214) target = $region416
        $region415: #{forward.1} parent=411 // pred_region
          %s5217 = sand.u32 %s1675, 1
          %s5218 = scalar_lea.sflag [#allocation4], %s5217
          %s5219 = sand.u32 %s1675, 1
          %s5220 = scalar_lea.vmem [#allocation41], %s5219
          %5222 = dma.done %s5218, 16
        $region416: #{forward.1} parent=411 // pred_fallthru
          _
      $region412: #{forward.1} parent=5 // pred_fallthru
        _
    $region6: #{forward.1} parent=1 // loop_footer
      %s169 = sadd.s32 1, %s165
    $region7: #{forward.1} parent=1 // loop_footer_branch
      %164 = sbr.rel target = $region3
    $region8: #{forward.1} parent=1 // loop_exit
      _
    %5223 = vsyncpa [#allocation3], 1
    %s5224 = scalar_lea.sflag [#allocation3], 1
    %5225 = vsyncpa %s5224, 1
    %5226 = vsyncpa [#allocation6], 1
    %5227 = vsyncpa [#allocation9], 1
    %5228 = vsyncpa [#allocation12], 1
    %5229 = vsyncpa [#allocation15], 1
    %5230 = vsyncpa [#allocation18], 1
    %5231 = vsyncpa [#allocation21], 1
    %5232 = vsyncpa [#allocation24], 1
    %5233 = vsyncpa [#allocation27], 1
    %5234 = vsyncpa [#allocation30], 1
    %5235 = vsyncpa [#allocation33], 1
    %5236 = vsyncpa [#allocation36], 1
    %5237 = vsyncpa [#allocation39], 1
    %5238 = vsyncpa [#allocation4], 1
    %s5239 = scalar_lea.sflag [#allocation4], 1
    %5240 = vsyncpa %s5239, 1

</llo_original>
